<compile_context>
chip_gen: v7x
topology: tpu7x:2x2x1
jax: 0.10.0
libtpu: 0.0.40
codegen_flags: <defaults>
</compile_context>

<pallas_src>
import functools

import jax
import jax.numpy as jnp
from jax import lax
from jax.experimental import pallas as pl
from jax.experimental.pallas import tpu as pltpu


def repconv_kernel(x_ref, w_ref, b_ref, m_ref, out_ref, xbuf_ref, *, W, halo):
    """One grid step processes NB images.

    x_ref   : (NB, C1, HW)            input images, flat spatial on lanes
    w_ref   : (9, C2, C1)             fused 3x3 taps (BN + 1x1 branch folded), f32
    b_ref   : (C2, 1)                 fused bias, f32
    m_ref   : (2, HW)                 {0,1} masks: [0] keep col>0, [1] keep col<W-1
    out_ref : (NB, C2, HW)
    xbuf_ref: (C1, halo + HW + halo)  f32 scratch, 128-aligned zero halo each side
    """
    NB, C1, HW = x_ref.shape
    C2 = out_ref.shape[1]

    # Clear the halo strips. Aligned, full-width (multiple of 128 lanes) stores.
    # Done unconditionally each grid step: trivially cheap, and stays correct
    # when the "parallel" batch axis is sharded across TensorCores (per-core
    # scratch would miss a program_id==0-gated init).
    xbuf_ref[:, 0:halo] = jnp.zeros((C1, halo), jnp.float32)
    xbuf_ref[:, halo + HW:halo + HW + halo] = jnp.zeros((C1, halo), jnp.float32)

    mask_l = m_ref[0:1, :]          # (1, HW) keep mask for kernel column 0
    mask_r = m_ref[1:2, :]          # (1, HW) keep mask for kernel column 2
    bias = b_ref[...]               # (C2, 1), lane-broadcast

    for nb in range(NB):
        # Stage this image (cast to f32) into the zero-haloed flat-spatial
        # scratch. The interior starts at a 128-lane boundary -> aligned store.
        xbuf_ref[:, halo:halo + HW] = x_ref[nb].astype(jnp.float32)

        # Group the 9 taps by kernel column so the wraparound masks are applied
        # once per group on the (C2, HW) accumulator, not per input view.
        acc_col = []
        for kj in range(3):
            acc = jnp.zeros((C2, HW), jnp.float32)
            for ki in range(3):
                s = (ki - 1) * W + (kj - 1)                 # flat-spatial shift
                xs = xbuf_ref[:, halo + s:halo + s + HW]    # (C1, HW) shifted view
                acc = acc + jnp.dot(w_ref[ki * 3 + kj], xs,
                                    precision=lax.Precision.HIGHEST,
                                    preferred_element_type=jnp.float32)
            acc_col.append(acc)

        y = acc_col[1] + bias + mask_l * acc_col[0] + mask_r * acc_col[2]
        out_ref[nb] = (y * jax.nn.sigmoid(y)).astype(out_ref.dtype)   # SiLU


def fuse_repconv_params(w3, bn1, w1, bn2, eps=1e-5):
    """Fold BN into each branch and the 1x1 into the 3x3 (RepVGG fusion)."""
    g1, b1, m1, v1 = bn1
    g2, b2, m2, v2 = bn2
    t1 = g1 / jnp.sqrt(v1 + eps)
    t2 = g2 / jnp.sqrt(v2 + eps)
    k3 = w3 * t1[:, None, None, None]                       # (C2, C1, 3, 3)
    k1 = w1[:, :, 0, 0] * t2[:, None]                       # (C2, C1)
    k = k3.at[:, :, 1, 1].add(k1)
    bias = (b1 - m1 * t1) + (b2 - m2 * t2)                  # (C2,)
    C2, C1 = k.shape[0], k.shape[1]
    w_taps = jnp.transpose(k, (2, 3, 0, 1)).reshape(9, C2, C1)
    return w_taps.astype(jnp.float32), bias.astype(jnp.float32)


@functools.partial(jax.jit, static_argnames=("batch_block",))
def repconv_forward(x, w_taps, bias, *, batch_block=1):
    N, C1, H, W = x.shape
    C2 = w_taps.shape[1]
    HW = H * W
    pad = W + 1                                  # logical halo for +/-(W+1) shifts
    halo = ((pad + 127) // 128) * 128            # 128-lane aligned physical halo
    NB = batch_block
    assert N % NB == 0

    x_flat = x.reshape(N, C1, HW)                # free reshape -> lane-dense layout

    col = jnp.arange(HW, dtype=jnp.int32) % W
    masks = jnp.stack([(col != 0), (col != W - 1)]).astype(jnp.float32)   # (2, HW)
    bias_col = bias.reshape(C2, 1)

    kernel = functools.partial(repconv_kernel, W=W, halo=halo)
    out_flat = pl.pallas_call(
        kernel,
        out_shape=jax.ShapeDtypeStruct((N, C2, HW), x.dtype),
        grid_spec=pltpu.PrefetchScalarGridSpec(
            num_scalar_prefetch=0,
            grid=(N // NB,),
            in_specs=[
                pl.BlockSpec((NB, C1, HW), lambda n: (n, 0, 0)),
                pl.BlockSpec((9, C2, C1), lambda n: (0, 0, 0)),
                pl.BlockSpec((C2, 1), lambda n: (0, 0)),
                pl.BlockSpec((2, HW), lambda n: (0, 0)),
            ],
            out_specs=pl.BlockSpec((NB, C2, HW), lambda n: (n, 0, 0)),
            scratch_shapes=[pltpu.VMEM((C1, HW + 2 * halo), jnp.float32)],
        ),
        compiler_params=pltpu.CompilerParams(
            dimension_semantics=("parallel",),        # shard batch over TCs (v7x)
            vmem_limit_bytes=32 * 1024 * 1024,        # explicit, safe on v5e/v6e/v7x
        ),
    )(x_flat, w_taps, bias_col, masks)
    return out_flat.reshape(N, C2, H, W)


def repconv_ref(x, w3, bn1, w1, bn2, eps=1e-5):
    """Pure-JAX reference matching RepConv.forward (inference-mode BN, bn=False)."""
    def bn(z, p):
        g, b, m, v = p
        sh = (1, -1, 1, 1)
        return (z - m.reshape(sh)) * (g / jnp.sqrt(v + eps)).reshape(sh) + b.reshape(sh)

    y3 = lax.conv_general_dilated(x, w3, (1, 1), ((1, 1), (1, 1)),
                                  dimension_numbers=('NCHW', 'OIHW', 'NCHW'),
                                  precision=lax.Precision.HIGHEST)
    y1 = lax.conv_general_dilated(x, w1, (1, 1), ((0, 0), (0, 0)),
                                  dimension_numbers=('NCHW', 'OIHW', 'NCHW'),
                                  precision=lax.Precision.HIGHEST)
    s = bn(y3, bn1) + bn(y1, bn2)
    return s * jax.nn.sigmoid(s)    # SiLU


if __name__ == "__main__":
    key = jax.random.PRNGKey(0)
    ks = jax.random.split(key, 11)

    N, C1, C2, H, W = 2, 4, 4, 16, 16
    eps = 1e-5
    x = jax.random.normal(ks[0], (N, C1, H, W), jnp.float32)

    # conv1: Conv2d(C1, C2, 3, 1, 1, bias=False) + BatchNorm2d(C2)
    w3 = jax.random.normal(ks[1], (C2, C1, 3, 3), jnp.float32) / jnp.sqrt(9.0 * C1)
    bn1 = (jax.random.uniform(ks[2], (C2,), minval=0.5, maxval=1.5),
           jax.random.normal(ks[3], (C2,), jnp.float32) * 0.1,
           jax.random.normal(ks[4], (C2,), jnp.float32) * 0.1,
           jax.random.uniform(ks[5], (C2,), minval=0.5, maxval=1.5))
    # conv2: Conv2d(C1, C2, 1, 1, 0, bias=False) + BatchNorm2d(C2)
    w1 = jax.random.normal(ks[6], (C2, C1, 1, 1), jnp.float32) / jnp.sqrt(1.0 * C1)
    bn2 = (jax.random.uniform(ks[7], (C2,), minval=0.5, maxval=1.5),
           jax.random.normal(ks[8], (C2,), jnp.float32) * 0.1,
           jax.random.normal(ks[9], (C2,), jnp.float32) * 0.1,
           jax.random.uniform(ks[10], (C2,), minval=0.5, maxval=1.5))

    w_taps, bias = fuse_repconv_params(w3, bn1, w1, bn2, eps=eps)

    out = repconv_forward(x, w_taps, bias, batch_block=1)
    out = jax.block_until_ready(out)

    ref = repconv_ref(x, w3, bn1, w1, bn2, eps=eps)
    assert out.shape == ref.shape and out.dtype == ref.dtype
    max_err = float(jnp.max(jnp.abs(out - ref)))
    assert jnp.allclose(out, ref, atol=1e-3, rtol=1e-3), max_err

    print("KERNEL_OK")
</pallas_src>

<mosaic_0001>
module attributes {stable_mosaic.version = 11 : i64} {
  func.func @repconv_kernel(%arg0: i32, %arg1: memref<1x4x256xf32, #tpu.memory_space<vmem>>, %arg2: memref<9x4x4xf32, #tpu.memory_space<vmem>>, %arg3: memref<4x1xf32, #tpu.memory_space<vmem>>, %arg4: memref<2x256xf32, #tpu.memory_space<vmem>>, %arg5: memref<1x4x256xf32, #tpu.memory_space<vmem>>, %arg6: memref<4x512xf32, #tpu.memory_space<vmem>>) attributes {dimension_semantics = [#tpu.dimension_semantics<parallel>], iteration_bounds = array<i64: 2>, scalar_prefetch = 0 : i64, scratch_operands = 1 : i64, tpu.core_type = #tpu.core_type<tc>, window_params = [{transform_indices = @transform_0, window_bounds = array<i64: 1, 4, 256>}, {pipeline_mode = #tpu.pipeline_mode<synchronous>, transform_indices = @transform_1, window_bounds = array<i64: 9, 4, 4>}, {pipeline_mode = #tpu.pipeline_mode<synchronous>, transform_indices = @transform_2, window_bounds = array<i64: 4, 1>}, {pipeline_mode = #tpu.pipeline_mode<synchronous>, transform_indices = @transform_3, window_bounds = array<i64: 2, 256>}, {transform_indices = @transform_4, window_bounds = array<i64: 1, 4, 256>}]} {
    %cst = arith.constant 0.000000e+00 : f32
    %0 = vector.broadcast %cst : f32 to vector<4x128xf32>
    %c0 = arith.constant 0 : index
    %c0_0 = arith.constant 0 : index
    %1 = vector.load %arg6[%c0, %c0_0] : memref<4x512xf32, #tpu.memory_space<vmem>>, vector<4x128xf32>
    tpu.vector_store %arg6[%c0, %c0_0], %0 {strides = array<i32>} : memref<4x512xf32, #tpu.memory_space<vmem>>, vector<4x128xf32>,
    %cst_1 = arith.constant 0.000000e+00 : f32
    %2 = vector.broadcast %cst_1 : f32 to vector<4x128xf32>
    %c0_2 = arith.constant 0 : index
    %c384 = arith.constant 384 : index
    %3 = vector.load %arg6[%c0_2, %c384] : memref<4x512xf32, #tpu.memory_space<vmem>>, vector<4x128xf32>
    tpu.vector_store %arg6[%c0_2, %c384], %2 {strides = array<i32>} : memref<4x512xf32, #tpu.memory_space<vmem>>, vector<4x128xf32>,
    %c0_3 = arith.constant 0 : index
    %c0_4 = arith.constant 0 : index
    %4 = vector.load %arg4[%c0_3, %c0_4] : memref<2x256xf32, #tpu.memory_space<vmem>>, vector<1x256xf32>
    %c1 = arith.constant 1 : index
    %c0_5 = arith.constant 0 : index
    %5 = vector.load %arg4[%c1, %c0_5] : memref<2x256xf32, #tpu.memory_space<vmem>>, vector<1x256xf32>
    %c0_6 = arith.constant 0 : index
    %c0_7 = arith.constant 0 : index
    %6 = vector.load %arg3[%c0_6, %c0_7] : memref<4x1xf32, #tpu.memory_space<vmem>>, vector<4x1xf32>
    %c0_8 = arith.constant 0 : index
    %c0_9 = arith.constant 0 : index
    %c0_10 = arith.constant 0 : index
    %7 = vector.load %arg1[%c0_8, %c0_9, %c0_10] : memref<1x4x256xf32, #tpu.memory_space<vmem>>, vector<1x4x256xf32>
    %8 = vector.shape_cast %7 : vector<1x4x256xf32> to vector<4x256xf32>
    %c0_11 = arith.constant 0 : index
    %c128 = arith.constant 128 : index
    %9 = vector.load %arg6[%c0_11, %c128] : memref<4x512xf32, #tpu.memory_space<vmem>>, vector<4x256xf32>
    tpu.vector_store %arg6[%c0_11, %c128], %8 {strides = array<i32>} : memref<4x512xf32, #tpu.memory_space<vmem>>, vector<4x256xf32>,
    %cst_12 = arith.constant 0.000000e+00 : f32
    %10 = vector.broadcast %cst_12 : f32 to vector<4x256xf32>
    %c0_13 = arith.constant 0 : index
    %c111 = arith.constant 111 : index
    %11 = vector.load %arg6[%c0_13, %c111] : memref<4x512xf32, #tpu.memory_space<vmem>>, vector<4x256xf32>
    %c0_14 = arith.constant 0 : index
    %c0_15 = arith.constant 0 : index
    %c0_16 = arith.constant 0 : index
    %12 = vector.load %arg2[%c0_14, %c0_15, %c0_16] : memref<9x4x4xf32, #tpu.memory_space<vmem>>, vector<1x4x4xf32>
    %13 = vector.shape_cast %12 : vector<1x4x4xf32> to vector<4x4xf32>
    %cst_17 = arith.constant dense<0.000000e+00> : vector<4x256xf32>
    %14 = tpu.matmul %13, %11, %cst_17 {dimension_numbers = #tpu.dot_dimension_numbers<[1], [0], [0], [1], [0, 0, 1, 1], [], []>, precision = #tpu.contract_precision<fp32>} : vector<4x4xf32>, vector<4x256xf32>, vector<4x256xf32> -> vector<4x256xf32>
    %15 = arith.addf %10, %14 : vector<4x256xf32>
    %c0_18 = arith.constant 0 : index
    %c127 = arith.constant 127 : index
    %16 = vector.load %arg6[%c0_18, %c127] : memref<4x512xf32, #tpu.memory_space<vmem>>, vector<4x256xf32>
    %c3 = arith.constant 3 : index
    %c0_19 = arith.constant 0 : index
    %c0_20 = arith.constant 0 : index
    %17 = vector.load %arg2[%c3, %c0_19, %c0_20] : memref<9x4x4xf32, #tpu.memory_space<vmem>>, vector<1x4x4xf32>
    %18 = vector.shape_cast %17 : vector<1x4x4xf32> to vector<4x4xf32>
    %cst_21 = arith.constant dense<0.000000e+00> : vector<4x256xf32>
    %19 = tpu.matmul %18, %16, %cst_21 {dimension_numbers = #tpu.dot_dimension_numbers<[1], [0], [0], [1], [0, 0, 1, 1], [], []>, precision = #tpu.contract_precision<fp32>} : vector<4x4xf32>, vector<4x256xf32>, vector<4x256xf32> -> vector<4x256xf32>
    %20 = arith.addf %15, %19 : vector<4x256xf32>
    %c0_22 = arith.constant 0 : index
    %c143 = arith.constant 143 : index
    %21 = vector.load %arg6[%c0_22, %c143] : memref<4x512xf32, #tpu.memory_space<vmem>>, vector<4x256xf32>
    %c6 = arith.constant 6 : index
    %c0_23 = arith.constant 0 : index
    %c0_24 = arith.constant 0 : index
    %22 = vector.load %arg2[%c6, %c0_23, %c0_24] : memref<9x4x4xf32, #tpu.memory_space<vmem>>, vector<1x4x4xf32>
    %23 = vector.shape_cast %22 : vector<1x4x4xf32> to vector<4x4xf32>
    %cst_25 = arith.constant dense<0.000000e+00> : vector<4x256xf32>
    %24 = tpu.matmul %23, %21, %cst_25 {dimension_numbers = #tpu.dot_dimension_numbers<[1], [0], [0], [1], [0, 0, 1, 1], [], []>, precision = #tpu.contract_precision<fp32>} : vector<4x4xf32>, vector<4x256xf32>, vector<4x256xf32> -> vector<4x256xf32>
    %25 = arith.addf %20, %24 : vector<4x256xf32>
    %cst_26 = arith.constant 0.000000e+00 : f32
    %26 = vector.broadcast %cst_26 : f32 to vector<4x256xf32>
    %c0_27 = arith.constant 0 : index
    %c112 = arith.constant 112 : index
    %27 = vector.load %arg6[%c0_27, %c112] : memref<4x512xf32, #tpu.memory_space<vmem>>, vector<4x256xf32>
    %c1_28 = arith.constant 1 : index
    %c0_29 = arith.constant 0 : index
    %c0_30 = arith.constant 0 : index
    %28 = vector.load %arg2[%c1_28, %c0_29, %c0_30] : memref<9x4x4xf32, #tpu.memory_space<vmem>>, vector<1x4x4xf32>
    %29 = vector.shape_cast %28 : vector<1x4x4xf32> to vector<4x4xf32>
    %cst_31 = arith.constant dense<0.000000e+00> : vector<4x256xf32>
    %30 = tpu.matmul %29, %27, %cst_31 {dimension_numbers = #tpu.dot_dimension_numbers<[1], [0], [0], [1], [0, 0, 1, 1], [], []>, precision = #tpu.contract_precision<fp32>} : vector<4x4xf32>, vector<4x256xf32>, vector<4x256xf32> -> vector<4x256xf32>
    %31 = arith.addf %26, %30 : vector<4x256xf32>
    %c0_32 = arith.constant 0 : index
    %c128_33 = arith.constant 128 : index
    %32 = vector.load %arg6[%c0_32, %c128_33] : memref<4x512xf32, #tpu.memory_space<vmem>>, vector<4x256xf32>
    %c4 = arith.constant 4 : index
    %c0_34 = arith.constant 0 : index
    %c0_35 = arith.constant 0 : index
    %33 = vector.load %arg2[%c4, %c0_34, %c0_35] : memref<9x4x4xf32, #tpu.memory_space<vmem>>, vector<1x4x4xf32>
    %34 = vector.shape_cast %33 : vector<1x4x4xf32> to vector<4x4xf32>
    %cst_36 = arith.constant dense<0.000000e+00> : vector<4x256xf32>
    %35 = tpu.matmul %34, %32, %cst_36 {dimension_numbers = #tpu.dot_dimension_numbers<[1], [0], [0], [1], [0, 0, 1, 1], [], []>, precision = #tpu.contract_precision<fp32>} : vector<4x4xf32>, vector<4x256xf32>, vector<4x256xf32> -> vector<4x256xf32>
    %36 = arith.addf %31, %35 : vector<4x256xf32>
    %c0_37 = arith.constant 0 : index
    %c144 = arith.constant 144 : index
    %37 = vector.load %arg6[%c0_37, %c144] : memref<4x512xf32, #tpu.memory_space<vmem>>, vector<4x256xf32>
    %c7 = arith.constant 7 : index
    %c0_38 = arith.constant 0 : index
    %c0_39 = arith.constant 0 : index
    %38 = vector.load %arg2[%c7, %c0_38, %c0_39] : memref<9x4x4xf32, #tpu.memory_space<vmem>>, vector<1x4x4xf32>
    %39 = vector.shape_cast %38 : vector<1x4x4xf32> to vector<4x4xf32>
    %cst_40 = arith.constant dense<0.000000e+00> : vector<4x256xf32>
    %40 = tpu.matmul %39, %37, %cst_40 {dimension_numbers = #tpu.dot_dimension_numbers<[1], [0], [0], [1], [0, 0, 1, 1], [], []>, precision = #tpu.contract_precision<fp32>} : vector<4x4xf32>, vector<4x256xf32>, vector<4x256xf32> -> vector<4x256xf32>
    %41 = arith.addf %36, %40 : vector<4x256xf32>
    %cst_41 = arith.constant 0.000000e+00 : f32
    %42 = vector.broadcast %cst_41 : f32 to vector<4x256xf32>
    %c0_42 = arith.constant 0 : index
    %c113 = arith.constant 113 : index
    %43 = vector.load %arg6[%c0_42, %c113] : memref<4x512xf32, #tpu.memory_space<vmem>>, vector<4x256xf32>
    %c2 = arith.constant 2 : index
    %c0_43 = arith.constant 0 : index
    %c0_44 = arith.constant 0 : index
    %44 = vector.load %arg2[%c2, %c0_43, %c0_44] : memref<9x4x4xf32, #tpu.memory_space<vmem>>, vector<1x4x4xf32>
    %45 = vector.shape_cast %44 : vector<1x4x4xf32> to vector<4x4xf32>
    %cst_45 = arith.constant dense<0.000000e+00> : vector<4x256xf32>
    %46 = tpu.matmul %45, %43, %cst_45 {dimension_numbers = #tpu.dot_dimension_numbers<[1], [0], [0], [1], [0, 0, 1, 1], [], []>, precision = #tpu.contract_precision<fp32>} : vector<4x4xf32>, vector<4x256xf32>, vector<4x256xf32> -> vector<4x256xf32>
    %47 = arith.addf %42, %46 : vector<4x256xf32>
    %c0_46 = arith.constant 0 : index
    %c129 = arith.constant 129 : index
    %48 = vector.load %arg6[%c0_46, %c129] : memref<4x512xf32, #tpu.memory_space<vmem>>, vector<4x256xf32>
    %c5 = arith.constant 5 : index
    %c0_47 = arith.constant 0 : index
    %c0_48 = arith.constant 0 : index
    %49 = vector.load %arg2[%c5, %c0_47, %c0_48] : memref<9x4x4xf32, #tpu.memory_space<vmem>>, vector<1x4x4xf32>
    %50 = vector.shape_cast %49 : vector<1x4x4xf32> to vector<4x4xf32>
    %cst_49 = arith.constant dense<0.000000e+00> : vector<4x256xf32>
    %51 = tpu.matmul %50, %48, %cst_49 {dimension_numbers = #tpu.dot_dimension_numbers<[1], [0], [0], [1], [0, 0, 1, 1], [], []>, precision = #tpu.contract_precision<fp32>} : vector<4x4xf32>, vector<4x256xf32>, vector<4x256xf32> -> vector<4x256xf32>
    %52 = arith.addf %47, %51 : vector<4x256xf32>
    %c0_50 = arith.constant 0 : index
    %c145 = arith.constant 145 : index
    %53 = vector.load %arg6[%c0_50, %c145] : memref<4x512xf32, #tpu.memory_space<vmem>>, vector<4x256xf32>
    %c8 = arith.constant 8 : index
    %c0_51 = arith.constant 0 : index
    %c0_52 = arith.constant 0 : index
    %54 = vector.load %arg2[%c8, %c0_51, %c0_52] : memref<9x4x4xf32, #tpu.memory_space<vmem>>, vector<1x4x4xf32>
    %55 = vector.shape_cast %54 : vector<1x4x4xf32> to vector<4x4xf32>
    %cst_53 = arith.constant dense<0.000000e+00> : vector<4x256xf32>
    %56 = tpu.matmul %55, %53, %cst_53 {dimension_numbers = #tpu.dot_dimension_numbers<[1], [0], [0], [1], [0, 0, 1, 1], [], []>, precision = #tpu.contract_precision<fp32>} : vector<4x4xf32>, vector<4x256xf32>, vector<4x256xf32> -> vector<4x256xf32>
    %57 = arith.addf %52, %56 : vector<4x256xf32>
    %58 = vector.broadcast %6 : vector<4x1xf32> to vector<4x256xf32>
    %59 = arith.addf %41, %58 : vector<4x256xf32>
    %60 = vector.broadcast %4 : vector<1x256xf32> to vector<4x256xf32>
    %61 = arith.mulf %60, %25 : vector<4x256xf32>
    %62 = arith.addf %59, %61 : vector<4x256xf32>
    %63 = vector.broadcast %5 : vector<1x256xf32> to vector<4x256xf32>
    %64 = arith.mulf %63, %57 : vector<4x256xf32>
    %65 = arith.addf %62, %64 : vector<4x256xf32>
    %66 = arith.negf %65 : vector<4x256xf32>
    %67 = math.exp %66 : vector<4x256xf32>
    %cst_54 = arith.constant 1.000000e+00 : f32
    %68 = vector.broadcast %cst_54 : f32 to vector<4x256xf32>
    %69 = arith.addf %68, %67 : vector<4x256xf32>
    %70 = arith.divf %68, %69 : vector<4x256xf32>
    %71 = arith.mulf %65, %70 : vector<4x256xf32>
    %c0_55 = arith.constant 0 : index
    %c0_56 = arith.constant 0 : index
    %c0_57 = arith.constant 0 : index
    %72 = vector.load %arg5[%c0_55, %c0_56, %c0_57] : memref<1x4x256xf32, #tpu.memory_space<vmem>>, vector<1x4x256xf32>
    %73 = vector.shape_cast %72 : vector<1x4x256xf32> to vector<4x256xf32>
    %74 = vector.shape_cast %71 : vector<4x256xf32> to vector<1x4x256xf32>
    tpu.vector_store %arg5[%c0_55, %c0_56, %c0_57], %74 {strides = array<i32>} : memref<1x4x256xf32, #tpu.memory_space<vmem>>, vector<1x4x256xf32>,
    return
  }
  func.func @transform_0(%arg0: i32) -> (i32, i32, i32) {
    %c0_i32 = arith.constant 0 : i32
    %c0_i32_0 = arith.constant 0 : i32
    %c0_i32_1 = arith.constant 0 : i32
    return %arg0, %c0_i32, %c0_i32_0 : i32, i32, i32
  }
  func.func @transform_1(%arg0: i32) -> (i32, i32, i32) {
    %c0_i32 = arith.constant 0 : i32
    %c0_i32_0 = arith.constant 0 : i32
    %c0_i32_1 = arith.constant 0 : i32
    %c0_i32_2 = arith.constant 0 : i32
    return %c0_i32, %c0_i32_0, %c0_i32_1 : i32, i32, i32
  }
  func.func @transform_2(%arg0: i32) -> (i32, i32) {
    %c0_i32 = arith.constant 0 : i32
    %c0_i32_0 = arith.constant 0 : i32
    %c0_i32_1 = arith.constant 0 : i32
    return %c0_i32, %c0_i32_0 : i32, i32
  }
  func.func @transform_3(%arg0: i32) -> (i32, i32) {
    %c0_i32 = arith.constant 0 : i32
    %c0_i32_0 = arith.constant 0 : i32
    %c0_i32_1 = arith.constant 0 : i32
    return %c0_i32, %c0_i32_0 : i32, i32
  }
  func.func @transform_4(%arg0: i32) -> (i32, i32, i32) {
    %c0_i32 = arith.constant 0 : i32
    %c0_i32_0 = arith.constant 0 : i32
    %c0_i32_1 = arith.constant 0 : i32
    return %arg0, %c0_i32, %c0_i32_0 : i32, i32, i32
  }
}

</mosaic_0001>

<llo_original>
// kernel: repconv_forward.1
$region0: #{repconv_forward.1}
  #allocation0 [shape = 'u32[]', space=smem, size = 0x4, offset = 0x4, fixed_abs, tag = 'smem constant byte address 0x4 - core index']
  #allocation1 [shape = 'u32[144,128]{1,0:T(1,128)}', space=vmem, size = 0x12000, scoped, tag = 'internal scratch']
  #allocation2 [shape = 'f32[4,512]{1,0:T(4,128)}', space=vmem, size = 0x2000, scoped, tag = 'scratch operand']
  %s0 = inlined_call_operand.vmem [shape: f32[2,4,256], index: 0, kind: input, shape index: {}]
  %s1 = inlined_call_operand.vmem [shape: f32[9,4,4], index: 1, kind: input, shape index: {}]
  %s2 = inlined_call_operand.vmem [shape: f32[4,1], index: 2, kind: input, shape index: {}]
  %s3 = inlined_call_operand.vmem [shape: f32[2,256], index: 3, kind: input, shape index: {}]
  %s4 = inlined_call_operand.vmem [shape: f32[2,4,256], index: 4, kind: output, shape index: {}]
  %s5 = sld [smem:[#allocation0]]
  $region49: #{repconv_forward.1} parent=0
    _
  %s7 = ssub.s32 1, %s5
  %s8 = scalar_select 0, %s7, %s5
  loop: start=0, step=1, limit=4
  $region2: #{repconv_forward.1} parent=0 // loop_pre_header
    _
  $region3: #{repconv_forward.1} parent=0 // loop_header
    %s10 = sphi 0, %s14
    %p11 = scmp.ge.s32.totalorder %s10, 4
    %s20 = sphi 0, %s22
    %s23 = sphi 0, %s20
    %s24 = sphi 0, %s23
    %s40 = sphi 0, %s24
    %s44 = sphi 0, %s44
    %s46 = sphi 0, %s44
    %s47 = sphi 0, %s46
    %s61 = sphi 0, %s47
    %s65 = sphi 0, %s65
    %s67 = sphi 0, %s65
    %s68 = sphi 0, %s67
    %s82 = sphi 0, %s68
    %s86 = sphi 0, %s86
    %s88 = sphi 0, %s86
    %s89 = sphi 0, %s88
    %s103 = sphi 0, %s89
    %s109 = sphi 0, %s111
    %s112 = sphi 0, %s109
    %s113 = sphi 0, %s112
    %s129 = sphi 0, %s113
  $region4: #{repconv_forward.1} parent=0 // loop_header_branch
    %13 = sbr.rel (%p11) target = $region8
  $region5: #{repconv_forward.1} parent=0 // loop_body
    %s15 = ssub.s32 %s10, 1
    %s16 = ssub.s32 %s10, 2
    %s17 = sadd.s32 %s10, 1
    %s18 = ssub.s32 %s10, %s17
    %p19 = scmp.eq.s32.totalorder %s18, 0
    %s21 = sadd.s32 %s20, 1
    %s22 = scalar_select %p19, %s20, %s21
    %p25 = pneg %p19
    %p26 = scmp.eq.s32.totalorder %s10, 1
    %p27 = por %p25, %p26
    %p28 = scmp.ne.s32.totalorder %s20, %s23
    %p29 = scmp.eq.s32.totalorder %s10, 0
    %p30 = por %p28, %p29
    %p31 = scmp.ne.s32.totalorder %s20, %s23
    %p32 = scmp.eq.s32.totalorder %s15, 1
    %p33 = por %p31, %p32
    %p34 = scmp.ne.s32.totalorder %s23, %s24
    %p35 = scmp.eq.s32.totalorder %s15, 0
    %p36 = por %p34, %p35
    %p37 = scmp.ne.s32.totalorder %s23, %s24
    %p38 = scmp.eq.s32.totalorder %s16, 1
    %p39 = por %p37, %p38
    %p41 = scmp.ne.s32.totalorder %s24, %s40
    %p42 = scmp.eq.s32.totalorder %s16, 0
    %p43 = por %p41, %p42
    %s45 = sadd.s32 %s44, 1
    %p48 = scmp.eq.s32.totalorder %s10, 1
    %p49 = scmp.ne.s32.totalorder %s44, %s46
    %p50 = scmp.eq.s32.totalorder %s10, 0
    %p51 = por %p49, %p50
    %p52 = scmp.ne.s32.totalorder %s44, %s46
    %p53 = scmp.eq.s32.totalorder %s15, 1
    %p54 = por %p52, %p53
    %p55 = scmp.ne.s32.totalorder %s46, %s47
    %p56 = scmp.eq.s32.totalorder %s15, 0
    %p57 = por %p55, %p56
    %p58 = scmp.ne.s32.totalorder %s46, %s47
    %p59 = scmp.eq.s32.totalorder %s16, 1
    %p60 = por %p58, %p59
    %p62 = scmp.ne.s32.totalorder %s47, %s61
    %p63 = scmp.eq.s32.totalorder %s16, 0
    %p64 = por %p62, %p63
    %s66 = sadd.s32 %s65, 1
    %p69 = scmp.eq.s32.totalorder %s10, 1
    %p70 = scmp.ne.s32.totalorder %s65, %s67
    %p71 = scmp.eq.s32.totalorder %s10, 0
    %p72 = por %p70, %p71
    %p73 = scmp.ne.s32.totalorder %s65, %s67
    %p74 = scmp.eq.s32.totalorder %s15, 1
    %p75 = por %p73, %p74
    %p76 = scmp.ne.s32.totalorder %s67, %s68
    %p77 = scmp.eq.s32.totalorder %s15, 0
    %p78 = por %p76, %p77
    %p79 = scmp.ne.s32.totalorder %s67, %s68
    %p80 = scmp.eq.s32.totalorder %s16, 1
    %p81 = por %p79, %p80
    %p83 = scmp.ne.s32.totalorder %s68, %s82
    %p84 = scmp.eq.s32.totalorder %s16, 0
    %p85 = por %p83, %p84
    %s87 = sadd.s32 %s86, 1
    %p90 = scmp.eq.s32.totalorder %s10, 1
    %p91 = scmp.ne.s32.totalorder %s86, %s88
    %p92 = scmp.eq.s32.totalorder %s10, 0
    %p93 = por %p91, %p92
    %p94 = scmp.ne.s32.totalorder %s86, %s88
    %p95 = scmp.eq.s32.totalorder %s15, 1
    %p96 = por %p94, %p95
    %p97 = scmp.ne.s32.totalorder %s88, %s89
    %p98 = scmp.eq.s32.totalorder %s15, 0
    %p99 = por %p97, %p98
    %p100 = scmp.ne.s32.totalorder %s88, %s89
    %p101 = scmp.eq.s32.totalorder %s16, 1
    %p102 = por %p100, %p101
    %p104 = scmp.ne.s32.totalorder %s89, %s103
    %p105 = scmp.eq.s32.totalorder %s16, 0
    %p106 = por %p104, %p105
    %s107 = ssub.s32 %s10, %s17
    %p108 = scmp.eq.s32.totalorder %s107, 0
    %s110 = sadd.s32 %s109, 1
    %s111 = scalar_select %p108, %s109, %s110
    %p114 = pneg %p108
    %p115 = scmp.eq.s32.totalorder %s10, 1
    %p116 = por %p114, %p115
    %p117 = scmp.ne.s32.totalorder %s109, %s112
    %p118 = scmp.eq.s32.totalorder %s10, 0
    %p119 = por %p117, %p118
    %p120 = scmp.ne.s32.totalorder %s109, %s112
    %p121 = scmp.eq.s32.totalorder %s15, 1
    %p122 = por %p120, %p121
    %p123 = scmp.ne.s32.totalorder %s112, %s113
    %p124 = scmp.eq.s32.totalorder %s15, 0
    %p125 = por %p123, %p124
    %p126 = scmp.ne.s32.totalorder %s112, %s113
    %p127 = scmp.eq.s32.totalorder %s16, 1
    %p128 = por %p126, %p127
    %p130 = scmp.ne.s32.totalorder %s113, %s129
    %p131 = scmp.eq.s32.totalorder %s16, 0
    %p132 = por %p130, %p131
    %p133 = scmp.le.s32.totalorder 1, %s10
    %p134 = scmp.lt.s32.totalorder %s10, 3
    %p135 = pnand %p133, %p134
    %p136 = pneg %p135
    // Predicated region
    $region9: #{repconv_forward.1} parent=5 // pred_check
      _
    $region10: #{repconv_forward.1} parent=5 // pred_check_branch
      %138 = sbr.rel (%p135) target = $region12
    $region11: #{repconv_forward.1} parent=5 // pred_region
      %s139 = ssub.s32 %s10, 1
      // Predicated region
      $region13: #{repconv_forward.1} parent=11 // pred_check
        %p140 = pneg %p57
      $region14: #{repconv_forward.1} parent=11 // pred_check_branch
        %142 = sbr.rel (%p140) target = $region16
      $region15: #{repconv_forward.1} parent=11 // pred_region
        _
      $region16: #{repconv_forward.1} parent=11 // pred_fallthru
        _
      // Predicated region
      $region17: #{repconv_forward.1} parent=11 // pred_check
        %p143 = pneg %p78
      $region18: #{repconv_forward.1} parent=11 // pred_check_branch
        %145 = sbr.rel (%p143) target = $region20
      $region19: #{repconv_forward.1} parent=11 // pred_region
        _
      $region20: #{repconv_forward.1} parent=11 // pred_fallthru
        _
      // Predicated region
      $region21: #{repconv_forward.1} parent=11 // pred_check
        %p146 = pneg %p99
      $region22: #{repconv_forward.1} parent=11 // pred_check_branch
        %148 = sbr.rel (%p146) target = $region24
      $region23: #{repconv_forward.1} parent=11 // pred_region
        _
      $region24: #{repconv_forward.1} parent=11 // pred_fallthru
        _
    $region12: #{repconv_forward.1} parent=5 // pred_fallthru
      _
    %p149 = scmp.lt.s32.totalorder %s10, 2
    // Predicated region
    $region25: #{repconv_forward.1} parent=5 // pred_check
      %p150 = pneg %p149
    $region26: #{repconv_forward.1} parent=5 // pred_check_branch
      %152 = sbr.rel (%p150) target = $region28
    $region27: #{repconv_forward.1} parent=5 // pred_region
      // Predicated region
      $region29: #{repconv_forward.1} parent=27 // pred_check
        %p153 = pneg %p30
      $region30: #{repconv_forward.1} parent=27 // pred_check_branch
        %155 = sbr.rel (%p153) target = $region32
      $region31: #{repconv_forward.1} parent=27 // pred_region
        %p156 = scmp.lt.s32.totalorder %s10, 1
        %s157 = scalar_select %p156, %s10, 1
        %s158 = smul.addr %s157, 2
        %s159 = smul.addr %s158, 4
        %s160 = scalar_lea.vmem %s0, %s159
      $region32: #{repconv_forward.1} parent=27 // pred_fallthru
        _
    $region28: #{repconv_forward.1} parent=5 // pred_fallthru
      _
    %p161 = scmp.le.s32.totalorder 1, %s10
    %p162 = scmp.lt.s32.totalorder %s10, 3
    %p163 = pnand %p161, %p162
    %p164 = pneg %p163
    // Predicated region
    $region33: #{repconv_forward.1} parent=5 // pred_check
      _
    $region34: #{repconv_forward.1} parent=5 // pred_check_branch
      %166 = sbr.rel (%p163) target = $region36
    $region35: #{repconv_forward.1} parent=5 // pred_region
      %s167 = ssub.s32 %s10, 1
      %p168 = scmp.lt.s32.totalorder %s15, 1
      %s169 = scalar_select %p168, %s15, 1
      %s170 = smul.addr %s169, 2
      %s171 = smul.addr %s170, 4
      %s172 = scalar_lea.vmem %s0, %s171
      %p173 = pneg %p36
      %p174 = pneg %p33
      %p175 = pneg %p57
      %p176 = pneg %p54
      %p177 = pneg %p78
      %p178 = pneg %p75
      %p179 = pneg %p99
      %p180 = pneg %p96
      %p181 = pneg %p125
      %p182 = pneg %p122
      %p183 = scmp.lt.s32.totalorder %s15, 1
      %s184 = scalar_select %p183, %s15, 1
      %s185 = smul.addr %s184, 2
      %s186 = smul.addr %s185, 4
      %s187 = scalar_lea.vmem %s4, %s186
      %p188 = scmp.lt.s32.totalorder %s15, 1
      %s189 = scalar_select %p188, %s15, 1
      %s190 = smul.addr %s189, 2
      %s191 = smul.addr %s190, 4
      %s192 = scalar_lea.vmem %s0, %s191
      %p193 = scmp.lt.s32.totalorder %s15, 1
      %s194 = scalar_select %p193, %s15, 1
      %s195 = smul.addr %s194, 2
      %s196 = smul.addr %s195, 4
      %s197 = scalar_lea.vmem %s4, %s196
      %198 = vst [vmem:[#allocation2] sm:$0xf] 0.0
      %199 = vst [vmem:[#allocation2 + $0xc] sm:$0xf] 0.0
      %v200 = vld [vmem:[%s3] ss:$2 sm:$0x3]
      %s201 = scalar_lea.vmem %s3, 1
      %v202 = vld [vmem:[%s201] ss:$2 sm:$0x3]
      %v203 = vld [vmem:[%s2] sm:$0xf]
      %v204 = vld [vmem:[%s192] sm:$0xff]
      %205 = vst [vmem:[#allocation2 + $0x4] sm:$0xff] %v204
      %v206 = vld [vmem:[#allocation2] sm:$0xff]
      %v207 = vld [vmem:[#allocation2 + $0x8] sm:$0xf]
      %v208 = vld [vmem:[%s1] sm:$0xf]
      %s209 = scalar_lea.vmem %s1, 12
      %v210 = vld [vmem:[%s209] sm:$0xf]
      %v213 = vcombine.high %v206, %v206
      %214 = vrot.lane.b32.xlu0 %v206, 1
      %v215 = vpop.permute.xlu0 %214
      %216 = vrot.lane.b32.xlu0 %v213, 1
      %v217 = vpop.permute.xlu0 %216
      %218 = vrot.lane.b32.xlu0 %v207, 1
      %v219 = vpop.permute.xlu0 %218
      %vm220 = vcmask 7168
      %v221 = vsel %vm220, %v215, %v217
      %v222 = vsel %vm220, %v217, %v219
      %vm223 = vcmask 31744
      %v225 = vsel %vm223, %v210, 0
      %vm227 = vcmask 1043456
      %v228 = vsel %vm227, %v221, 0
      %v230 = vsel %vm227, %v222, 0
      %v232 = vand.u32 %v230, 4294901760
      %233 = vmatprep.subr.mxu0 %v232
      %v234 = vand.u32 %v228, 4294901760
      %235 = vmatpush1.msra.mxu0 %v234
      %236 = vmatprep.subr.mxu0 0.0
      %237 = vmatpush1.msra.mxu0 0.0
      %238 = vmatprep.subr.mxu0 0.0
      %239 = vmatpush1.msra.mxu0 0.0
      %240 = vmatprep.subr.mxu0 0.0
      %241 = vmatpush1.msra.mxu0 0.0
      %242 = vmatprep.subr.mxu0 0.0
      %243 = vmatpush1.msra.mxu0 0.0
      %244 = vmatprep.subr.mxu0 0.0
      %245 = vmatpush1.msra.mxu0 0.0
      %246 = vmatprep.subr.mxu0 0.0
      %247 = vmatpush1.msra.mxu0 0.0
      %248 = vmatprep.subr.mxu0 0.0
      %249 = vmatpush1.msra.mxu0 0.0
      %250 = vmatprep.subr.mxu0 0.0
      %251 = vmatpush1.msra.mxu0 0.0
      %252 = vmatprep.subr.mxu0 0.0
      %253 = vmatpush1.msra.mxu0 0.0
      %254 = vmatprep.subr.mxu0 0.0
      %255 = vmatpush1.msra.mxu0 0.0
      %256 = vmatprep.subr.mxu0 0.0
      %257 = vmatpush1.msra.mxu0 0.0
      %258 = vmatprep.subr.mxu0 0.0
      %259 = vmatpush1.msra.mxu0 0.0
      %260 = vmatprep.subr.mxu0 0.0
      %261 = vmatpush1.msra.mxu0 0.0
      %262 = vmatprep.subr.mxu0 0.0
      %263 = vmatpush1.msra.mxu0 0.0
      %264 = vmatprep.subr.mxu0 0.0
      %265 = vmatpush1.msra.mxu0 0.0
      %266 = vmatprep.subr.mxu0 0.0
      %267 = vmatpush1.msra.mxu0 0.0
      %268 = vmatprep.subr.mxu0 0.0
      %269 = vmatpush1.msra.mxu0 0.0
      %270 = vmatprep.subr.mxu0 0.0
      %271 = vmatpush1.msra.mxu0 0.0
      %272 = vmatprep.subr.mxu0 0.0
      %273 = vmatpush1.msra.mxu0 0.0
      %274 = vmatprep.subr.mxu0 0.0
      %275 = vmatpush1.msra.mxu0 0.0
      %276 = vmatprep.subr.mxu0 0.0
      %277 = vmatpush1.msra.mxu0 0.0
      %278 = vmatprep.subr.mxu0 0.0
      %279 = vmatpush1.msra.mxu0 0.0
      %280 = vmatprep.subr.mxu0 0.0
      %281 = vmatpush1.msra.mxu0 0.0
      %282 = vmatprep.subr.mxu0 0.0
      %283 = vmatpush1.msra.mxu0 0.0
      %284 = vmatprep.subr.mxu0 0.0
      %285 = vmatpush1.msra.mxu0 0.0
      %286 = vmatprep.subr.mxu0 0.0
      %287 = vmatpush1.msra.mxu0 0.0
      %288 = vmatprep.subr.mxu0 0.0
      %289 = vmatpush1.msra.mxu0 0.0
      %290 = vmatprep.subr.mxu0 0.0
      %291 = vmatpush1.msra.mxu0 0.0
      %292 = vmatprep.subr.mxu0 0.0
      %293 = vmatpush1.msra.mxu0 0.0
      %294 = vmatprep.subr.mxu0 0.0
      %295 = vmatpush1.msra.mxu0 0.0
      %296 = vmatprep.subr.mxu0 0.0
      %297 = vmatpush1.msra.mxu0 0.0
      %298 = vmatprep.mubr.f32.mxu0 0.0
      %v299 = vand.u32 %v225, 4294901760
      %v300 = vsub.f32 %v225, %v299
      %v301 = vand.u32 %v300, 4294901760
      %v302 = vsub.f32 %v300, %v301
      %v303 = vand.u32 %v302, 4294901760
      %304 = vmatmul.mubr.f32.gmra.mrb[0].mxu0 %v303
      %v305 = vpop.f32.mrb[0].mxu0
      %v306 = vadd.f32 0.0, %v305
      %v307 = vpop.f32.mrb[0].mxu0
      %v308 = vadd.f32 0.0, %v307
      %309 = vdwg.mxu0
      %v310 = vand.u32 %v230, 4294901760
      %v311 = vsub.f32 %v230, %v310
      %v312 = vand.u32 %v311, 4294901760
      %v313 = vsub.f32 %v311, %v312
      %v314 = vand.u32 %v313, 4294901760
      %315 = vmatprep.subr.mxu0 %v314
      %v316 = vand.u32 %v228, 4294901760
      %v317 = vsub.f32 %v228, %v316
      %v318 = vand.u32 %v317, 4294901760
      %v319 = vsub.f32 %v317, %v318
      %v320 = vand.u32 %v319, 4294901760
      %321 = vmatpush1.msra.mxu0 %v320
      %322 = vmatprep.subr.mxu0 0.0
      %323 = vmatpush1.msra.mxu0 0.0
      %324 = vmatprep.subr.mxu0 0.0
      %325 = vmatpush1.msra.mxu0 0.0
      %326 = vmatprep.subr.mxu0 0.0
      %327 = vmatpush1.msra.mxu0 0.0
      %328 = vmatprep.subr.mxu0 0.0
      %329 = vmatpush1.msra.mxu0 0.0
      %330 = vmatprep.subr.mxu0 0.0
      %331 = vmatpush1.msra.mxu0 0.0
      %332 = vmatprep.subr.mxu0 0.0
      %333 = vmatpush1.msra.mxu0 0.0
      %334 = vmatprep.subr.mxu0 0.0
      %335 = vmatpush1.msra.mxu0 0.0
      %336 = vmatprep.subr.mxu0 0.0
      %337 = vmatpush1.msra.mxu0 0.0
      %338 = vmatprep.subr.mxu0 0.0
      %339 = vmatpush1.msra.mxu0 0.0
      %340 = vmatprep.subr.mxu0 0.0
      %341 = vmatpush1.msra.mxu0 0.0
      %342 = vmatprep.subr.mxu0 0.0
      %343 = vmatpush1.msra.mxu0 0.0
      %344 = vmatprep.subr.mxu0 0.0
      %345 = vmatpush1.msra.mxu0 0.0
      %346 = vmatprep.subr.mxu0 0.0
      %347 = vmatpush1.msra.mxu0 0.0
      %348 = vmatprep.subr.mxu0 0.0
      %349 = vmatpush1.msra.mxu0 0.0
      %350 = vmatprep.subr.mxu0 0.0
      %351 = vmatpush1.msra.mxu0 0.0
      %352 = vmatprep.subr.mxu0 0.0
      %353 = vmatpush1.msra.mxu0 0.0
      %354 = vmatprep.subr.mxu0 0.0
      %355 = vmatpush1.msra.mxu0 0.0
      %356 = vmatprep.subr.mxu0 0.0
      %357 = vmatpush1.msra.mxu0 0.0
      %358 = vmatprep.subr.mxu0 0.0
      %359 = vmatpush1.msra.mxu0 0.0
      %360 = vmatprep.subr.mxu0 0.0
      %361 = vmatpush1.msra.mxu0 0.0
      %362 = vmatprep.subr.mxu0 0.0
      %363 = vmatpush1.msra.mxu0 0.0
      %364 = vmatprep.subr.mxu0 0.0
      %365 = vmatpush1.msra.mxu0 0.0
      %366 = vmatprep.subr.mxu0 0.0
      %367 = vmatpush1.msra.mxu0 0.0
      %368 = vmatprep.subr.mxu0 0.0
      %369 = vmatpush1.msra.mxu0 0.0
      %370 = vmatprep.subr.mxu0 0.0
      %371 = vmatpush1.msra.mxu0 0.0
      %372 = vmatprep.subr.mxu0 0.0
      %373 = vmatpush1.msra.mxu0 0.0
      %374 = vmatprep.subr.mxu0 0.0
      %375 = vmatpush1.msra.mxu0 0.0
      %376 = vmatprep.subr.mxu0 0.0
      %377 = vmatpush1.msra.mxu0 0.0
      %378 = vmatprep.subr.mxu0 0.0
      %379 = vmatpush1.msra.mxu0 0.0
      %380 = vmatprep.subr.mxu0 0.0
      %381 = vmatpush1.msra.mxu0 0.0
      %382 = vmatprep.subr.mxu0 0.0
      %383 = vmatpush1.msra.mxu0 0.0
      %384 = vmatprep.mubr.f32.mxu0 0.0
      %v385 = vand.u32 %v225, 4294901760
      %386 = vmatmul.mubr.f32.gmra.mrb[0].mxu0 %v385
      %v387 = vpop.f32.mrb[0].mxu0
      %v388 = vadd.f32 %v306, %v387
      %v389 = vpop.f32.mrb[0].mxu0
      %v390 = vadd.f32 %v308, %v389
      %391 = vdwg.mxu0
      %v392 = vand.u32 %v230, 4294901760
      %v393 = vsub.f32 %v230, %v392
      %394 = vmatprep.subr.mxu0 %v393
      %v395 = vand.u32 %v228, 4294901760
      %v396 = vsub.f32 %v228, %v395
      %397 = vmatpush1.msra.mxu0 %v396
      %398 = vmatprep.subr.mxu0 0.0
      %399 = vmatpush1.msra.mxu0 0.0
      %400 = vmatprep.subr.mxu0 0.0
      %401 = vmatpush1.msra.mxu0 0.0
      %402 = vmatprep.subr.mxu0 0.0
      %403 = vmatpush1.msra.mxu0 0.0
      %404 = vmatprep.subr.mxu0 0.0
      %405 = vmatpush1.msra.mxu0 0.0
      %406 = vmatprep.subr.mxu0 0.0
      %407 = vmatpush1.msra.mxu0 0.0
      %408 = vmatprep.subr.mxu0 0.0
      %409 = vmatpush1.msra.mxu0 0.0
      %410 = vmatprep.subr.mxu0 0.0
      %411 = vmatpush1.msra.mxu0 0.0
      %412 = vmatprep.subr.mxu0 0.0
      %413 = vmatpush1.msra.mxu0 0.0
      %414 = vmatprep.subr.mxu0 0.0
      %415 = vmatpush1.msra.mxu0 0.0
      %416 = vmatprep.subr.mxu0 0.0
      %417 = vmatpush1.msra.mxu0 0.0
      %418 = vmatprep.subr.mxu0 0.0
      %419 = vmatpush1.msra.mxu0 0.0
      %420 = vmatprep.subr.mxu0 0.0
      %421 = vmatpush1.msra.mxu0 0.0
      %422 = vmatprep.subr.mxu0 0.0
      %423 = vmatpush1.msra.mxu0 0.0
      %424 = vmatprep.subr.mxu0 0.0
      %425 = vmatpush1.msra.mxu0 0.0
      %426 = vmatprep.subr.mxu0 0.0
      %427 = vmatpush1.msra.mxu0 0.0
      %428 = vmatprep.subr.mxu0 0.0
      %429 = vmatpush1.msra.mxu0 0.0
      %430 = vmatprep.subr.mxu0 0.0
      %431 = vmatpush1.msra.mxu0 0.0
      %432 = vmatprep.subr.mxu0 0.0
      %433 = vmatpush1.msra.mxu0 0.0
      %434 = vmatprep.subr.mxu0 0.0
      %435 = vmatpush1.msra.mxu0 0.0
      %436 = vmatprep.subr.mxu0 0.0
      %437 = vmatpush1.msra.mxu0 0.0
      %438 = vmatprep.subr.mxu0 0.0
      %439 = vmatpush1.msra.mxu0 0.0
      %440 = vmatprep.subr.mxu0 0.0
      %441 = vmatpush1.msra.mxu0 0.0
      %442 = vmatprep.subr.mxu0 0.0
      %443 = vmatpush1.msra.mxu0 0.0
      %444 = vmatprep.subr.mxu0 0.0
      %445 = vmatpush1.msra.mxu0 0.0
      %446 = vmatprep.subr.mxu0 0.0
      %447 = vmatpush1.msra.mxu0 0.0
      %448 = vmatprep.subr.mxu0 0.0
      %449 = vmatpush1.msra.mxu0 0.0
      %450 = vmatprep.subr.mxu0 0.0
      %451 = vmatpush1.msra.mxu0 0.0
      %452 = vmatprep.subr.mxu0 0.0
      %453 = vmatpush1.msra.mxu0 0.0
      %454 = vmatprep.subr.mxu0 0.0
      %455 = vmatpush1.msra.mxu0 0.0
      %456 = vmatprep.subr.mxu0 0.0
      %457 = vmatpush1.msra.mxu0 0.0
      %458 = vmatprep.subr.mxu0 0.0
      %459 = vmatpush1.msra.mxu0 0.0
      %460 = vmatprep.mubr.f32.mxu0 0.0
      %v461 = vand.u32 %v225, 4294901760
      %v462 = vsub.f32 %v225, %v461
      %463 = vmatmul.mubr.f32.gmra.mrb[0].mxu0 %v462
      %v464 = vpop.f32.mrb[0].mxu0
      %v465 = vadd.f32 %v388, %v464
      %v466 = vpop.f32.mrb[0].mxu0
      %v467 = vadd.f32 %v390, %v466
      %468 = vdwg.mxu0
      %v469 = vand.u32 %v230, 4294901760
      %470 = vmatprep.subr.mxu0 %v469
      %v471 = vand.u32 %v228, 4294901760
      %472 = vmatpush1.msra.mxu0 %v471
      %473 = vmatprep.subr.mxu0 0.0
      %474 = vmatpush1.msra.mxu0 0.0
      %475 = vmatprep.subr.mxu0 0.0
      %476 = vmatpush1.msra.mxu0 0.0
      %477 = vmatprep.subr.mxu0 0.0
      %478 = vmatpush1.msra.mxu0 0.0
      %479 = vmatprep.subr.mxu0 0.0
      %480 = vmatpush1.msra.mxu0 0.0
      %481 = vmatprep.subr.mxu0 0.0
      %482 = vmatpush1.msra.mxu0 0.0
      %483 = vmatprep.subr.mxu0 0.0
      %484 = vmatpush1.msra.mxu0 0.0
      %485 = vmatprep.subr.mxu0 0.0
      %486 = vmatpush1.msra.mxu0 0.0
      %487 = vmatprep.subr.mxu0 0.0
      %488 = vmatpush1.msra.mxu0 0.0
      %489 = vmatprep.subr.mxu0 0.0
      %490 = vmatpush1.msra.mxu0 0.0
      %491 = vmatprep.subr.mxu0 0.0
      %492 = vmatpush1.msra.mxu0 0.0
      %493 = vmatprep.subr.mxu0 0.0
      %494 = vmatpush1.msra.mxu0 0.0
      %495 = vmatprep.subr.mxu0 0.0
      %496 = vmatpush1.msra.mxu0 0.0
      %497 = vmatprep.subr.mxu0 0.0
      %498 = vmatpush1.msra.mxu0 0.0
      %499 = vmatprep.subr.mxu0 0.0
      %500 = vmatpush1.msra.mxu0 0.0
      %501 = vmatprep.subr.mxu0 0.0
      %502 = vmatpush1.msra.mxu0 0.0
      %503 = vmatprep.subr.mxu0 0.0
      %504 = vmatpush1.msra.mxu0 0.0
      %505 = vmatprep.subr.mxu0 0.0
      %506 = vmatpush1.msra.mxu0 0.0
      %507 = vmatprep.subr.mxu0 0.0
      %508 = vmatpush1.msra.mxu0 0.0
      %509 = vmatprep.subr.mxu0 0.0
      %510 = vmatpush1.msra.mxu0 0.0
      %511 = vmatprep.subr.mxu0 0.0
      %512 = vmatpush1.msra.mxu0 0.0
      %513 = vmatprep.subr.mxu0 0.0
      %514 = vmatpush1.msra.mxu0 0.0
      %515 = vmatprep.subr.mxu0 0.0
      %516 = vmatpush1.msra.mxu0 0.0
      %517 = vmatprep.subr.mxu0 0.0
      %518 = vmatpush1.msra.mxu0 0.0
      %519 = vmatprep.subr.mxu0 0.0
      %520 = vmatpush1.msra.mxu0 0.0
      %521 = vmatprep.subr.mxu0 0.0
      %522 = vmatpush1.msra.mxu0 0.0
      %523 = vmatprep.subr.mxu0 0.0
      %524 = vmatpush1.msra.mxu0 0.0
      %525 = vmatprep.subr.mxu0 0.0
      %526 = vmatpush1.msra.mxu0 0.0
      %527 = vmatprep.subr.mxu0 0.0
      %528 = vmatpush1.msra.mxu0 0.0
      %529 = vmatprep.subr.mxu0 0.0
      %530 = vmatpush1.msra.mxu0 0.0
      %531 = vmatprep.subr.mxu0 0.0
      %532 = vmatpush1.msra.mxu0 0.0
      %533 = vmatprep.subr.mxu0 0.0
      %534 = vmatpush1.msra.mxu0 0.0
      %535 = vmatprep.mubr.f32.mxu0 0.0
      %v536 = vand.u32 %v225, 4294901760
      %v537 = vsub.f32 %v225, %v536
      %v538 = vand.u32 %v537, 4294901760
      %539 = vmatmul.mubr.f32.gmra.mrb[0].mxu0 %v538
      %v540 = vpop.f32.mrb[0].mxu0
      %v541 = vadd.f32 %v465, %v540
      %v542 = vpop.f32.mrb[0].mxu0
      %v543 = vadd.f32 %v467, %v542
      %544 = vdwg.mxu0
      %v545 = vand.u32 %v230, 4294901760
      %v546 = vsub.f32 %v230, %v545
      %v547 = vand.u32 %v546, 4294901760
      %548 = vmatprep.subr.mxu0 %v547
      %v549 = vand.u32 %v228, 4294901760
      %v550 = vsub.f32 %v228, %v549
      %v551 = vand.u32 %v550, 4294901760
      %552 = vmatpush1.msra.mxu0 %v551
      %553 = vmatprep.subr.mxu0 0.0
      %554 = vmatpush1.msra.mxu0 0.0
      %555 = vmatprep.subr.mxu0 0.0
      %556 = vmatpush1.msra.mxu0 0.0
      %557 = vmatprep.subr.mxu0 0.0
      %558 = vmatpush1.msra.mxu0 0.0
      %559 = vmatprep.subr.mxu0 0.0
      %560 = vmatpush1.msra.mxu0 0.0
      %561 = vmatprep.subr.mxu0 0.0
      %562 = vmatpush1.msra.mxu0 0.0
      %563 = vmatprep.subr.mxu0 0.0
      %564 = vmatpush1.msra.mxu0 0.0
      %565 = vmatprep.subr.mxu0 0.0
      %566 = vmatpush1.msra.mxu0 0.0
      %567 = vmatprep.subr.mxu0 0.0
      %568 = vmatpush1.msra.mxu0 0.0
      %569 = vmatprep.subr.mxu0 0.0
      %570 = vmatpush1.msra.mxu0 0.0
      %571 = vmatprep.subr.mxu0 0.0
      %572 = vmatpush1.msra.mxu0 0.0
      %573 = vmatprep.subr.mxu0 0.0
      %574 = vmatpush1.msra.mxu0 0.0
      %575 = vmatprep.subr.mxu0 0.0
      %576 = vmatpush1.msra.mxu0 0.0
      %577 = vmatprep.subr.mxu0 0.0
      %578 = vmatpush1.msra.mxu0 0.0
      %579 = vmatprep.subr.mxu0 0.0
      %580 = vmatpush1.msra.mxu0 0.0
      %581 = vmatprep.subr.mxu0 0.0
      %582 = vmatpush1.msra.mxu0 0.0
      %583 = vmatprep.subr.mxu0 0.0
      %584 = vmatpush1.msra.mxu0 0.0
      %585 = vmatprep.subr.mxu0 0.0
      %586 = vmatpush1.msra.mxu0 0.0
      %587 = vmatprep.subr.mxu0 0.0
      %588 = vmatpush1.msra.mxu0 0.0
      %589 = vmatprep.subr.mxu0 0.0
      %590 = vmatpush1.msra.mxu0 0.0
      %591 = vmatprep.subr.mxu0 0.0
      %592 = vmatpush1.msra.mxu0 0.0
      %593 = vmatprep.subr.mxu0 0.0
      %594 = vmatpush1.msra.mxu0 0.0
      %595 = vmatprep.subr.mxu0 0.0
      %596 = vmatpush1.msra.mxu0 0.0
      %597 = vmatprep.subr.mxu0 0.0
      %598 = vmatpush1.msra.mxu0 0.0
      %599 = vmatprep.subr.mxu0 0.0
      %600 = vmatpush1.msra.mxu0 0.0
      %601 = vmatprep.subr.mxu0 0.0
      %602 = vmatpush1.msra.mxu0 0.0
      %603 = vmatprep.subr.mxu0 0.0
      %604 = vmatpush1.msra.mxu0 0.0
      %605 = vmatprep.subr.mxu0 0.0
      %606 = vmatpush1.msra.mxu0 0.0
      %607 = vmatprep.subr.mxu0 0.0
      %608 = vmatpush1.msra.mxu0 0.0
      %609 = vmatprep.subr.mxu0 0.0
      %610 = vmatpush1.msra.mxu0 0.0
      %611 = vmatprep.subr.mxu0 0.0
      %612 = vmatpush1.msra.mxu0 0.0
      %613 = vmatprep.subr.mxu0 0.0
      %614 = vmatpush1.msra.mxu0 0.0
      %615 = vmatprep.mubr.f32.mxu0 0.0
      %v616 = vand.u32 %v225, 4294901760
      %617 = vmatmul.mubr.f32.gmra.mrb[0].mxu0 %v616
      %v618 = vpop.f32.mrb[0].mxu0
      %v619 = vadd.f32 %v541, %v618
      %v620 = vpop.f32.mrb[0].mxu0
      %v621 = vadd.f32 %v543, %v620
      %622 = vdwg.mxu0
      %v623 = vand.u32 %v230, 4294901760
      %624 = vmatprep.subr.mxu0 %v623
      %v625 = vand.u32 %v228, 4294901760
      %626 = vmatpush1.msra.mxu0 %v625
      %627 = vmatprep.subr.mxu0 0.0
      %628 = vmatpush1.msra.mxu0 0.0
      %629 = vmatprep.subr.mxu0 0.0
      %630 = vmatpush1.msra.mxu0 0.0
      %631 = vmatprep.subr.mxu0 0.0
      %632 = vmatpush1.msra.mxu0 0.0
      %633 = vmatprep.subr.mxu0 0.0
      %634 = vmatpush1.msra.mxu0 0.0
      %635 = vmatprep.subr.mxu0 0.0
      %636 = vmatpush1.msra.mxu0 0.0
      %637 = vmatprep.subr.mxu0 0.0
      %638 = vmatpush1.msra.mxu0 0.0
      %639 = vmatprep.subr.mxu0 0.0
      %640 = vmatpush1.msra.mxu0 0.0
      %641 = vmatprep.subr.mxu0 0.0
      %642 = vmatpush1.msra.mxu0 0.0
      %643 = vmatprep.subr.mxu0 0.0
      %644 = vmatpush1.msra.mxu0 0.0
      %645 = vmatprep.subr.mxu0 0.0
      %646 = vmatpush1.msra.mxu0 0.0
      %647 = vmatprep.subr.mxu0 0.0
      %648 = vmatpush1.msra.mxu0 0.0
      %649 = vmatprep.subr.mxu0 0.0
      %650 = vmatpush1.msra.mxu0 0.0
      %651 = vmatprep.subr.mxu0 0.0
      %652 = vmatpush1.msra.mxu0 0.0
      %653 = vmatprep.subr.mxu0 0.0
      %654 = vmatpush1.msra.mxu0 0.0
      %655 = vmatprep.subr.mxu0 0.0
      %656 = vmatpush1.msra.mxu0 0.0
      %657 = vmatprep.subr.mxu0 0.0
      %658 = vmatpush1.msra.mxu0 0.0
      %659 = vmatprep.subr.mxu0 0.0
      %660 = vmatpush1.msra.mxu0 0.0
      %661 = vmatprep.subr.mxu0 0.0
      %662 = vmatpush1.msra.mxu0 0.0
      %663 = vmatprep.subr.mxu0 0.0
      %664 = vmatpush1.msra.mxu0 0.0
      %665 = vmatprep.subr.mxu0 0.0
      %666 = vmatpush1.msra.mxu0 0.0
      %667 = vmatprep.subr.mxu0 0.0
      %668 = vmatpush1.msra.mxu0 0.0
      %669 = vmatprep.subr.mxu0 0.0
      %670 = vmatpush1.msra.mxu0 0.0
      %671 = vmatprep.subr.mxu0 0.0
      %672 = vmatpush1.msra.mxu0 0.0
      %673 = vmatprep.subr.mxu0 0.0
      %674 = vmatpush1.msra.mxu0 0.0
      %675 = vmatprep.subr.mxu0 0.0
      %676 = vmatpush1.msra.mxu0 0.0
      %677 = vmatprep.subr.mxu0 0.0
      %678 = vmatpush1.msra.mxu0 0.0
      %679 = vmatprep.subr.mxu0 0.0
      %680 = vmatpush1.msra.mxu0 0.0
      %681 = vmatprep.subr.mxu0 0.0
      %682 = vmatpush1.msra.mxu0 0.0
      %683 = vmatprep.subr.mxu0 0.0
      %684 = vmatpush1.msra.mxu0 0.0
      %685 = vmatprep.subr.mxu0 0.0
      %686 = vmatpush1.msra.mxu0 0.0
      %687 = vmatprep.subr.mxu0 0.0
      %688 = vmatpush1.msra.mxu0 0.0
      %689 = vmatprep.mubr.f32.mxu0 0.0
      %v690 = vand.u32 %v225, 4294901760
      %691 = vmatmul.mubr.f32.gmra.mrb[0].mxu0 %v690
      %v692 = vpop.f32.mrb[0].mxu0
      %v693 = vadd.f32 %v619, %v692
      %v694 = vpop.f32.mrb[0].mxu0
      %v695 = vadd.f32 %v621, %v694
      %696 = vdwg.mxu0
      %697 = vrot.lane.b32.xlu0 %v206, 17
      %v698 = vpop.permute.xlu0 %697
      %699 = vrot.lane.b32.xlu0 %v213, 17
      %v700 = vpop.permute.xlu0 %699
      %701 = vrot.lane.b32.xlu0 %v207, 17
      %v702 = vpop.permute.xlu0 %701
      %vm703 = vcmask 138240
      %v704 = vsel %vm703, %v698, %v700
      %v705 = vsel %vm703, %v700, %v702
      %v707 = vsel %vm223, %v208, 0
      %v709 = vsel %vm227, %v704, 0
      %v711 = vsel %vm227, %v705, 0
      %v713 = vand.u32 %v711, 4294901760
      %714 = vmatprep.subr.mxu0 %v713
      %v715 = vand.u32 %v709, 4294901760
      %716 = vmatpush1.msra.mxu0 %v715
      %717 = vmatprep.subr.mxu0 0.0
      %718 = vmatpush1.msra.mxu0 0.0
      %719 = vmatprep.subr.mxu0 0.0
      %720 = vmatpush1.msra.mxu0 0.0
      %721 = vmatprep.subr.mxu0 0.0
      %722 = vmatpush1.msra.mxu0 0.0
      %723 = vmatprep.subr.mxu0 0.0
      %724 = vmatpush1.msra.mxu0 0.0
      %725 = vmatprep.subr.mxu0 0.0
      %726 = vmatpush1.msra.mxu0 0.0
      %727 = vmatprep.subr.mxu0 0.0
      %728 = vmatpush1.msra.mxu0 0.0
      %729 = vmatprep.subr.mxu0 0.0
      %730 = vmatpush1.msra.mxu0 0.0
      %731 = vmatprep.subr.mxu0 0.0
      %732 = vmatpush1.msra.mxu0 0.0
      %733 = vmatprep.subr.mxu0 0.0
      %734 = vmatpush1.msra.mxu0 0.0
      %735 = vmatprep.subr.mxu0 0.0
      %736 = vmatpush1.msra.mxu0 0.0
      %737 = vmatprep.subr.mxu0 0.0
      %738 = vmatpush1.msra.mxu0 0.0
      %739 = vmatprep.subr.mxu0 0.0
      %740 = vmatpush1.msra.mxu0 0.0
      %741 = vmatprep.subr.mxu0 0.0
      %742 = vmatpush1.msra.mxu0 0.0
      %743 = vmatprep.subr.mxu0 0.0
      %744 = vmatpush1.msra.mxu0 0.0
      %745 = vmatprep.subr.mxu0 0.0
      %746 = vmatpush1.msra.mxu0 0.0
      %747 = vmatprep.subr.mxu0 0.0
      %748 = vmatpush1.msra.mxu0 0.0
      %749 = vmatprep.subr.mxu0 0.0
      %750 = vmatpush1.msra.mxu0 0.0
      %751 = vmatprep.subr.mxu0 0.0
      %752 = vmatpush1.msra.mxu0 0.0
      %753 = vmatprep.subr.mxu0 0.0
      %754 = vmatpush1.msra.mxu0 0.0
      %755 = vmatprep.subr.mxu0 0.0
      %756 = vmatpush1.msra.mxu0 0.0
      %757 = vmatprep.subr.mxu0 0.0
      %758 = vmatpush1.msra.mxu0 0.0
      %759 = vmatprep.subr.mxu0 0.0
      %760 = vmatpush1.msra.mxu0 0.0
      %761 = vmatprep.subr.mxu0 0.0
      %762 = vmatpush1.msra.mxu0 0.0
      %763 = vmatprep.subr.mxu0 0.0
      %764 = vmatpush1.msra.mxu0 0.0
      %765 = vmatprep.subr.mxu0 0.0
      %766 = vmatpush1.msra.mxu0 0.0
      %767 = vmatprep.subr.mxu0 0.0
      %768 = vmatpush1.msra.mxu0 0.0
      %769 = vmatprep.subr.mxu0 0.0
      %770 = vmatpush1.msra.mxu0 0.0
      %771 = vmatprep.subr.mxu0 0.0
      %772 = vmatpush1.msra.mxu0 0.0
      %773 = vmatprep.subr.mxu0 0.0
      %774 = vmatpush1.msra.mxu0 0.0
      %775 = vmatprep.subr.mxu0 0.0
      %776 = vmatpush1.msra.mxu0 0.0
      %777 = vmatprep.subr.mxu0 0.0
      %778 = vmatpush1.msra.mxu0 0.0
      %779 = vmatprep.mubr.f32.mxu0 0.0
      %v780 = vand.u32 %v707, 4294901760
      %v781 = vsub.f32 %v707, %v780
      %v782 = vand.u32 %v781, 4294901760
      %v783 = vsub.f32 %v781, %v782
      %v784 = vand.u32 %v783, 4294901760
      %785 = vmatmul.mubr.f32.gmra.mrb[0].mxu0 %v784
      %v786 = vpop.f32.mrb[0].mxu0
      %v787 = vadd.f32 %v693, %v786
      %v788 = vpop.f32.mrb[0].mxu0
      %v789 = vadd.f32 %v695, %v788
      %790 = vdwg.mxu0
      %v791 = vand.u32 %v711, 4294901760
      %v792 = vsub.f32 %v711, %v791
      %v793 = vand.u32 %v792, 4294901760
      %v794 = vsub.f32 %v792, %v793
      %v795 = vand.u32 %v794, 4294901760
      %796 = vmatprep.subr.mxu0 %v795
      %v797 = vand.u32 %v709, 4294901760
      %v798 = vsub.f32 %v709, %v797
      %v799 = vand.u32 %v798, 4294901760
      %v800 = vsub.f32 %v798, %v799
      %v801 = vand.u32 %v800, 4294901760
      %802 = vmatpush1.msra.mxu0 %v801
      %803 = vmatprep.subr.mxu0 0.0
      %804 = vmatpush1.msra.mxu0 0.0
      %805 = vmatprep.subr.mxu0 0.0
      %806 = vmatpush1.msra.mxu0 0.0
      %807 = vmatprep.subr.mxu0 0.0
      %808 = vmatpush1.msra.mxu0 0.0
      %809 = vmatprep.subr.mxu0 0.0
      %810 = vmatpush1.msra.mxu0 0.0
      %811 = vmatprep.subr.mxu0 0.0
      %812 = vmatpush1.msra.mxu0 0.0
      %813 = vmatprep.subr.mxu0 0.0
      %814 = vmatpush1.msra.mxu0 0.0
      %815 = vmatprep.subr.mxu0 0.0
      %816 = vmatpush1.msra.mxu0 0.0
      %817 = vmatprep.subr.mxu0 0.0
      %818 = vmatpush1.msra.mxu0 0.0
      %819 = vmatprep.subr.mxu0 0.0
      %820 = vmatpush1.msra.mxu0 0.0
      %821 = vmatprep.subr.mxu0 0.0
      %822 = vmatpush1.msra.mxu0 0.0
      %823 = vmatprep.subr.mxu0 0.0
      %824 = vmatpush1.msra.mxu0 0.0
      %825 = vmatprep.subr.mxu0 0.0
      %826 = vmatpush1.msra.mxu0 0.0
      %827 = vmatprep.subr.mxu0 0.0
      %828 = vmatpush1.msra.mxu0 0.0
      %829 = vmatprep.subr.mxu0 0.0
      %830 = vmatpush1.msra.mxu0 0.0
      %831 = vmatprep.subr.mxu0 0.0
      %832 = vmatpush1.msra.mxu0 0.0
      %833 = vmatprep.subr.mxu0 0.0
      %834 = vmatpush1.msra.mxu0 0.0
      %835 = vmatprep.subr.mxu0 0.0
      %836 = vmatpush1.msra.mxu0 0.0
      %837 = vmatprep.subr.mxu0 0.0
      %838 = vmatpush1.msra.mxu0 0.0
      %839 = vmatprep.subr.mxu0 0.0
      %840 = vmatpush1.msra.mxu0 0.0
      %841 = vmatprep.subr.mxu0 0.0
      %842 = vmatpush1.msra.mxu0 0.0
      %843 = vmatprep.subr.mxu0 0.0
      %844 = vmatpush1.msra.mxu0 0.0
      %845 = vmatprep.subr.mxu0 0.0
      %846 = vmatpush1.msra.mxu0 0.0
      %847 = vmatprep.subr.mxu0 0.0
      %848 = vmatpush1.msra.mxu0 0.0
      %849 = vmatprep.subr.mxu0 0.0
      %850 = vmatpush1.msra.mxu0 0.0
      %851 = vmatprep.subr.mxu0 0.0
      %852 = vmatpush1.msra.mxu0 0.0
      %853 = vmatprep.subr.mxu0 0.0
      %854 = vmatpush1.msra.mxu0 0.0
      %855 = vmatprep.subr.mxu0 0.0
      %856 = vmatpush1.msra.mxu0 0.0
      %857 = vmatprep.subr.mxu0 0.0
      %858 = vmatpush1.msra.mxu0 0.0
      %859 = vmatprep.subr.mxu0 0.0
      %860 = vmatpush1.msra.mxu0 0.0
      %861 = vmatprep.subr.mxu0 0.0
      %862 = vmatpush1.msra.mxu0 0.0
      %863 = vmatprep.subr.mxu0 0.0
      %864 = vmatpush1.msra.mxu0 0.0
      %865 = vmatprep.mubr.f32.mxu0 0.0
      %v866 = vand.u32 %v707, 4294901760
      %867 = vmatmul.mubr.f32.gmra.mrb[0].mxu0 %v866
      %v868 = vpop.f32.mrb[0].mxu0
      %v869 = vadd.f32 %v787, %v868
      %v870 = vpop.f32.mrb[0].mxu0
      %v871 = vadd.f32 %v789, %v870
      %872 = vdwg.mxu0
      %v873 = vand.u32 %v711, 4294901760
      %v874 = vsub.f32 %v711, %v873
      %875 = vmatprep.subr.mxu0 %v874
      %v876 = vand.u32 %v709, 4294901760
      %v877 = vsub.f32 %v709, %v876
      %878 = vmatpush1.msra.mxu0 %v877
      %879 = vmatprep.subr.mxu0 0.0
      %880 = vmatpush1.msra.mxu0 0.0
      %881 = vmatprep.subr.mxu0 0.0
      %882 = vmatpush1.msra.mxu0 0.0
      %883 = vmatprep.subr.mxu0 0.0
      %884 = vmatpush1.msra.mxu0 0.0
      %885 = vmatprep.subr.mxu0 0.0
      %886 = vmatpush1.msra.mxu0 0.0
      %887 = vmatprep.subr.mxu0 0.0
      %888 = vmatpush1.msra.mxu0 0.0
      %889 = vmatprep.subr.mxu0 0.0
      %890 = vmatpush1.msra.mxu0 0.0
      %891 = vmatprep.subr.mxu0 0.0
      %892 = vmatpush1.msra.mxu0 0.0
      %893 = vmatprep.subr.mxu0 0.0
      %894 = vmatpush1.msra.mxu0 0.0
      %895 = vmatprep.subr.mxu0 0.0
      %896 = vmatpush1.msra.mxu0 0.0
      %897 = vmatprep.subr.mxu0 0.0
      %898 = vmatpush1.msra.mxu0 0.0
      %899 = vmatprep.subr.mxu0 0.0
      %900 = vmatpush1.msra.mxu0 0.0
      %901 = vmatprep.subr.mxu0 0.0
      %902 = vmatpush1.msra.mxu0 0.0
      %903 = vmatprep.subr.mxu0 0.0
      %904 = vmatpush1.msra.mxu0 0.0
      %905 = vmatprep.subr.mxu0 0.0
      %906 = vmatpush1.msra.mxu0 0.0
      %907 = vmatprep.subr.mxu0 0.0
      %908 = vmatpush1.msra.mxu0 0.0
      %909 = vmatprep.subr.mxu0 0.0
      %910 = vmatpush1.msra.mxu0 0.0
      %911 = vmatprep.subr.mxu0 0.0
      %912 = vmatpush1.msra.mxu0 0.0
      %913 = vmatprep.subr.mxu0 0.0
      %914 = vmatpush1.msra.mxu0 0.0
      %915 = vmatprep.subr.mxu0 0.0
      %916 = vmatpush1.msra.mxu0 0.0
      %917 = vmatprep.subr.mxu0 0.0
      %918 = vmatpush1.msra.mxu0 0.0
      %919 = vmatprep.subr.mxu0 0.0
      %920 = vmatpush1.msra.mxu0 0.0
      %921 = vmatprep.subr.mxu0 0.0
      %922 = vmatpush1.msra.mxu0 0.0
      %923 = vmatprep.subr.mxu0 0.0
      %924 = vmatpush1.msra.mxu0 0.0
      %925 = vmatprep.subr.mxu0 0.0
      %926 = vmatpush1.msra.mxu0 0.0
      %927 = vmatprep.subr.mxu0 0.0
      %928 = vmatpush1.msra.mxu0 0.0
      %929 = vmatprep.subr.mxu0 0.0
      %930 = vmatpush1.msra.mxu0 0.0
      %931 = vmatprep.subr.mxu0 0.0
      %932 = vmatpush1.msra.mxu0 0.0
      %933 = vmatprep.subr.mxu0 0.0
      %934 = vmatpush1.msra.mxu0 0.0
      %935 = vmatprep.subr.mxu0 0.0
      %936 = vmatpush1.msra.mxu0 0.0
      %937 = vmatprep.subr.mxu0 0.0
      %938 = vmatpush1.msra.mxu0 0.0
      %939 = vmatprep.subr.mxu0 0.0
      %940 = vmatpush1.msra.mxu0 0.0
      %941 = vmatprep.mubr.f32.mxu0 0.0
      %v942 = vand.u32 %v707, 4294901760
      %v943 = vsub.f32 %v707, %v942
      %944 = vmatmul.mubr.f32.gmra.mrb[0].mxu0 %v943
      %v945 = vpop.f32.mrb[0].mxu0
      %v946 = vadd.f32 %v869, %v945
      %v947 = vpop.f32.mrb[0].mxu0
      %v948 = vadd.f32 %v871, %v947
      %949 = vdwg.mxu0
      %v950 = vand.u32 %v711, 4294901760
      %951 = vmatprep.subr.mxu0 %v950
      %v952 = vand.u32 %v709, 4294901760
      %953 = vmatpush1.msra.mxu0 %v952
      %954 = vmatprep.subr.mxu0 0.0
      %955 = vmatpush1.msra.mxu0 0.0
      %956 = vmatprep.subr.mxu0 0.0
      %957 = vmatpush1.msra.mxu0 0.0
      %958 = vmatprep.subr.mxu0 0.0
      %959 = vmatpush1.msra.mxu0 0.0
      %960 = vmatprep.subr.mxu0 0.0
      %961 = vmatpush1.msra.mxu0 0.0
      %962 = vmatprep.subr.mxu0 0.0
      %963 = vmatpush1.msra.mxu0 0.0
      %964 = vmatprep.subr.mxu0 0.0
      %965 = vmatpush1.msra.mxu0 0.0
      %966 = vmatprep.subr.mxu0 0.0
      %967 = vmatpush1.msra.mxu0 0.0
      %968 = vmatprep.subr.mxu0 0.0
      %969 = vmatpush1.msra.mxu0 0.0
      %970 = vmatprep.subr.mxu0 0.0
      %971 = vmatpush1.msra.mxu0 0.0
      %972 = vmatprep.subr.mxu0 0.0
      %973 = vmatpush1.msra.mxu0 0.0
      %974 = vmatprep.subr.mxu0 0.0
      %975 = vmatpush1.msra.mxu0 0.0
      %976 = vmatprep.subr.mxu0 0.0
      %977 = vmatpush1.msra.mxu0 0.0
      %978 = vmatprep.subr.mxu0 0.0
      %979 = vmatpush1.msra.mxu0 0.0
      %980 = vmatprep.subr.mxu0 0.0
      %981 = vmatpush1.msra.mxu0 0.0
      %982 = vmatprep.subr.mxu0 0.0
      %983 = vmatpush1.msra.mxu0 0.0
      %984 = vmatprep.subr.mxu0 0.0
      %985 = vmatpush1.msra.mxu0 0.0
      %986 = vmatprep.subr.mxu0 0.0
      %987 = vmatpush1.msra.mxu0 0.0
      %988 = vmatprep.subr.mxu0 0.0
      %989 = vmatpush1.msra.mxu0 0.0
      %990 = vmatprep.subr.mxu0 0.0
      %991 = vmatpush1.msra.mxu0 0.0
      %992 = vmatprep.subr.mxu0 0.0
      %993 = vmatpush1.msra.mxu0 0.0
      %994 = vmatprep.subr.mxu0 0.0
      %995 = vmatpush1.msra.mxu0 0.0
      %996 = vmatprep.subr.mxu0 0.0
      %997 = vmatpush1.msra.mxu0 0.0
      %998 = vmatprep.subr.mxu0 0.0
      %999 = vmatpush1.msra.mxu0 0.0
      %1000 = vmatprep.subr.mxu0 0.0
      %1001 = vmatpush1.msra.mxu0 0.0
      %1002 = vmatprep.subr.mxu0 0.0
      %1003 = vmatpush1.msra.mxu0 0.0
      %1004 = vmatprep.subr.mxu0 0.0
      %1005 = vmatpush1.msra.mxu0 0.0
      %1006 = vmatprep.subr.mxu0 0.0
      %1007 = vmatpush1.msra.mxu0 0.0
      %1008 = vmatprep.subr.mxu0 0.0
      %1009 = vmatpush1.msra.mxu0 0.0
      %1010 = vmatprep.subr.mxu0 0.0
      %1011 = vmatpush1.msra.mxu0 0.0
      %1012 = vmatprep.subr.mxu0 0.0
      %1013 = vmatpush1.msra.mxu0 0.0
      %1014 = vmatprep.subr.mxu0 0.0
      %1015 = vmatpush1.msra.mxu0 0.0
      %1016 = vmatprep.mubr.f32.mxu0 0.0
      %v1017 = vand.u32 %v707, 4294901760
      %v1018 = vsub.f32 %v707, %v1017
      %v1019 = vand.u32 %v1018, 4294901760
      %1020 = vmatmul.mubr.f32.gmra.mrb[0].mxu0 %v1019
      %v1021 = vpop.f32.mrb[0].mxu0
      %v1022 = vadd.f32 %v946, %v1021
      %v1023 = vpop.f32.mrb[0].mxu0
      %v1024 = vadd.f32 %v948, %v1023
      %1025 = vdwg.mxu0
      %v1026 = vand.u32 %v711, 4294901760
      %v1027 = vsub.f32 %v711, %v1026
      %v1028 = vand.u32 %v1027, 4294901760
      %1029 = vmatprep.subr.mxu0 %v1028
      %v1030 = vand.u32 %v709, 4294901760
      %v1031 = vsub.f32 %v709, %v1030
      %v1032 = vand.u32 %v1031, 4294901760
      %1033 = vmatpush1.msra.mxu0 %v1032
      %1034 = vmatprep.subr.mxu0 0.0
      %1035 = vmatpush1.msra.mxu0 0.0
      %1036 = vmatprep.subr.mxu0 0.0
      %1037 = vmatpush1.msra.mxu0 0.0
      %1038 = vmatprep.subr.mxu0 0.0
      %1039 = vmatpush1.msra.mxu0 0.0
      %1040 = vmatprep.subr.mxu0 0.0
      %1041 = vmatpush1.msra.mxu0 0.0
      %1042 = vmatprep.subr.mxu0 0.0
      %1043 = vmatpush1.msra.mxu0 0.0
      %1044 = vmatprep.subr.mxu0 0.0
      %1045 = vmatpush1.msra.mxu0 0.0
      %1046 = vmatprep.subr.mxu0 0.0
      %1047 = vmatpush1.msra.mxu0 0.0
      %1048 = vmatprep.subr.mxu0 0.0
      %1049 = vmatpush1.msra.mxu0 0.0
      %1050 = vmatprep.subr.mxu0 0.0
      %1051 = vmatpush1.msra.mxu0 0.0
      %1052 = vmatprep.subr.mxu0 0.0
      %1053 = vmatpush1.msra.mxu0 0.0
      %1054 = vmatprep.subr.mxu0 0.0
      %1055 = vmatpush1.msra.mxu0 0.0
      %1056 = vmatprep.subr.mxu0 0.0
      %1057 = vmatpush1.msra.mxu0 0.0
      %1058 = vmatprep.subr.mxu0 0.0
      %1059 = vmatpush1.msra.mxu0 0.0
      %1060 = vmatprep.subr.mxu0 0.0
      %1061 = vmatpush1.msra.mxu0 0.0
      %1062 = vmatprep.subr.mxu0 0.0
      %1063 = vmatpush1.msra.mxu0 0.0
      %1064 = vmatprep.subr.mxu0 0.0
      %1065 = vmatpush1.msra.mxu0 0.0
      %1066 = vmatprep.subr.mxu0 0.0
      %1067 = vmatpush1.msra.mxu0 0.0
      %1068 = vmatprep.subr.mxu0 0.0
      %1069 = vmatpush1.msra.mxu0 0.0
      %1070 = vmatprep.subr.mxu0 0.0
      %1071 = vmatpush1.msra.mxu0 0.0
      %1072 = vmatprep.subr.mxu0 0.0
      %1073 = vmatpush1.msra.mxu0 0.0
      %1074 = vmatprep.subr.mxu0 0.0
      %1075 = vmatpush1.msra.mxu0 0.0
      %1076 = vmatprep.subr.mxu0 0.0
      %1077 = vmatpush1.msra.mxu0 0.0
      %1078 = vmatprep.subr.mxu0 0.0
      %1079 = vmatpush1.msra.mxu0 0.0
      %1080 = vmatprep.subr.mxu0 0.0
      %1081 = vmatpush1.msra.mxu0 0.0
      %1082 = vmatprep.subr.mxu0 0.0
      %1083 = vmatpush1.msra.mxu0 0.0
      %1084 = vmatprep.subr.mxu0 0.0
      %1085 = vmatpush1.msra.mxu0 0.0
      %1086 = vmatprep.subr.mxu0 0.0
      %1087 = vmatpush1.msra.mxu0 0.0
      %1088 = vmatprep.subr.mxu0 0.0
      %1089 = vmatpush1.msra.mxu0 0.0
      %1090 = vmatprep.subr.mxu0 0.0
      %1091 = vmatpush1.msra.mxu0 0.0
      %1092 = vmatprep.subr.mxu0 0.0
      %1093 = vmatpush1.msra.mxu0 0.0
      %1094 = vmatprep.subr.mxu0 0.0
      %1095 = vmatpush1.msra.mxu0 0.0
      %1096 = vmatprep.mubr.f32.mxu0 0.0
      %v1097 = vand.u32 %v707, 4294901760
      %1098 = vmatmul.mubr.f32.gmra.mrb[0].mxu0 %v1097
      %v1099 = vpop.f32.mrb[0].mxu0
      %v1100 = vadd.f32 %v1022, %v1099
      %v1101 = vpop.f32.mrb[0].mxu0
      %v1102 = vadd.f32 %v1024, %v1101
      %1103 = vdwg.mxu0
      %v1104 = vand.u32 %v711, 4294901760
      %1105 = vmatprep.subr.mxu0 %v1104
      %v1106 = vand.u32 %v709, 4294901760
      %1107 = vmatpush1.msra.mxu0 %v1106
      %1108 = vmatprep.subr.mxu0 0.0
      %1109 = vmatpush1.msra.mxu0 0.0
      %1110 = vmatprep.subr.mxu0 0.0
      %1111 = vmatpush1.msra.mxu0 0.0
      %1112 = vmatprep.subr.mxu0 0.0
      %1113 = vmatpush1.msra.mxu0 0.0
      %1114 = vmatprep.subr.mxu0 0.0
      %1115 = vmatpush1.msra.mxu0 0.0
      %1116 = vmatprep.subr.mxu0 0.0
      %1117 = vmatpush1.msra.mxu0 0.0
      %1118 = vmatprep.subr.mxu0 0.0
      %1119 = vmatpush1.msra.mxu0 0.0
      %1120 = vmatprep.subr.mxu0 0.0
      %1121 = vmatpush1.msra.mxu0 0.0
      %1122 = vmatprep.subr.mxu0 0.0
      %1123 = vmatpush1.msra.mxu0 0.0
      %1124 = vmatprep.subr.mxu0 0.0
      %1125 = vmatpush1.msra.mxu0 0.0
      %1126 = vmatprep.subr.mxu0 0.0
      %1127 = vmatpush1.msra.mxu0 0.0
      %1128 = vmatprep.subr.mxu0 0.0
      %1129 = vmatpush1.msra.mxu0 0.0
      %1130 = vmatprep.subr.mxu0 0.0
      %1131 = vmatpush1.msra.mxu0 0.0
      %1132 = vmatprep.subr.mxu0 0.0
      %1133 = vmatpush1.msra.mxu0 0.0
      %1134 = vmatprep.subr.mxu0 0.0
      %1135 = vmatpush1.msra.mxu0 0.0
      %1136 = vmatprep.subr.mxu0 0.0
      %1137 = vmatpush1.msra.mxu0 0.0
      %1138 = vmatprep.subr.mxu0 0.0
      %1139 = vmatpush1.msra.mxu0 0.0
      %1140 = vmatprep.subr.mxu0 0.0
      %1141 = vmatpush1.msra.mxu0 0.0
      %1142 = vmatprep.subr.mxu0 0.0
      %1143 = vmatpush1.msra.mxu0 0.0
      %1144 = vmatprep.subr.mxu0 0.0
      %1145 = vmatpush1.msra.mxu0 0.0
      %1146 = vmatprep.subr.mxu0 0.0
      %1147 = vmatpush1.msra.mxu0 0.0
      %1148 = vmatprep.subr.mxu0 0.0
      %1149 = vmatpush1.msra.mxu0 0.0
      %1150 = vmatprep.subr.mxu0 0.0
      %1151 = vmatpush1.msra.mxu0 0.0
      %1152 = vmatprep.subr.mxu0 0.0
      %1153 = vmatpush1.msra.mxu0 0.0
      %1154 = vmatprep.subr.mxu0 0.0
      %1155 = vmatpush1.msra.mxu0 0.0
      %1156 = vmatprep.subr.mxu0 0.0
      %1157 = vmatpush1.msra.mxu0 0.0
      %1158 = vmatprep.subr.mxu0 0.0
      %1159 = vmatpush1.msra.mxu0 0.0
      %1160 = vmatprep.subr.mxu0 0.0
      %1161 = vmatpush1.msra.mxu0 0.0
      %1162 = vmatprep.subr.mxu0 0.0
      %1163 = vmatpush1.msra.mxu0 0.0
      %1164 = vmatprep.subr.mxu0 0.0
      %1165 = vmatpush1.msra.mxu0 0.0
      %1166 = vmatprep.subr.mxu0 0.0
      %1167 = vmatpush1.msra.mxu0 0.0
      %1168 = vmatprep.subr.mxu0 0.0
      %1169 = vmatpush1.msra.mxu0 0.0
      %1170 = vmatprep.mubr.f32.mxu0 0.0
      %v1171 = vand.u32 %v707, 4294901760
      %1172 = vmatmul.mubr.f32.gmra.mrb[0].mxu0 %v1171
      %v1173 = vpop.f32.mrb[0].mxu0
      %v1174 = vadd.f32 %v1100, %v1173
      %v1175 = vpop.f32.mrb[0].mxu0
      %v1176 = vadd.f32 %v1102, %v1175
      %1177 = vdwg.mxu0
      %v1178 = vld [vmem:[#allocation2 + $0x4] sm:$0xff]
      %v1179 = vld [vmem:[#allocation2 + $0xc] sm:$0xf]
      %s1180 = scalar_lea.vmem %s1, 24
      %v1181 = vld [vmem:[%s1180] sm:$0xf]
      %v1184 = vcombine.high %v1178, %v1178
      %1185 = vrot.lane.b32.xlu0 %v1178, 113
      %v1186 = vpop.permute.xlu0 %1185
      %1187 = vrot.lane.b32.xlu0 %v1184, 113
      %v1188 = vpop.permute.xlu0 %1187
      %1189 = vrot.lane.b32.xlu0 %v1179, 113
      %v1190 = vpop.permute.xlu0 %1189
      %vm1191 = vcmask 924672
      %v1192 = vsel %vm1191, %v1186, %v1188
      %v1193 = vsel %vm1191, %v1188, %v1190
      %v1195 = vsel %vm223, %v1181, 0
      %v1197 = vsel %vm227, %v1192, 0
      %v1199 = vsel %vm227, %v1193, 0
      %v1201 = vand.u32 %v1199, 4294901760
      %1202 = vmatprep.subr.mxu0 %v1201
      %v1203 = vand.u32 %v1197, 4294901760
      %1204 = vmatpush1.msra.mxu0 %v1203
      %1205 = vmatprep.subr.mxu0 0.0
      %1206 = vmatpush1.msra.mxu0 0.0
      %1207 = vmatprep.subr.mxu0 0.0
      %1208 = vmatpush1.msra.mxu0 0.0
      %1209 = vmatprep.subr.mxu0 0.0
      %1210 = vmatpush1.msra.mxu0 0.0
      %1211 = vmatprep.subr.mxu0 0.0
      %1212 = vmatpush1.msra.mxu0 0.0
      %1213 = vmatprep.subr.mxu0 0.0
      %1214 = vmatpush1.msra.mxu0 0.0
      %1215 = vmatprep.subr.mxu0 0.0
      %1216 = vmatpush1.msra.mxu0 0.0
      %1217 = vmatprep.subr.mxu0 0.0
      %1218 = vmatpush1.msra.mxu0 0.0
      %1219 = vmatprep.subr.mxu0 0.0
      %1220 = vmatpush1.msra.mxu0 0.0
      %1221 = vmatprep.subr.mxu0 0.0
      %1222 = vmatpush1.msra.mxu0 0.0
      %1223 = vmatprep.subr.mxu0 0.0
      %1224 = vmatpush1.msra.mxu0 0.0
      %1225 = vmatprep.subr.mxu0 0.0
      %1226 = vmatpush1.msra.mxu0 0.0
      %1227 = vmatprep.subr.mxu0 0.0
      %1228 = vmatpush1.msra.mxu0 0.0
      %1229 = vmatprep.subr.mxu0 0.0
      %1230 = vmatpush1.msra.mxu0 0.0
      %1231 = vmatprep.subr.mxu0 0.0
      %1232 = vmatpush1.msra.mxu0 0.0
      %1233 = vmatprep.subr.mxu0 0.0
      %1234 = vmatpush1.msra.mxu0 0.0
      %1235 = vmatprep.subr.mxu0 0.0
      %1236 = vmatpush1.msra.mxu0 0.0
      %1237 = vmatprep.subr.mxu0 0.0
      %1238 = vmatpush1.msra.mxu0 0.0
      %1239 = vmatprep.subr.mxu0 0.0
      %1240 = vmatpush1.msra.mxu0 0.0
      %1241 = vmatprep.subr.mxu0 0.0
      %1242 = vmatpush1.msra.mxu0 0.0
      %1243 = vmatprep.subr.mxu0 0.0
      %1244 = vmatpush1.msra.mxu0 0.0
      %1245 = vmatprep.subr.mxu0 0.0
      %1246 = vmatpush1.msra.mxu0 0.0
      %1247 = vmatprep.subr.mxu0 0.0
      %1248 = vmatpush1.msra.mxu0 0.0
      %1249 = vmatprep.subr.mxu0 0.0
      %1250 = vmatpush1.msra.mxu0 0.0
      %1251 = vmatprep.subr.mxu0 0.0
      %1252 = vmatpush1.msra.mxu0 0.0
      %1253 = vmatprep.subr.mxu0 0.0
      %1254 = vmatpush1.msra.mxu0 0.0
      %1255 = vmatprep.subr.mxu0 0.0
      %1256 = vmatpush1.msra.mxu0 0.0
      %1257 = vmatprep.subr.mxu0 0.0
      %1258 = vmatpush1.msra.mxu0 0.0
      %1259 = vmatprep.subr.mxu0 0.0
      %1260 = vmatpush1.msra.mxu0 0.0
      %1261 = vmatprep.subr.mxu0 0.0
      %1262 = vmatpush1.msra.mxu0 0.0
      %1263 = vmatprep.subr.mxu0 0.0
      %1264 = vmatpush1.msra.mxu0 0.0
      %1265 = vmatprep.subr.mxu0 0.0
      %1266 = vmatpush1.msra.mxu0 0.0
      %1267 = vmatprep.mubr.f32.mxu0 0.0
      %v1268 = vand.u32 %v1195, 4294901760
      %v1269 = vsub.f32 %v1195, %v1268
      %v1270 = vand.u32 %v1269, 4294901760
      %v1271 = vsub.f32 %v1269, %v1270
      %v1272 = vand.u32 %v1271, 4294901760
      %1273 = vmatmul.mubr.f32.gmra.mrb[0].mxu0 %v1272
      %v1274 = vpop.f32.mrb[0].mxu0
      %v1275 = vadd.f32 0.0, %v1274
      %v1276 = vpop.f32.mrb[0].mxu0
      %v1277 = vadd.f32 0.0, %v1276
      %1278 = vdwg.mxu0
      %v1279 = vand.u32 %v1199, 4294901760
      %v1280 = vsub.f32 %v1199, %v1279
      %v1281 = vand.u32 %v1280, 4294901760
      %v1282 = vsub.f32 %v1280, %v1281
      %v1283 = vand.u32 %v1282, 4294901760
      %1284 = vmatprep.subr.mxu0 %v1283
      %v1285 = vand.u32 %v1197, 4294901760
      %v1286 = vsub.f32 %v1197, %v1285
      %v1287 = vand.u32 %v1286, 4294901760
      %v1288 = vsub.f32 %v1286, %v1287
      %v1289 = vand.u32 %v1288, 4294901760
      %1290 = vmatpush1.msra.mxu0 %v1289
      %1291 = vmatprep.subr.mxu0 0.0
      %1292 = vmatpush1.msra.mxu0 0.0
      %1293 = vmatprep.subr.mxu0 0.0
      %1294 = vmatpush1.msra.mxu0 0.0
      %1295 = vmatprep.subr.mxu0 0.0
      %1296 = vmatpush1.msra.mxu0 0.0
      %1297 = vmatprep.subr.mxu0 0.0
      %1298 = vmatpush1.msra.mxu0 0.0
      %1299 = vmatprep.subr.mxu0 0.0
      %1300 = vmatpush1.msra.mxu0 0.0
      %1301 = vmatprep.subr.mxu0 0.0
      %1302 = vmatpush1.msra.mxu0 0.0
      %1303 = vmatprep.subr.mxu0 0.0
      %1304 = vmatpush1.msra.mxu0 0.0
      %1305 = vmatprep.subr.mxu0 0.0
      %1306 = vmatpush1.msra.mxu0 0.0
      %1307 = vmatprep.subr.mxu0 0.0
      %1308 = vmatpush1.msra.mxu0 0.0
      %1309 = vmatprep.subr.mxu0 0.0
      %1310 = vmatpush1.msra.mxu0 0.0
      %1311 = vmatprep.subr.mxu0 0.0
      %1312 = vmatpush1.msra.mxu0 0.0
      %1313 = vmatprep.subr.mxu0 0.0
      %1314 = vmatpush1.msra.mxu0 0.0
      %1315 = vmatprep.subr.mxu0 0.0
      %1316 = vmatpush1.msra.mxu0 0.0
      %1317 = vmatprep.subr.mxu0 0.0
      %1318 = vmatpush1.msra.mxu0 0.0
      %1319 = vmatprep.subr.mxu0 0.0
      %1320 = vmatpush1.msra.mxu0 0.0
      %1321 = vmatprep.subr.mxu0 0.0
      %1322 = vmatpush1.msra.mxu0 0.0
      %1323 = vmatprep.subr.mxu0 0.0
      %1324 = vmatpush1.msra.mxu0 0.0
      %1325 = vmatprep.subr.mxu0 0.0
      %1326 = vmatpush1.msra.mxu0 0.0
      %1327 = vmatprep.subr.mxu0 0.0
      %1328 = vmatpush1.msra.mxu0 0.0
      %1329 = vmatprep.subr.mxu0 0.0
      %1330 = vmatpush1.msra.mxu0 0.0
      %1331 = vmatprep.subr.mxu0 0.0
      %1332 = vmatpush1.msra.mxu0 0.0
      %1333 = vmatprep.subr.mxu0 0.0
      %1334 = vmatpush1.msra.mxu0 0.0
      %1335 = vmatprep.subr.mxu0 0.0
      %1336 = vmatpush1.msra.mxu0 0.0
      %1337 = vmatprep.subr.mxu0 0.0
      %1338 = vmatpush1.msra.mxu0 0.0
      %1339 = vmatprep.subr.mxu0 0.0
      %1340 = vmatpush1.msra.mxu0 0.0
      %1341 = vmatprep.subr.mxu0 0.0
      %1342 = vmatpush1.msra.mxu0 0.0
      %1343 = vmatprep.subr.mxu0 0.0
      %1344 = vmatpush1.msra.mxu0 0.0
      %1345 = vmatprep.subr.mxu0 0.0
      %1346 = vmatpush1.msra.mxu0 0.0
      %1347 = vmatprep.subr.mxu0 0.0
      %1348 = vmatpush1.msra.mxu0 0.0
      %1349 = vmatprep.subr.mxu0 0.0
      %1350 = vmatpush1.msra.mxu0 0.0
      %1351 = vmatprep.subr.mxu0 0.0
      %1352 = vmatpush1.msra.mxu0 0.0
      %1353 = vmatprep.mubr.f32.mxu0 0.0
      %v1354 = vand.u32 %v1195, 4294901760
      %1355 = vmatmul.mubr.f32.gmra.mrb[0].mxu0 %v1354
      %v1356 = vpop.f32.mrb[0].mxu0
      %v1357 = vadd.f32 %v1275, %v1356
      %v1358 = vpop.f32.mrb[0].mxu0
      %v1359 = vadd.f32 %v1277, %v1358
      %1360 = vdwg.mxu0
      %v1361 = vand.u32 %v1199, 4294901760
      %v1362 = vsub.f32 %v1199, %v1361
      %1363 = vmatprep.subr.mxu0 %v1362
      %v1364 = vand.u32 %v1197, 4294901760
      %v1365 = vsub.f32 %v1197, %v1364
      %1366 = vmatpush1.msra.mxu0 %v1365
      %1367 = vmatprep.subr.mxu0 0.0
      %1368 = vmatpush1.msra.mxu0 0.0
      %1369 = vmatprep.subr.mxu0 0.0
      %1370 = vmatpush1.msra.mxu0 0.0
      %1371 = vmatprep.subr.mxu0 0.0
      %1372 = vmatpush1.msra.mxu0 0.0
      %1373 = vmatprep.subr.mxu0 0.0
      %1374 = vmatpush1.msra.mxu0 0.0
      %1375 = vmatprep.subr.mxu0 0.0
      %1376 = vmatpush1.msra.mxu0 0.0
      %1377 = vmatprep.subr.mxu0 0.0
      %1378 = vmatpush1.msra.mxu0 0.0
      %1379 = vmatprep.subr.mxu0 0.0
      %1380 = vmatpush1.msra.mxu0 0.0
      %1381 = vmatprep.subr.mxu0 0.0
      %1382 = vmatpush1.msra.mxu0 0.0
      %1383 = vmatprep.subr.mxu0 0.0
      %1384 = vmatpush1.msra.mxu0 0.0
      %1385 = vmatprep.subr.mxu0 0.0
      %1386 = vmatpush1.msra.mxu0 0.0
      %1387 = vmatprep.subr.mxu0 0.0
      %1388 = vmatpush1.msra.mxu0 0.0
      %1389 = vmatprep.subr.mxu0 0.0
      %1390 = vmatpush1.msra.mxu0 0.0
      %1391 = vmatprep.subr.mxu0 0.0
      %1392 = vmatpush1.msra.mxu0 0.0
      %1393 = vmatprep.subr.mxu0 0.0
      %1394 = vmatpush1.msra.mxu0 0.0
      %1395 = vmatprep.subr.mxu0 0.0
      %1396 = vmatpush1.msra.mxu0 0.0
      %1397 = vmatprep.subr.mxu0 0.0
      %1398 = vmatpush1.msra.mxu0 0.0
      %1399 = vmatprep.subr.mxu0 0.0
      %1400 = vmatpush1.msra.mxu0 0.0
      %1401 = vmatprep.subr.mxu0 0.0
      %1402 = vmatpush1.msra.mxu0 0.0
      %1403 = vmatprep.subr.mxu0 0.0
      %1404 = vmatpush1.msra.mxu0 0.0
      %1405 = vmatprep.subr.mxu0 0.0
      %1406 = vmatpush1.msra.mxu0 0.0
      %1407 = vmatprep.subr.mxu0 0.0
      %1408 = vmatpush1.msra.mxu0 0.0
      %1409 = vmatprep.subr.mxu0 0.0
      %1410 = vmatpush1.msra.mxu0 0.0
      %1411 = vmatprep.subr.mxu0 0.0
      %1412 = vmatpush1.msra.mxu0 0.0
      %1413 = vmatprep.subr.mxu0 0.0
      %1414 = vmatpush1.msra.mxu0 0.0
      %1415 = vmatprep.subr.mxu0 0.0
      %1416 = vmatpush1.msra.mxu0 0.0
      %1417 = vmatprep.subr.mxu0 0.0
      %1418 = vmatpush1.msra.mxu0 0.0
      %1419 = vmatprep.subr.mxu0 0.0
      %1420 = vmatpush1.msra.mxu0 0.0
      %1421 = vmatprep.subr.mxu0 0.0
      %1422 = vmatpush1.msra.mxu0 0.0
      %1423 = vmatprep.subr.mxu0 0.0
      %1424 = vmatpush1.msra.mxu0 0.0
      %1425 = vmatprep.subr.mxu0 0.0
      %1426 = vmatpush1.msra.mxu0 0.0
      %1427 = vmatprep.subr.mxu0 0.0
      %1428 = vmatpush1.msra.mxu0 0.0
      %1429 = vmatprep.mubr.f32.mxu0 0.0
      %v1430 = vand.u32 %v1195, 4294901760
      %v1431 = vsub.f32 %v1195, %v1430
      %1432 = vmatmul.mubr.f32.gmra.mrb[0].mxu0 %v1431
      %v1433 = vpop.f32.mrb[0].mxu0
      %v1434 = vadd.f32 %v1357, %v1433
      %v1435 = vpop.f32.mrb[0].mxu0
      %v1436 = vadd.f32 %v1359, %v1435
      %1437 = vdwg.mxu0
      %v1438 = vand.u32 %v1199, 4294901760
      %1439 = vmatprep.subr.mxu0 %v1438
      %v1440 = vand.u32 %v1197, 4294901760
      %1441 = vmatpush1.msra.mxu0 %v1440
      %1442 = vmatprep.subr.mxu0 0.0
      %1443 = vmatpush1.msra.mxu0 0.0
      %1444 = vmatprep.subr.mxu0 0.0
      %1445 = vmatpush1.msra.mxu0 0.0
      %1446 = vmatprep.subr.mxu0 0.0
      %1447 = vmatpush1.msra.mxu0 0.0
      %1448 = vmatprep.subr.mxu0 0.0
      %1449 = vmatpush1.msra.mxu0 0.0
      %1450 = vmatprep.subr.mxu0 0.0
      %1451 = vmatpush1.msra.mxu0 0.0
      %1452 = vmatprep.subr.mxu0 0.0
      %1453 = vmatpush1.msra.mxu0 0.0
      %1454 = vmatprep.subr.mxu0 0.0
      %1455 = vmatpush1.msra.mxu0 0.0
      %1456 = vmatprep.subr.mxu0 0.0
      %1457 = vmatpush1.msra.mxu0 0.0
      %1458 = vmatprep.subr.mxu0 0.0
      %1459 = vmatpush1.msra.mxu0 0.0
      %1460 = vmatprep.subr.mxu0 0.0
      %1461 = vmatpush1.msra.mxu0 0.0
      %1462 = vmatprep.subr.mxu0 0.0
      %1463 = vmatpush1.msra.mxu0 0.0
      %1464 = vmatprep.subr.mxu0 0.0
      %1465 = vmatpush1.msra.mxu0 0.0
      %1466 = vmatprep.subr.mxu0 0.0
      %1467 = vmatpush1.msra.mxu0 0.0
      %1468 = vmatprep.subr.mxu0 0.0
      %1469 = vmatpush1.msra.mxu0 0.0
      %1470 = vmatprep.subr.mxu0 0.0
      %1471 = vmatpush1.msra.mxu0 0.0
      %1472 = vmatprep.subr.mxu0 0.0
      %1473 = vmatpush1.msra.mxu0 0.0
      %1474 = vmatprep.subr.mxu0 0.0
      %1475 = vmatpush1.msra.mxu0 0.0
      %1476 = vmatprep.subr.mxu0 0.0
      %1477 = vmatpush1.msra.mxu0 0.0
      %1478 = vmatprep.subr.mxu0 0.0
      %1479 = vmatpush1.msra.mxu0 0.0
      %1480 = vmatprep.subr.mxu0 0.0
      %1481 = vmatpush1.msra.mxu0 0.0
      %1482 = vmatprep.subr.mxu0 0.0
      %1483 = vmatpush1.msra.mxu0 0.0
      %1484 = vmatprep.subr.mxu0 0.0
      %1485 = vmatpush1.msra.mxu0 0.0
      %1486 = vmatprep.subr.mxu0 0.0
      %1487 = vmatpush1.msra.mxu0 0.0
      %1488 = vmatprep.subr.mxu0 0.0
      %1489 = vmatpush1.msra.mxu0 0.0
      %1490 = vmatprep.subr.mxu0 0.0
      %1491 = vmatpush1.msra.mxu0 0.0
      %1492 = vmatprep.subr.mxu0 0.0
      %1493 = vmatpush1.msra.mxu0 0.0
      %1494 = vmatprep.subr.mxu0 0.0
      %1495 = vmatpush1.msra.mxu0 0.0
      %1496 = vmatprep.subr.mxu0 0.0
      %1497 = vmatpush1.msra.mxu0 0.0
      %1498 = vmatprep.subr.mxu0 0.0
      %1499 = vmatpush1.msra.mxu0 0.0
      %1500 = vmatprep.subr.mxu0 0.0
      %1501 = vmatpush1.msra.mxu0 0.0
      %1502 = vmatprep.subr.mxu0 0.0
      %1503 = vmatpush1.msra.mxu0 0.0
      %1504 = vmatprep.mubr.f32.mxu0 0.0
      %v1505 = vand.u32 %v1195, 4294901760
      %v1506 = vsub.f32 %v1195, %v1505
      %v1507 = vand.u32 %v1506, 4294901760
      %1508 = vmatmul.mubr.f32.gmra.mrb[0].mxu0 %v1507
      %v1509 = vpop.f32.mrb[0].mxu0
      %v1510 = vadd.f32 %v1434, %v1509
      %v1511 = vpop.f32.mrb[0].mxu0
      %v1512 = vadd.f32 %v1436, %v1511
      %1513 = vdwg.mxu0
      %v1514 = vand.u32 %v1199, 4294901760
      %v1515 = vsub.f32 %v1199, %v1514
      %v1516 = vand.u32 %v1515, 4294901760
      %1517 = vmatprep.subr.mxu0 %v1516
      %v1518 = vand.u32 %v1197, 4294901760
      %v1519 = vsub.f32 %v1197, %v1518
      %v1520 = vand.u32 %v1519, 4294901760
      %1521 = vmatpush1.msra.mxu0 %v1520
      %1522 = vmatprep.subr.mxu0 0.0
      %1523 = vmatpush1.msra.mxu0 0.0
      %1524 = vmatprep.subr.mxu0 0.0
      %1525 = vmatpush1.msra.mxu0 0.0
      %1526 = vmatprep.subr.mxu0 0.0
      %1527 = vmatpush1.msra.mxu0 0.0
      %1528 = vmatprep.subr.mxu0 0.0
      %1529 = vmatpush1.msra.mxu0 0.0
      %1530 = vmatprep.subr.mxu0 0.0
      %1531 = vmatpush1.msra.mxu0 0.0
      %1532 = vmatprep.subr.mxu0 0.0
      %1533 = vmatpush1.msra.mxu0 0.0
      %1534 = vmatprep.subr.mxu0 0.0
      %1535 = vmatpush1.msra.mxu0 0.0
      %1536 = vmatprep.subr.mxu0 0.0
      %1537 = vmatpush1.msra.mxu0 0.0
      %1538 = vmatprep.subr.mxu0 0.0
      %1539 = vmatpush1.msra.mxu0 0.0
      %1540 = vmatprep.subr.mxu0 0.0
      %1541 = vmatpush1.msra.mxu0 0.0
      %1542 = vmatprep.subr.mxu0 0.0
      %1543 = vmatpush1.msra.mxu0 0.0
      %1544 = vmatprep.subr.mxu0 0.0
      %1545 = vmatpush1.msra.mxu0 0.0
      %1546 = vmatprep.subr.mxu0 0.0
      %1547 = vmatpush1.msra.mxu0 0.0
      %1548 = vmatprep.subr.mxu0 0.0
      %1549 = vmatpush1.msra.mxu0 0.0
      %1550 = vmatprep.subr.mxu0 0.0
      %1551 = vmatpush1.msra.mxu0 0.0
      %1552 = vmatprep.subr.mxu0 0.0
      %1553 = vmatpush1.msra.mxu0 0.0
      %1554 = vmatprep.subr.mxu0 0.0
      %1555 = vmatpush1.msra.mxu0 0.0
      %1556 = vmatprep.subr.mxu0 0.0
      %1557 = vmatpush1.msra.mxu0 0.0
      %1558 = vmatprep.subr.mxu0 0.0
      %1559 = vmatpush1.msra.mxu0 0.0
      %1560 = vmatprep.subr.mxu0 0.0
      %1561 = vmatpush1.msra.mxu0 0.0
      %1562 = vmatprep.subr.mxu0 0.0
      %1563 = vmatpush1.msra.mxu0 0.0
      %1564 = vmatprep.subr.mxu0 0.0
      %1565 = vmatpush1.msra.mxu0 0.0
      %1566 = vmatprep.subr.mxu0 0.0
      %1567 = vmatpush1.msra.mxu0 0.0
      %1568 = vmatprep.subr.mxu0 0.0
      %1569 = vmatpush1.msra.mxu0 0.0
      %1570 = vmatprep.subr.mxu0 0.0
      %1571 = vmatpush1.msra.mxu0 0.0
      %1572 = vmatprep.subr.mxu0 0.0
      %1573 = vmatpush1.msra.mxu0 0.0
      %1574 = vmatprep.subr.mxu0 0.0
      %1575 = vmatpush1.msra.mxu0 0.0
      %1576 = vmatprep.subr.mxu0 0.0
      %1577 = vmatpush1.msra.mxu0 0.0
      %1578 = vmatprep.subr.mxu0 0.0
      %1579 = vmatpush1.msra.mxu0 0.0
      %1580 = vmatprep.subr.mxu0 0.0
      %1581 = vmatpush1.msra.mxu0 0.0
      %1582 = vmatprep.subr.mxu0 0.0
      %1583 = vmatpush1.msra.mxu0 0.0
      %1584 = vmatprep.mubr.f32.mxu0 0.0
      %v1585 = vand.u32 %v1195, 4294901760
      %1586 = vmatmul.mubr.f32.gmra.mrb[0].mxu0 %v1585
      %v1587 = vpop.f32.mrb[0].mxu0
      %v1588 = vadd.f32 %v1510, %v1587
      %v1589 = vpop.f32.mrb[0].mxu0
      %v1590 = vadd.f32 %v1512, %v1589
      %1591 = vdwg.mxu0
      %v1592 = vand.u32 %v1199, 4294901760
      %1593 = vmatprep.subr.mxu0 %v1592
      %v1594 = vand.u32 %v1197, 4294901760
      %1595 = vmatpush1.msra.mxu0 %v1594
      %1596 = vmatprep.subr.mxu0 0.0
      %1597 = vmatpush1.msra.mxu0 0.0
      %1598 = vmatprep.subr.mxu0 0.0
      %1599 = vmatpush1.msra.mxu0 0.0
      %1600 = vmatprep.subr.mxu0 0.0
      %1601 = vmatpush1.msra.mxu0 0.0
      %1602 = vmatprep.subr.mxu0 0.0
      %1603 = vmatpush1.msra.mxu0 0.0
      %1604 = vmatprep.subr.mxu0 0.0
      %1605 = vmatpush1.msra.mxu0 0.0
      %1606 = vmatprep.subr.mxu0 0.0
      %1607 = vmatpush1.msra.mxu0 0.0
      %1608 = vmatprep.subr.mxu0 0.0
      %1609 = vmatpush1.msra.mxu0 0.0
      %1610 = vmatprep.subr.mxu0 0.0
      %1611 = vmatpush1.msra.mxu0 0.0
      %1612 = vmatprep.subr.mxu0 0.0
      %1613 = vmatpush1.msra.mxu0 0.0
      %1614 = vmatprep.subr.mxu0 0.0
      %1615 = vmatpush1.msra.mxu0 0.0
      %1616 = vmatprep.subr.mxu0 0.0
      %1617 = vmatpush1.msra.mxu0 0.0
      %1618 = vmatprep.subr.mxu0 0.0
      %1619 = vmatpush1.msra.mxu0 0.0
      %1620 = vmatprep.subr.mxu0 0.0
      %1621 = vmatpush1.msra.mxu0 0.0
      %1622 = vmatprep.subr.mxu0 0.0
      %1623 = vmatpush1.msra.mxu0 0.0
      %1624 = vmatprep.subr.mxu0 0.0
      %1625 = vmatpush1.msra.mxu0 0.0
      %1626 = vmatprep.subr.mxu0 0.0
      %1627 = vmatpush1.msra.mxu0 0.0
      %1628 = vmatprep.subr.mxu0 0.0
      %1629 = vmatpush1.msra.mxu0 0.0
      %1630 = vmatprep.subr.mxu0 0.0
      %1631 = vmatpush1.msra.mxu0 0.0
      %1632 = vmatprep.subr.mxu0 0.0
      %1633 = vmatpush1.msra.mxu0 0.0
      %1634 = vmatprep.subr.mxu0 0.0
      %1635 = vmatpush1.msra.mxu0 0.0
      %1636 = vmatprep.subr.mxu0 0.0
      %1637 = vmatpush1.msra.mxu0 0.0
      %1638 = vmatprep.subr.mxu0 0.0
      %1639 = vmatpush1.msra.mxu0 0.0
      %1640 = vmatprep.subr.mxu0 0.0
      %1641 = vmatpush1.msra.mxu0 0.0
      %1642 = vmatprep.subr.mxu0 0.0
      %1643 = vmatpush1.msra.mxu0 0.0
      %1644 = vmatprep.subr.mxu0 0.0
      %1645 = vmatpush1.msra.mxu0 0.0
      %1646 = vmatprep.subr.mxu0 0.0
      %1647 = vmatpush1.msra.mxu0 0.0
      %1648 = vmatprep.subr.mxu0 0.0
      %1649 = vmatpush1.msra.mxu0 0.0
      %1650 = vmatprep.subr.mxu0 0.0
      %1651 = vmatpush1.msra.mxu0 0.0
      %1652 = vmatprep.subr.mxu0 0.0
      %1653 = vmatpush1.msra.mxu0 0.0
      %1654 = vmatprep.subr.mxu0 0.0
      %1655 = vmatpush1.msra.mxu0 0.0
      %1656 = vmatprep.subr.mxu0 0.0
      %1657 = vmatpush1.msra.mxu0 0.0
      %1658 = vmatprep.mubr.f32.mxu0 0.0
      %v1659 = vand.u32 %v1195, 4294901760
      %1660 = vmatmul.mubr.f32.gmra.mrb[0].mxu0 %v1659
      %v1661 = vpop.f32.mrb[0].mxu0
      %v1662 = vadd.f32 %v1588, %v1661
      %v1663 = vpop.f32.mrb[0].mxu0
      %v1664 = vadd.f32 %v1590, %v1663
      %1665 = vdwg.mxu0
      %v1666 = vadd.f32 %v1174, %v1662
      %v1667 = vadd.f32 %v1176, %v1664
      %v1668 = vld [vmem:[#allocation2] sm:$0xff]
      %v1669 = vld [vmem:[#allocation2 + $0x8] sm:$0xf]
      %s1670 = scalar_lea.vmem %s1, 4
      %v1671 = vld [vmem:[%s1670] sm:$0xf]
      %v1672 = vld [vmem:[#allocation2 + $0x4] sm:$0xff]
      %s1673 = scalar_lea.vmem %s1, 16
      %v1674 = vld [vmem:[%s1673] sm:$0xf]
      %v1676 = vcombine.high %v1672, %v1672
      %v1678 = vsel %vm223, %v1674, 0
      %v1680 = vsel %vm227, %v1672, 0
      %v1682 = vsel %vm227, %v1676, 0
      %v1684 = vand.u32 %v1682, 4294901760
      %1685 = vmatprep.subr.mxu0 %v1684
      %v1686 = vand.u32 %v1680, 4294901760
      %1687 = vmatpush1.msra.mxu0 %v1686
      %1688 = vmatprep.subr.mxu0 0.0
      %1689 = vmatpush1.msra.mxu0 0.0
      %1690 = vmatprep.subr.mxu0 0.0
      %1691 = vmatpush1.msra.mxu0 0.0
      %1692 = vmatprep.subr.mxu0 0.0
      %1693 = vmatpush1.msra.mxu0 0.0
      %1694 = vmatprep.subr.mxu0 0.0
      %1695 = vmatpush1.msra.mxu0 0.0
      %1696 = vmatprep.subr.mxu0 0.0
      %1697 = vmatpush1.msra.mxu0 0.0
      %1698 = vmatprep.subr.mxu0 0.0
      %1699 = vmatpush1.msra.mxu0 0.0
      %1700 = vmatprep.subr.mxu0 0.0
      %1701 = vmatpush1.msra.mxu0 0.0
      %1702 = vmatprep.subr.mxu0 0.0
      %1703 = vmatpush1.msra.mxu0 0.0
      %1704 = vmatprep.subr.mxu0 0.0
      %1705 = vmatpush1.msra.mxu0 0.0
      %1706 = vmatprep.subr.mxu0 0.0
      %1707 = vmatpush1.msra.mxu0 0.0
      %1708 = vmatprep.subr.mxu0 0.0
      %1709 = vmatpush1.msra.mxu0 0.0
      %1710 = vmatprep.subr.mxu0 0.0
      %1711 = vmatpush1.msra.mxu0 0.0
      %1712 = vmatprep.subr.mxu0 0.0
      %1713 = vmatpush1.msra.mxu0 0.0
      %1714 = vmatprep.subr.mxu0 0.0
      %1715 = vmatpush1.msra.mxu0 0.0
      %1716 = vmatprep.subr.mxu0 0.0
      %1717 = vmatpush1.msra.mxu0 0.0
      %1718 = vmatprep.subr.mxu0 0.0
      %1719 = vmatpush1.msra.mxu0 0.0
      %1720 = vmatprep.subr.mxu0 0.0
      %1721 = vmatpush1.msra.mxu0 0.0
      %1722 = vmatprep.subr.mxu0 0.0
      %1723 = vmatpush1.msra.mxu0 0.0
      %1724 = vmatprep.subr.mxu0 0.0
      %1725 = vmatpush1.msra.mxu0 0.0
      %1726 = vmatprep.subr.mxu0 0.0
      %1727 = vmatpush1.msra.mxu0 0.0
      %1728 = vmatprep.subr.mxu0 0.0
      %1729 = vmatpush1.msra.mxu0 0.0
      %1730 = vmatprep.subr.mxu0 0.0
      %1731 = vmatpush1.msra.mxu0 0.0
      %1732 = vmatprep.subr.mxu0 0.0
      %1733 = vmatpush1.msra.mxu0 0.0
      %1734 = vmatprep.subr.mxu0 0.0
      %1735 = vmatpush1.msra.mxu0 0.0
      %1736 = vmatprep.subr.mxu0 0.0
      %1737 = vmatpush1.msra.mxu0 0.0
      %1738 = vmatprep.subr.mxu0 0.0
      %1739 = vmatpush1.msra.mxu0 0.0
      %1740 = vmatprep.subr.mxu0 0.0
      %1741 = vmatpush1.msra.mxu0 0.0
      %1742 = vmatprep.subr.mxu0 0.0
      %1743 = vmatpush1.msra.mxu0 0.0
      %1744 = vmatprep.subr.mxu0 0.0
      %1745 = vmatpush1.msra.mxu0 0.0
      %1746 = vmatprep.subr.mxu0 0.0
      %1747 = vmatpush1.msra.mxu0 0.0
      %1748 = vmatprep.subr.mxu0 0.0
      %1749 = vmatpush1.msra.mxu0 0.0
      %1750 = vmatprep.mubr.f32.mxu0 0.0
      %v1751 = vand.u32 %v1678, 4294901760
      %v1752 = vsub.f32 %v1678, %v1751
      %v1753 = vand.u32 %v1752, 4294901760
      %v1754 = vsub.f32 %v1752, %v1753
      %v1755 = vand.u32 %v1754, 4294901760
      %1756 = vmatmul.mubr.f32.gmra.mrb[0].mxu0 %v1755
      %v1757 = vpop.f32.mrb[0].mxu0
      %v1758 = vadd.f32 0.0, %v1757
      %v1759 = vpop.f32.mrb[0].mxu0
      %v1760 = vadd.f32 0.0, %v1759
      %1761 = vdwg.mxu0
      %v1762 = vand.u32 %v1682, 4294901760
      %v1763 = vsub.f32 %v1682, %v1762
      %v1764 = vand.u32 %v1763, 4294901760
      %v1765 = vsub.f32 %v1763, %v1764
      %v1766 = vand.u32 %v1765, 4294901760
      %1767 = vmatprep.subr.mxu0 %v1766
      %v1768 = vand.u32 %v1680, 4294901760
      %v1769 = vsub.f32 %v1680, %v1768
      %v1770 = vand.u32 %v1769, 4294901760
      %v1771 = vsub.f32 %v1769, %v1770
      %v1772 = vand.u32 %v1771, 4294901760
      %1773 = vmatpush1.msra.mxu0 %v1772
      %1774 = vmatprep.subr.mxu0 0.0
      %1775 = vmatpush1.msra.mxu0 0.0
      %1776 = vmatprep.subr.mxu0 0.0
      %1777 = vmatpush1.msra.mxu0 0.0
      %1778 = vmatprep.subr.mxu0 0.0
      %1779 = vmatpush1.msra.mxu0 0.0
      %1780 = vmatprep.subr.mxu0 0.0
      %1781 = vmatpush1.msra.mxu0 0.0
      %1782 = vmatprep.subr.mxu0 0.0
      %1783 = vmatpush1.msra.mxu0 0.0
      %1784 = vmatprep.subr.mxu0 0.0
      %1785 = vmatpush1.msra.mxu0 0.0
      %1786 = vmatprep.subr.mxu0 0.0
      %1787 = vmatpush1.msra.mxu0 0.0
      %1788 = vmatprep.subr.mxu0 0.0
      %1789 = vmatpush1.msra.mxu0 0.0
      %1790 = vmatprep.subr.mxu0 0.0
      %1791 = vmatpush1.msra.mxu0 0.0
      %1792 = vmatprep.subr.mxu0 0.0
      %1793 = vmatpush1.msra.mxu0 0.0
      %1794 = vmatprep.subr.mxu0 0.0
      %1795 = vmatpush1.msra.mxu0 0.0
      %1796 = vmatprep.subr.mxu0 0.0
      %1797 = vmatpush1.msra.mxu0 0.0
      %1798 = vmatprep.subr.mxu0 0.0
      %1799 = vmatpush1.msra.mxu0 0.0
      %1800 = vmatprep.subr.mxu0 0.0
      %1801 = vmatpush1.msra.mxu0 0.0
      %1802 = vmatprep.subr.mxu0 0.0
      %1803 = vmatpush1.msra.mxu0 0.0
      %1804 = vmatprep.subr.mxu0 0.0
      %1805 = vmatpush1.msra.mxu0 0.0
      %1806 = vmatprep.subr.mxu0 0.0
      %1807 = vmatpush1.msra.mxu0 0.0
      %1808 = vmatprep.subr.mxu0 0.0
      %1809 = vmatpush1.msra.mxu0 0.0
      %1810 = vmatprep.subr.mxu0 0.0
      %1811 = vmatpush1.msra.mxu0 0.0
      %1812 = vmatprep.subr.mxu0 0.0
      %1813 = vmatpush1.msra.mxu0 0.0
      %1814 = vmatprep.subr.mxu0 0.0
      %1815 = vmatpush1.msra.mxu0 0.0
      %1816 = vmatprep.subr.mxu0 0.0
      %1817 = vmatpush1.msra.mxu0 0.0
      %1818 = vmatprep.subr.mxu0 0.0
      %1819 = vmatpush1.msra.mxu0 0.0
      %1820 = vmatprep.subr.mxu0 0.0
      %1821 = vmatpush1.msra.mxu0 0.0
      %1822 = vmatprep.subr.mxu0 0.0
      %1823 = vmatpush1.msra.mxu0 0.0
      %1824 = vmatprep.subr.mxu0 0.0
      %1825 = vmatpush1.msra.mxu0 0.0
      %1826 = vmatprep.subr.mxu0 0.0
      %1827 = vmatpush1.msra.mxu0 0.0
      %1828 = vmatprep.subr.mxu0 0.0
      %1829 = vmatpush1.msra.mxu0 0.0
      %1830 = vmatprep.subr.mxu0 0.0
      %1831 = vmatpush1.msra.mxu0 0.0
      %1832 = vmatprep.subr.mxu0 0.0
      %1833 = vmatpush1.msra.mxu0 0.0
      %1834 = vmatprep.subr.mxu0 0.0
      %1835 = vmatpush1.msra.mxu0 0.0
      %1836 = vmatprep.mubr.f32.mxu0 0.0
      %v1837 = vand.u32 %v1678, 4294901760
      %1838 = vmatmul.mubr.f32.gmra.mrb[0].mxu0 %v1837
      %v1839 = vpop.f32.mrb[0].mxu0
      %v1840 = vadd.f32 %v1758, %v1839
      %v1841 = vpop.f32.mrb[0].mxu0
      %v1842 = vadd.f32 %v1760, %v1841
      %1843 = vdwg.mxu0
      %v1844 = vand.u32 %v1682, 4294901760
      %v1845 = vsub.f32 %v1682, %v1844
      %1846 = vmatprep.subr.mxu0 %v1845
      %v1847 = vand.u32 %v1680, 4294901760
      %v1848 = vsub.f32 %v1680, %v1847
      %1849 = vmatpush1.msra.mxu0 %v1848
      %1850 = vmatprep.subr.mxu0 0.0
      %1851 = vmatpush1.msra.mxu0 0.0
      %1852 = vmatprep.subr.mxu0 0.0
      %1853 = vmatpush1.msra.mxu0 0.0
      %1854 = vmatprep.subr.mxu0 0.0
      %1855 = vmatpush1.msra.mxu0 0.0
      %1856 = vmatprep.subr.mxu0 0.0
      %1857 = vmatpush1.msra.mxu0 0.0
      %1858 = vmatprep.subr.mxu0 0.0
      %1859 = vmatpush1.msra.mxu0 0.0
      %1860 = vmatprep.subr.mxu0 0.0
      %1861 = vmatpush1.msra.mxu0 0.0
      %1862 = vmatprep.subr.mxu0 0.0
      %1863 = vmatpush1.msra.mxu0 0.0
      %1864 = vmatprep.subr.mxu0 0.0
      %1865 = vmatpush1.msra.mxu0 0.0
      %1866 = vmatprep.subr.mxu0 0.0
      %1867 = vmatpush1.msra.mxu0 0.0
      %1868 = vmatprep.subr.mxu0 0.0
      %1869 = vmatpush1.msra.mxu0 0.0
      %1870 = vmatprep.subr.mxu0 0.0
      %1871 = vmatpush1.msra.mxu0 0.0
      %1872 = vmatprep.subr.mxu0 0.0
      %1873 = vmatpush1.msra.mxu0 0.0
      %1874 = vmatprep.subr.mxu0 0.0
      %1875 = vmatpush1.msra.mxu0 0.0
      %1876 = vmatprep.subr.mxu0 0.0
      %1877 = vmatpush1.msra.mxu0 0.0
      %1878 = vmatprep.subr.mxu0 0.0
      %1879 = vmatpush1.msra.mxu0 0.0
      %1880 = vmatprep.subr.mxu0 0.0
      %1881 = vmatpush1.msra.mxu0 0.0
      %1882 = vmatprep.subr.mxu0 0.0
      %1883 = vmatpush1.msra.mxu0 0.0
      %1884 = vmatprep.subr.mxu0 0.0
      %1885 = vmatpush1.msra.mxu0 0.0
      %1886 = vmatprep.subr.mxu0 0.0
      %1887 = vmatpush1.msra.mxu0 0.0
      %1888 = vmatprep.subr.mxu0 0.0
      %1889 = vmatpush1.msra.mxu0 0.0
      %1890 = vmatprep.subr.mxu0 0.0
      %1891 = vmatpush1.msra.mxu0 0.0
      %1892 = vmatprep.subr.mxu0 0.0
      %1893 = vmatpush1.msra.mxu0 0.0
      %1894 = vmatprep.subr.mxu0 0.0
      %1895 = vmatpush1.msra.mxu0 0.0
      %1896 = vmatprep.subr.mxu0 0.0
      %1897 = vmatpush1.msra.mxu0 0.0
      %1898 = vmatprep.subr.mxu0 0.0
      %1899 = vmatpush1.msra.mxu0 0.0
      %1900 = vmatprep.subr.mxu0 0.0
      %1901 = vmatpush1.msra.mxu0 0.0
      %1902 = vmatprep.subr.mxu0 0.0
      %1903 = vmatpush1.msra.mxu0 0.0
      %1904 = vmatprep.subr.mxu0 0.0
      %1905 = vmatpush1.msra.mxu0 0.0
      %1906 = vmatprep.subr.mxu0 0.0
      %1907 = vmatpush1.msra.mxu0 0.0
      %1908 = vmatprep.subr.mxu0 0.0
      %1909 = vmatpush1.msra.mxu0 0.0
      %1910 = vmatprep.subr.mxu0 0.0
      %1911 = vmatpush1.msra.mxu0 0.0
      %1912 = vmatprep.mubr.f32.mxu0 0.0
      %v1913 = vand.u32 %v1678, 4294901760
      %v1914 = vsub.f32 %v1678, %v1913
      %1915 = vmatmul.mubr.f32.gmra.mrb[0].mxu0 %v1914
      %v1916 = vpop.f32.mrb[0].mxu0
      %v1917 = vadd.f32 %v1840, %v1916
      %v1918 = vpop.f32.mrb[0].mxu0
      %v1919 = vadd.f32 %v1842, %v1918
      %1920 = vdwg.mxu0
      %v1921 = vand.u32 %v1682, 4294901760
      %1922 = vmatprep.subr.mxu0 %v1921
      %v1923 = vand.u32 %v1680, 4294901760
      %1924 = vmatpush1.msra.mxu0 %v1923
      %1925 = vmatprep.subr.mxu0 0.0
      %1926 = vmatpush1.msra.mxu0 0.0
      %1927 = vmatprep.subr.mxu0 0.0
      %1928 = vmatpush1.msra.mxu0 0.0
      %1929 = vmatprep.subr.mxu0 0.0
      %1930 = vmatpush1.msra.mxu0 0.0
      %1931 = vmatprep.subr.mxu0 0.0
      %1932 = vmatpush1.msra.mxu0 0.0
      %1933 = vmatprep.subr.mxu0 0.0
      %1934 = vmatpush1.msra.mxu0 0.0
      %1935 = vmatprep.subr.mxu0 0.0
      %1936 = vmatpush1.msra.mxu0 0.0
      %1937 = vmatprep.subr.mxu0 0.0
      %1938 = vmatpush1.msra.mxu0 0.0
      %1939 = vmatprep.subr.mxu0 0.0
      %1940 = vmatpush1.msra.mxu0 0.0
      %1941 = vmatprep.subr.mxu0 0.0
      %1942 = vmatpush1.msra.mxu0 0.0
      %1943 = vmatprep.subr.mxu0 0.0
      %1944 = vmatpush1.msra.mxu0 0.0
      %1945 = vmatprep.subr.mxu0 0.0
      %1946 = vmatpush1.msra.mxu0 0.0
      %1947 = vmatprep.subr.mxu0 0.0
      %1948 = vmatpush1.msra.mxu0 0.0
      %1949 = vmatprep.subr.mxu0 0.0
      %1950 = vmatpush1.msra.mxu0 0.0
      %1951 = vmatprep.subr.mxu0 0.0
      %1952 = vmatpush1.msra.mxu0 0.0
      %1953 = vmatprep.subr.mxu0 0.0
      %1954 = vmatpush1.msra.mxu0 0.0
      %1955 = vmatprep.subr.mxu0 0.0
      %1956 = vmatpush1.msra.mxu0 0.0
      %1957 = vmatprep.subr.mxu0 0.0
      %1958 = vmatpush1.msra.mxu0 0.0
      %1959 = vmatprep.subr.mxu0 0.0
      %1960 = vmatpush1.msra.mxu0 0.0
      %1961 = vmatprep.subr.mxu0 0.0
      %1962 = vmatpush1.msra.mxu0 0.0
      %1963 = vmatprep.subr.mxu0 0.0
      %1964 = vmatpush1.msra.mxu0 0.0
      %1965 = vmatprep.subr.mxu0 0.0
      %1966 = vmatpush1.msra.mxu0 0.0
      %1967 = vmatprep.subr.mxu0 0.0
      %1968 = vmatpush1.msra.mxu0 0.0
      %1969 = vmatprep.subr.mxu0 0.0
      %1970 = vmatpush1.msra.mxu0 0.0
      %1971 = vmatprep.subr.mxu0 0.0
      %1972 = vmatpush1.msra.mxu0 0.0
      %1973 = vmatprep.subr.mxu0 0.0
      %1974 = vmatpush1.msra.mxu0 0.0
      %1975 = vmatprep.subr.mxu0 0.0
      %1976 = vmatpush1.msra.mxu0 0.0
      %1977 = vmatprep.subr.mxu0 0.0
      %1978 = vmatpush1.msra.mxu0 0.0
      %1979 = vmatprep.subr.mxu0 0.0
      %1980 = vmatpush1.msra.mxu0 0.0
      %1981 = vmatprep.subr.mxu0 0.0
      %1982 = vmatpush1.msra.mxu0 0.0
      %1983 = vmatprep.subr.mxu0 0.0
      %1984 = vmatpush1.msra.mxu0 0.0
      %1985 = vmatprep.subr.mxu0 0.0
      %1986 = vmatpush1.msra.mxu0 0.0
      %1987 = vmatprep.mubr.f32.mxu0 0.0
      %v1988 = vand.u32 %v1678, 4294901760
      %v1989 = vsub.f32 %v1678, %v1988
      %v1990 = vand.u32 %v1989, 4294901760
      %1991 = vmatmul.mubr.f32.gmra.mrb[0].mxu0 %v1990
      %v1992 = vpop.f32.mrb[0].mxu0
      %v1993 = vadd.f32 %v1917, %v1992
      %v1994 = vpop.f32.mrb[0].mxu0
      %v1995 = vadd.f32 %v1919, %v1994
      %1996 = vdwg.mxu0
      %v1997 = vand.u32 %v1682, 4294901760
      %v1998 = vsub.f32 %v1682, %v1997
      %v1999 = vand.u32 %v1998, 4294901760
      %2000 = vmatprep.subr.mxu0 %v1999
      %v2001 = vand.u32 %v1680, 4294901760
      %v2002 = vsub.f32 %v1680, %v2001
      %v2003 = vand.u32 %v2002, 4294901760
      %2004 = vmatpush1.msra.mxu0 %v2003
      %2005 = vmatprep.subr.mxu0 0.0
      %2006 = vmatpush1.msra.mxu0 0.0
      %2007 = vmatprep.subr.mxu0 0.0
      %2008 = vmatpush1.msra.mxu0 0.0
      %2009 = vmatprep.subr.mxu0 0.0
      %2010 = vmatpush1.msra.mxu0 0.0
      %2011 = vmatprep.subr.mxu0 0.0
      %2012 = vmatpush1.msra.mxu0 0.0
      %2013 = vmatprep.subr.mxu0 0.0
      %2014 = vmatpush1.msra.mxu0 0.0
      %2015 = vmatprep.subr.mxu0 0.0
      %2016 = vmatpush1.msra.mxu0 0.0
      %2017 = vmatprep.subr.mxu0 0.0
      %2018 = vmatpush1.msra.mxu0 0.0
      %2019 = vmatprep.subr.mxu0 0.0
      %2020 = vmatpush1.msra.mxu0 0.0
      %2021 = vmatprep.subr.mxu0 0.0
      %2022 = vmatpush1.msra.mxu0 0.0
      %2023 = vmatprep.subr.mxu0 0.0
      %2024 = vmatpush1.msra.mxu0 0.0
      %2025 = vmatprep.subr.mxu0 0.0
      %2026 = vmatpush1.msra.mxu0 0.0
      %2027 = vmatprep.subr.mxu0 0.0
      %2028 = vmatpush1.msra.mxu0 0.0
      %2029 = vmatprep.subr.mxu0 0.0
      %2030 = vmatpush1.msra.mxu0 0.0
      %2031 = vmatprep.subr.mxu0 0.0
      %2032 = vmatpush1.msra.mxu0 0.0
      %2033 = vmatprep.subr.mxu0 0.0
      %2034 = vmatpush1.msra.mxu0 0.0
      %2035 = vmatprep.subr.mxu0 0.0
      %2036 = vmatpush1.msra.mxu0 0.0
      %2037 = vmatprep.subr.mxu0 0.0
      %2038 = vmatpush1.msra.mxu0 0.0
      %2039 = vmatprep.subr.mxu0 0.0
      %2040 = vmatpush1.msra.mxu0 0.0
      %2041 = vmatprep.subr.mxu0 0.0
      %2042 = vmatpush1.msra.mxu0 0.0
      %2043 = vmatprep.subr.mxu0 0.0
      %2044 = vmatpush1.msra.mxu0 0.0
      %2045 = vmatprep.subr.mxu0 0.0
      %2046 = vmatpush1.msra.mxu0 0.0
      %2047 = vmatprep.subr.mxu0 0.0
      %2048 = vmatpush1.msra.mxu0 0.0
      %2049 = vmatprep.subr.mxu0 0.0
      %2050 = vmatpush1.msra.mxu0 0.0
      %2051 = vmatprep.subr.mxu0 0.0
      %2052 = vmatpush1.msra.mxu0 0.0
      %2053 = vmatprep.subr.mxu0 0.0
      %2054 = vmatpush1.msra.mxu0 0.0
      %2055 = vmatprep.subr.mxu0 0.0
      %2056 = vmatpush1.msra.mxu0 0.0
      %2057 = vmatprep.subr.mxu0 0.0
      %2058 = vmatpush1.msra.mxu0 0.0
      %2059 = vmatprep.subr.mxu0 0.0
      %2060 = vmatpush1.msra.mxu0 0.0
      %2061 = vmatprep.subr.mxu0 0.0
      %2062 = vmatpush1.msra.mxu0 0.0
      %2063 = vmatprep.subr.mxu0 0.0
      %2064 = vmatpush1.msra.mxu0 0.0
      %2065 = vmatprep.subr.mxu0 0.0
      %2066 = vmatpush1.msra.mxu0 0.0
      %2067 = vmatprep.mubr.f32.mxu0 0.0
      %v2068 = vand.u32 %v1678, 4294901760
      %2069 = vmatmul.mubr.f32.gmra.mrb[0].mxu0 %v2068
      %v2070 = vpop.f32.mrb[0].mxu0
      %v2071 = vadd.f32 %v1993, %v2070
      %v2072 = vpop.f32.mrb[0].mxu0
      %v2073 = vadd.f32 %v1995, %v2072
      %2074 = vdwg.mxu0
      %v2075 = vand.u32 %v1682, 4294901760
      %2076 = vmatprep.subr.mxu0 %v2075
      %v2077 = vand.u32 %v1680, 4294901760
      %2078 = vmatpush1.msra.mxu0 %v2077
      %2079 = vmatprep.subr.mxu0 0.0
      %2080 = vmatpush1.msra.mxu0 0.0
      %2081 = vmatprep.subr.mxu0 0.0
      %2082 = vmatpush1.msra.mxu0 0.0
      %2083 = vmatprep.subr.mxu0 0.0
      %2084 = vmatpush1.msra.mxu0 0.0
      %2085 = vmatprep.subr.mxu0 0.0
      %2086 = vmatpush1.msra.mxu0 0.0
      %2087 = vmatprep.subr.mxu0 0.0
      %2088 = vmatpush1.msra.mxu0 0.0
      %2089 = vmatprep.subr.mxu0 0.0
      %2090 = vmatpush1.msra.mxu0 0.0
      %2091 = vmatprep.subr.mxu0 0.0
      %2092 = vmatpush1.msra.mxu0 0.0
      %2093 = vmatprep.subr.mxu0 0.0
      %2094 = vmatpush1.msra.mxu0 0.0
      %2095 = vmatprep.subr.mxu0 0.0
      %2096 = vmatpush1.msra.mxu0 0.0
      %2097 = vmatprep.subr.mxu0 0.0
      %2098 = vmatpush1.msra.mxu0 0.0
      %2099 = vmatprep.subr.mxu0 0.0
      %2100 = vmatpush1.msra.mxu0 0.0
      %2101 = vmatprep.subr.mxu0 0.0
      %2102 = vmatpush1.msra.mxu0 0.0
      %2103 = vmatprep.subr.mxu0 0.0
      %2104 = vmatpush1.msra.mxu0 0.0
      %2105 = vmatprep.subr.mxu0 0.0
      %2106 = vmatpush1.msra.mxu0 0.0
      %2107 = vmatprep.subr.mxu0 0.0
      %2108 = vmatpush1.msra.mxu0 0.0
      %2109 = vmatprep.subr.mxu0 0.0
      %2110 = vmatpush1.msra.mxu0 0.0
      %2111 = vmatprep.subr.mxu0 0.0
      %2112 = vmatpush1.msra.mxu0 0.0
      %2113 = vmatprep.subr.mxu0 0.0
      %2114 = vmatpush1.msra.mxu0 0.0
      %2115 = vmatprep.subr.mxu0 0.0
      %2116 = vmatpush1.msra.mxu0 0.0
      %2117 = vmatprep.subr.mxu0 0.0
      %2118 = vmatpush1.msra.mxu0 0.0
      %2119 = vmatprep.subr.mxu0 0.0
      %2120 = vmatpush1.msra.mxu0 0.0
      %2121 = vmatprep.subr.mxu0 0.0
      %2122 = vmatpush1.msra.mxu0 0.0
      %2123 = vmatprep.subr.mxu0 0.0
      %2124 = vmatpush1.msra.mxu0 0.0
      %2125 = vmatprep.subr.mxu0 0.0
      %2126 = vmatpush1.msra.mxu0 0.0
      %2127 = vmatprep.subr.mxu0 0.0
      %2128 = vmatpush1.msra.mxu0 0.0
      %2129 = vmatprep.subr.mxu0 0.0
      %2130 = vmatpush1.msra.mxu0 0.0
      %2131 = vmatprep.subr.mxu0 0.0
      %2132 = vmatpush1.msra.mxu0 0.0
      %2133 = vmatprep.subr.mxu0 0.0
      %2134 = vmatpush1.msra.mxu0 0.0
      %2135 = vmatprep.subr.mxu0 0.0
      %2136 = vmatpush1.msra.mxu0 0.0
      %2137 = vmatprep.subr.mxu0 0.0
      %2138 = vmatpush1.msra.mxu0 0.0
      %2139 = vmatprep.subr.mxu0 0.0
      %2140 = vmatpush1.msra.mxu0 0.0
      %2141 = vmatprep.mubr.f32.mxu0 0.0
      %v2142 = vand.u32 %v1678, 4294901760
      %2143 = vmatmul.mubr.f32.gmra.mrb[0].mxu0 %v2142
      %v2144 = vpop.f32.mrb[0].mxu0
      %v2145 = vadd.f32 %v2071, %v2144
      %v2146 = vpop.f32.mrb[0].mxu0
      %v2147 = vadd.f32 %v2073, %v2146
      %2148 = vdwg.mxu0
      %v2151 = vcombine.high %v1668, %v1668
      %2152 = vrot.lane.b32.xlu0 %v1668, 16
      %v2153 = vpop.permute.xlu0 %2152
      %2154 = vrot.lane.b32.xlu0 %v2151, 16
      %v2155 = vpop.permute.xlu0 %2154
      %2156 = vrot.lane.b32.xlu0 %v1669, 16
      %v2157 = vpop.permute.xlu0 %2156
      %vm2158 = vcmask 130048
      %v2159 = vsel %vm2158, %v2153, %v2155
      %v2160 = vsel %vm2158, %v2155, %v2157
      %v2162 = vsel %vm223, %v1671, 0
      %v2164 = vsel %vm227, %v2159, 0
      %v2166 = vsel %vm227, %v2160, 0
      %v2168 = vand.u32 %v2166, 4294901760
      %2169 = vmatprep.subr.mxu0 %v2168
      %v2170 = vand.u32 %v2164, 4294901760
      %2171 = vmatpush1.msra.mxu0 %v2170
      %2172 = vmatprep.subr.mxu0 0.0
      %2173 = vmatpush1.msra.mxu0 0.0
      %2174 = vmatprep.subr.mxu0 0.0
      %2175 = vmatpush1.msra.mxu0 0.0
      %2176 = vmatprep.subr.mxu0 0.0
      %2177 = vmatpush1.msra.mxu0 0.0
      %2178 = vmatprep.subr.mxu0 0.0
      %2179 = vmatpush1.msra.mxu0 0.0
      %2180 = vmatprep.subr.mxu0 0.0
      %2181 = vmatpush1.msra.mxu0 0.0
      %2182 = vmatprep.subr.mxu0 0.0
      %2183 = vmatpush1.msra.mxu0 0.0
      %2184 = vmatprep.subr.mxu0 0.0
      %2185 = vmatpush1.msra.mxu0 0.0
      %2186 = vmatprep.subr.mxu0 0.0
      %2187 = vmatpush1.msra.mxu0 0.0
      %2188 = vmatprep.subr.mxu0 0.0
      %2189 = vmatpush1.msra.mxu0 0.0
      %2190 = vmatprep.subr.mxu0 0.0
      %2191 = vmatpush1.msra.mxu0 0.0
      %2192 = vmatprep.subr.mxu0 0.0
      %2193 = vmatpush1.msra.mxu0 0.0
      %2194 = vmatprep.subr.mxu0 0.0
      %2195 = vmatpush1.msra.mxu0 0.0
      %2196 = vmatprep.subr.mxu0 0.0
      %2197 = vmatpush1.msra.mxu0 0.0
      %2198 = vmatprep.subr.mxu0 0.0
      %2199 = vmatpush1.msra.mxu0 0.0
      %2200 = vmatprep.subr.mxu0 0.0
      %2201 = vmatpush1.msra.mxu0 0.0
      %2202 = vmatprep.subr.mxu0 0.0
      %2203 = vmatpush1.msra.mxu0 0.0
      %2204 = vmatprep.subr.mxu0 0.0
      %2205 = vmatpush1.msra.mxu0 0.0
      %2206 = vmatprep.subr.mxu0 0.0
      %2207 = vmatpush1.msra.mxu0 0.0
      %2208 = vmatprep.subr.mxu0 0.0
      %2209 = vmatpush1.msra.mxu0 0.0
      %2210 = vmatprep.subr.mxu0 0.0
      %2211 = vmatpush1.msra.mxu0 0.0
      %2212 = vmatprep.subr.mxu0 0.0
      %2213 = vmatpush1.msra.mxu0 0.0
      %2214 = vmatprep.subr.mxu0 0.0
      %2215 = vmatpush1.msra.mxu0 0.0
      %2216 = vmatprep.subr.mxu0 0.0
      %2217 = vmatpush1.msra.mxu0 0.0
      %2218 = vmatprep.subr.mxu0 0.0
      %2219 = vmatpush1.msra.mxu0 0.0
      %2220 = vmatprep.subr.mxu0 0.0
      %2221 = vmatpush1.msra.mxu0 0.0
      %2222 = vmatprep.subr.mxu0 0.0
      %2223 = vmatpush1.msra.mxu0 0.0
      %2224 = vmatprep.subr.mxu0 0.0
      %2225 = vmatpush1.msra.mxu0 0.0
      %2226 = vmatprep.subr.mxu0 0.0
      %2227 = vmatpush1.msra.mxu0 0.0
      %2228 = vmatprep.subr.mxu0 0.0
      %2229 = vmatpush1.msra.mxu0 0.0
      %2230 = vmatprep.subr.mxu0 0.0
      %2231 = vmatpush1.msra.mxu0 0.0
      %2232 = vmatprep.subr.mxu0 0.0
      %2233 = vmatpush1.msra.mxu0 0.0
      %2234 = vmatprep.mubr.f32.mxu0 0.0
      %v2235 = vand.u32 %v2162, 4294901760
      %v2236 = vsub.f32 %v2162, %v2235
      %v2237 = vand.u32 %v2236, 4294901760
      %v2238 = vsub.f32 %v2236, %v2237
      %v2239 = vand.u32 %v2238, 4294901760
      %2240 = vmatmul.mubr.f32.gmra.mrb[0].mxu0 %v2239
      %v2241 = vpop.f32.mrb[0].mxu0
      %v2242 = vadd.f32 %v2145, %v2241
      %v2243 = vpop.f32.mrb[0].mxu0
      %v2244 = vadd.f32 %v2147, %v2243
      %2245 = vdwg.mxu0
      %v2246 = vand.u32 %v2166, 4294901760
      %v2247 = vsub.f32 %v2166, %v2246
      %v2248 = vand.u32 %v2247, 4294901760
      %v2249 = vsub.f32 %v2247, %v2248
      %v2250 = vand.u32 %v2249, 4294901760
      %2251 = vmatprep.subr.mxu0 %v2250
      %v2252 = vand.u32 %v2164, 4294901760
      %v2253 = vsub.f32 %v2164, %v2252
      %v2254 = vand.u32 %v2253, 4294901760
      %v2255 = vsub.f32 %v2253, %v2254
      %v2256 = vand.u32 %v2255, 4294901760
      %2257 = vmatpush1.msra.mxu0 %v2256
      %2258 = vmatprep.subr.mxu0 0.0
      %2259 = vmatpush1.msra.mxu0 0.0
      %2260 = vmatprep.subr.mxu0 0.0
      %2261 = vmatpush1.msra.mxu0 0.0
      %2262 = vmatprep.subr.mxu0 0.0
      %2263 = vmatpush1.msra.mxu0 0.0
      %2264 = vmatprep.subr.mxu0 0.0
      %2265 = vmatpush1.msra.mxu0 0.0
      %2266 = vmatprep.subr.mxu0 0.0
      %2267 = vmatpush1.msra.mxu0 0.0
      %2268 = vmatprep.subr.mxu0 0.0
      %2269 = vmatpush1.msra.mxu0 0.0
      %2270 = vmatprep.subr.mxu0 0.0
      %2271 = vmatpush1.msra.mxu0 0.0
      %2272 = vmatprep.subr.mxu0 0.0
      %2273 = vmatpush1.msra.mxu0 0.0
      %2274 = vmatprep.subr.mxu0 0.0
      %2275 = vmatpush1.msra.mxu0 0.0
      %2276 = vmatprep.subr.mxu0 0.0
      %2277 = vmatpush1.msra.mxu0 0.0
      %2278 = vmatprep.subr.mxu0 0.0
      %2279 = vmatpush1.msra.mxu0 0.0
      %2280 = vmatprep.subr.mxu0 0.0
      %2281 = vmatpush1.msra.mxu0 0.0
      %2282 = vmatprep.subr.mxu0 0.0
      %2283 = vmatpush1.msra.mxu0 0.0
      %2284 = vmatprep.subr.mxu0 0.0
      %2285 = vmatpush1.msra.mxu0 0.0
      %2286 = vmatprep.subr.mxu0 0.0
      %2287 = vmatpush1.msra.mxu0 0.0
      %2288 = vmatprep.subr.mxu0 0.0
      %2289 = vmatpush1.msra.mxu0 0.0
      %2290 = vmatprep.subr.mxu0 0.0
      %2291 = vmatpush1.msra.mxu0 0.0
      %2292 = vmatprep.subr.mxu0 0.0
      %2293 = vmatpush1.msra.mxu0 0.0
      %2294 = vmatprep.subr.mxu0 0.0
      %2295 = vmatpush1.msra.mxu0 0.0
      %2296 = vmatprep.subr.mxu0 0.0
      %2297 = vmatpush1.msra.mxu0 0.0
      %2298 = vmatprep.subr.mxu0 0.0
      %2299 = vmatpush1.msra.mxu0 0.0
      %2300 = vmatprep.subr.mxu0 0.0
      %2301 = vmatpush1.msra.mxu0 0.0
      %2302 = vmatprep.subr.mxu0 0.0
      %2303 = vmatpush1.msra.mxu0 0.0
      %2304 = vmatprep.subr.mxu0 0.0
      %2305 = vmatpush1.msra.mxu0 0.0
      %2306 = vmatprep.subr.mxu0 0.0
      %2307 = vmatpush1.msra.mxu0 0.0
      %2308 = vmatprep.subr.mxu0 0.0
      %2309 = vmatpush1.msra.mxu0 0.0
      %2310 = vmatprep.subr.mxu0 0.0
      %2311 = vmatpush1.msra.mxu0 0.0
      %2312 = vmatprep.subr.mxu0 0.0
      %2313 = vmatpush1.msra.mxu0 0.0
      %2314 = vmatprep.subr.mxu0 0.0
      %2315 = vmatpush1.msra.mxu0 0.0
      %2316 = vmatprep.subr.mxu0 0.0
      %2317 = vmatpush1.msra.mxu0 0.0
      %2318 = vmatprep.subr.mxu0 0.0
      %2319 = vmatpush1.msra.mxu0 0.0
      %2320 = vmatprep.mubr.f32.mxu0 0.0
      %v2321 = vand.u32 %v2162, 4294901760
      %2322 = vmatmul.mubr.f32.gmra.mrb[0].mxu0 %v2321
      %v2323 = vpop.f32.mrb[0].mxu0
      %v2324 = vadd.f32 %v2242, %v2323
      %v2325 = vpop.f32.mrb[0].mxu0
      %v2326 = vadd.f32 %v2244, %v2325
      %2327 = vdwg.mxu0
      %v2328 = vand.u32 %v2166, 4294901760
      %v2329 = vsub.f32 %v2166, %v2328
      %2330 = vmatprep.subr.mxu0 %v2329
      %v2331 = vand.u32 %v2164, 4294901760
      %v2332 = vsub.f32 %v2164, %v2331
      %2333 = vmatpush1.msra.mxu0 %v2332
      %2334 = vmatprep.subr.mxu0 0.0
      %2335 = vmatpush1.msra.mxu0 0.0
      %2336 = vmatprep.subr.mxu0 0.0
      %2337 = vmatpush1.msra.mxu0 0.0
      %2338 = vmatprep.subr.mxu0 0.0
      %2339 = vmatpush1.msra.mxu0 0.0
      %2340 = vmatprep.subr.mxu0 0.0
      %2341 = vmatpush1.msra.mxu0 0.0
      %2342 = vmatprep.subr.mxu0 0.0
      %2343 = vmatpush1.msra.mxu0 0.0
      %2344 = vmatprep.subr.mxu0 0.0
      %2345 = vmatpush1.msra.mxu0 0.0
      %2346 = vmatprep.subr.mxu0 0.0
      %2347 = vmatpush1.msra.mxu0 0.0
      %2348 = vmatprep.subr.mxu0 0.0
      %2349 = vmatpush1.msra.mxu0 0.0
      %2350 = vmatprep.subr.mxu0 0.0
      %2351 = vmatpush1.msra.mxu0 0.0
      %2352 = vmatprep.subr.mxu0 0.0
      %2353 = vmatpush1.msra.mxu0 0.0
      %2354 = vmatprep.subr.mxu0 0.0
      %2355 = vmatpush1.msra.mxu0 0.0
      %2356 = vmatprep.subr.mxu0 0.0
      %2357 = vmatpush1.msra.mxu0 0.0
      %2358 = vmatprep.subr.mxu0 0.0
      %2359 = vmatpush1.msra.mxu0 0.0
      %2360 = vmatprep.subr.mxu0 0.0
      %2361 = vmatpush1.msra.mxu0 0.0
      %2362 = vmatprep.subr.mxu0 0.0
      %2363 = vmatpush1.msra.mxu0 0.0
      %2364 = vmatprep.subr.mxu0 0.0
      %2365 = vmatpush1.msra.mxu0 0.0
      %2366 = vmatprep.subr.mxu0 0.0
      %2367 = vmatpush1.msra.mxu0 0.0
      %2368 = vmatprep.subr.mxu0 0.0
      %2369 = vmatpush1.msra.mxu0 0.0
      %2370 = vmatprep.subr.mxu0 0.0
      %2371 = vmatpush1.msra.mxu0 0.0
      %2372 = vmatprep.subr.mxu0 0.0
      %2373 = vmatpush1.msra.mxu0 0.0
      %2374 = vmatprep.subr.mxu0 0.0
      %2375 = vmatpush1.msra.mxu0 0.0
      %2376 = vmatprep.subr.mxu0 0.0
      %2377 = vmatpush1.msra.mxu0 0.0
      %2378 = vmatprep.subr.mxu0 0.0
      %2379 = vmatpush1.msra.mxu0 0.0
      %2380 = vmatprep.subr.mxu0 0.0
      %2381 = vmatpush1.msra.mxu0 0.0
      %2382 = vmatprep.subr.mxu0 0.0
      %2383 = vmatpush1.msra.mxu0 0.0
      %2384 = vmatprep.subr.mxu0 0.0
      %2385 = vmatpush1.msra.mxu0 0.0
      %2386 = vmatprep.subr.mxu0 0.0
      %2387 = vmatpush1.msra.mxu0 0.0
      %2388 = vmatprep.subr.mxu0 0.0
      %2389 = vmatpush1.msra.mxu0 0.0
      %2390 = vmatprep.subr.mxu0 0.0
      %2391 = vmatpush1.msra.mxu0 0.0
      %2392 = vmatprep.subr.mxu0 0.0
      %2393 = vmatpush1.msra.mxu0 0.0
      %2394 = vmatprep.subr.mxu0 0.0
      %2395 = vmatpush1.msra.mxu0 0.0
      %2396 = vmatprep.mubr.f32.mxu0 0.0
      %v2397 = vand.u32 %v2162, 4294901760
      %v2398 = vsub.f32 %v2162, %v2397
      %2399 = vmatmul.mubr.f32.gmra.mrb[0].mxu0 %v2398
      %v2400 = vpop.f32.mrb[0].mxu0
      %v2401 = vadd.f32 %v2324, %v2400
      %v2402 = vpop.f32.mrb[0].mxu0
      %v2403 = vadd.f32 %v2326, %v2402
      %2404 = vdwg.mxu0
      %v2405 = vand.u32 %v2166, 4294901760
      %2406 = vmatprep.subr.mxu0 %v2405
      %v2407 = vand.u32 %v2164, 4294901760
      %2408 = vmatpush1.msra.mxu0 %v2407
      %2409 = vmatprep.subr.mxu0 0.0
      %2410 = vmatpush1.msra.mxu0 0.0
      %2411 = vmatprep.subr.mxu0 0.0
      %2412 = vmatpush1.msra.mxu0 0.0
      %2413 = vmatprep.subr.mxu0 0.0
      %2414 = vmatpush1.msra.mxu0 0.0
      %2415 = vmatprep.subr.mxu0 0.0
      %2416 = vmatpush1.msra.mxu0 0.0
      %2417 = vmatprep.subr.mxu0 0.0
      %2418 = vmatpush1.msra.mxu0 0.0
      %2419 = vmatprep.subr.mxu0 0.0
      %2420 = vmatpush1.msra.mxu0 0.0
      %2421 = vmatprep.subr.mxu0 0.0
      %2422 = vmatpush1.msra.mxu0 0.0
      %2423 = vmatprep.subr.mxu0 0.0
      %2424 = vmatpush1.msra.mxu0 0.0
      %2425 = vmatprep.subr.mxu0 0.0
      %2426 = vmatpush1.msra.mxu0 0.0
      %2427 = vmatprep.subr.mxu0 0.0
      %2428 = vmatpush1.msra.mxu0 0.0
      %2429 = vmatprep.subr.mxu0 0.0
      %2430 = vmatpush1.msra.mxu0 0.0
      %2431 = vmatprep.subr.mxu0 0.0
      %2432 = vmatpush1.msra.mxu0 0.0
      %2433 = vmatprep.subr.mxu0 0.0
      %2434 = vmatpush1.msra.mxu0 0.0
      %2435 = vmatprep.subr.mxu0 0.0
      %2436 = vmatpush1.msra.mxu0 0.0
      %2437 = vmatprep.subr.mxu0 0.0
      %2438 = vmatpush1.msra.mxu0 0.0
      %2439 = vmatprep.subr.mxu0 0.0
      %2440 = vmatpush1.msra.mxu0 0.0
      %2441 = vmatprep.subr.mxu0 0.0
      %2442 = vmatpush1.msra.mxu0 0.0
      %2443 = vmatprep.subr.mxu0 0.0
      %2444 = vmatpush1.msra.mxu0 0.0
      %2445 = vmatprep.subr.mxu0 0.0
      %2446 = vmatpush1.msra.mxu0 0.0
      %2447 = vmatprep.subr.mxu0 0.0
      %2448 = vmatpush1.msra.mxu0 0.0
      %2449 = vmatprep.subr.mxu0 0.0
      %2450 = vmatpush1.msra.mxu0 0.0
      %2451 = vmatprep.subr.mxu0 0.0
      %2452 = vmatpush1.msra.mxu0 0.0
      %2453 = vmatprep.subr.mxu0 0.0
      %2454 = vmatpush1.msra.mxu0 0.0
      %2455 = vmatprep.subr.mxu0 0.0
      %2456 = vmatpush1.msra.mxu0 0.0
      %2457 = vmatprep.subr.mxu0 0.0
      %2458 = vmatpush1.msra.mxu0 0.0
      %2459 = vmatprep.subr.mxu0 0.0
      %2460 = vmatpush1.msra.mxu0 0.0
      %2461 = vmatprep.subr.mxu0 0.0
      %2462 = vmatpush1.msra.mxu0 0.0
      %2463 = vmatprep.subr.mxu0 0.0
      %2464 = vmatpush1.msra.mxu0 0.0
      %2465 = vmatprep.subr.mxu0 0.0
      %2466 = vmatpush1.msra.mxu0 0.0
      %2467 = vmatprep.subr.mxu0 0.0
      %2468 = vmatpush1.msra.mxu0 0.0
      %2469 = vmatprep.subr.mxu0 0.0
      %2470 = vmatpush1.msra.mxu0 0.0
      %2471 = vmatprep.mubr.f32.mxu0 0.0
      %v2472 = vand.u32 %v2162, 4294901760
      %v2473 = vsub.f32 %v2162, %v2472
      %v2474 = vand.u32 %v2473, 4294901760
      %2475 = vmatmul.mubr.f32.gmra.mrb[0].mxu0 %v2474
      %v2476 = vpop.f32.mrb[0].mxu0
      %v2477 = vadd.f32 %v2401, %v2476
      %v2478 = vpop.f32.mrb[0].mxu0
      %v2479 = vadd.f32 %v2403, %v2478
      %2480 = vdwg.mxu0
      %v2481 = vand.u32 %v2166, 4294901760
      %v2482 = vsub.f32 %v2166, %v2481
      %v2483 = vand.u32 %v2482, 4294901760
      %2484 = vmatprep.subr.mxu0 %v2483
      %v2485 = vand.u32 %v2164, 4294901760
      %v2486 = vsub.f32 %v2164, %v2485
      %v2487 = vand.u32 %v2486, 4294901760
      %2488 = vmatpush1.msra.mxu0 %v2487
      %2489 = vmatprep.subr.mxu0 0.0
      %2490 = vmatpush1.msra.mxu0 0.0
      %2491 = vmatprep.subr.mxu0 0.0
      %2492 = vmatpush1.msra.mxu0 0.0
      %2493 = vmatprep.subr.mxu0 0.0
      %2494 = vmatpush1.msra.mxu0 0.0
      %2495 = vmatprep.subr.mxu0 0.0
      %2496 = vmatpush1.msra.mxu0 0.0
      %2497 = vmatprep.subr.mxu0 0.0
      %2498 = vmatpush1.msra.mxu0 0.0
      %2499 = vmatprep.subr.mxu0 0.0
      %2500 = vmatpush1.msra.mxu0 0.0
      %2501 = vmatprep.subr.mxu0 0.0
      %2502 = vmatpush1.msra.mxu0 0.0
      %2503 = vmatprep.subr.mxu0 0.0
      %2504 = vmatpush1.msra.mxu0 0.0
      %2505 = vmatprep.subr.mxu0 0.0
      %2506 = vmatpush1.msra.mxu0 0.0
      %2507 = vmatprep.subr.mxu0 0.0
      %2508 = vmatpush1.msra.mxu0 0.0
      %2509 = vmatprep.subr.mxu0 0.0
      %2510 = vmatpush1.msra.mxu0 0.0
      %2511 = vmatprep.subr.mxu0 0.0
      %2512 = vmatpush1.msra.mxu0 0.0
      %2513 = vmatprep.subr.mxu0 0.0
      %2514 = vmatpush1.msra.mxu0 0.0
      %2515 = vmatprep.subr.mxu0 0.0
      %2516 = vmatpush1.msra.mxu0 0.0
      %2517 = vmatprep.subr.mxu0 0.0
      %2518 = vmatpush1.msra.mxu0 0.0
      %2519 = vmatprep.subr.mxu0 0.0
      %2520 = vmatpush1.msra.mxu0 0.0
      %2521 = vmatprep.subr.mxu0 0.0
      %2522 = vmatpush1.msra.mxu0 0.0
      %2523 = vmatprep.subr.mxu0 0.0
      %2524 = vmatpush1.msra.mxu0 0.0
      %2525 = vmatprep.subr.mxu0 0.0
      %2526 = vmatpush1.msra.mxu0 0.0
      %2527 = vmatprep.subr.mxu0 0.0
      %2528 = vmatpush1.msra.mxu0 0.0
      %2529 = vmatprep.subr.mxu0 0.0
      %2530 = vmatpush1.msra.mxu0 0.0
      %2531 = vmatprep.subr.mxu0 0.0
      %2532 = vmatpush1.msra.mxu0 0.0
      %2533 = vmatprep.subr.mxu0 0.0
      %2534 = vmatpush1.msra.mxu0 0.0
      %2535 = vmatprep.subr.mxu0 0.0
      %2536 = vmatpush1.msra.mxu0 0.0
      %2537 = vmatprep.subr.mxu0 0.0
      %2538 = vmatpush1.msra.mxu0 0.0
      %2539 = vmatprep.subr.mxu0 0.0
      %2540 = vmatpush1.msra.mxu0 0.0
      %2541 = vmatprep.subr.mxu0 0.0
      %2542 = vmatpush1.msra.mxu0 0.0
      %2543 = vmatprep.subr.mxu0 0.0
      %2544 = vmatpush1.msra.mxu0 0.0
      %2545 = vmatprep.subr.mxu0 0.0
      %2546 = vmatpush1.msra.mxu0 0.0
      %2547 = vmatprep.subr.mxu0 0.0
      %2548 = vmatpush1.msra.mxu0 0.0
      %2549 = vmatprep.subr.mxu0 0.0
      %2550 = vmatpush1.msra.mxu0 0.0
      %2551 = vmatprep.mubr.f32.mxu0 0.0
      %v2552 = vand.u32 %v2162, 4294901760
      %2553 = vmatmul.mubr.f32.gmra.mrb[0].mxu0 %v2552
      %v2554 = vpop.f32.mrb[0].mxu0
      %v2555 = vadd.f32 %v2477, %v2554
      %v2556 = vpop.f32.mrb[0].mxu0
      %v2557 = vadd.f32 %v2479, %v2556
      %2558 = vdwg.mxu0
      %v2559 = vand.u32 %v2166, 4294901760
      %2560 = vmatprep.subr.mxu0 %v2559
      %v2561 = vand.u32 %v2164, 4294901760
      %2562 = vmatpush1.msra.mxu0 %v2561
      %2563 = vmatprep.subr.mxu0 0.0
      %2564 = vmatpush1.msra.mxu0 0.0
      %2565 = vmatprep.subr.mxu0 0.0
      %2566 = vmatpush1.msra.mxu0 0.0
      %2567 = vmatprep.subr.mxu0 0.0
      %2568 = vmatpush1.msra.mxu0 0.0
      %2569 = vmatprep.subr.mxu0 0.0
      %2570 = vmatpush1.msra.mxu0 0.0
      %2571 = vmatprep.subr.mxu0 0.0
      %2572 = vmatpush1.msra.mxu0 0.0
      %2573 = vmatprep.subr.mxu0 0.0
      %2574 = vmatpush1.msra.mxu0 0.0
      %2575 = vmatprep.subr.mxu0 0.0
      %2576 = vmatpush1.msra.mxu0 0.0
      %2577 = vmatprep.subr.mxu0 0.0
      %2578 = vmatpush1.msra.mxu0 0.0
      %2579 = vmatprep.subr.mxu0 0.0
      %2580 = vmatpush1.msra.mxu0 0.0
      %2581 = vmatprep.subr.mxu0 0.0
      %2582 = vmatpush1.msra.mxu0 0.0
      %2583 = vmatprep.subr.mxu0 0.0
      %2584 = vmatpush1.msra.mxu0 0.0
      %2585 = vmatprep.subr.mxu0 0.0
      %2586 = vmatpush1.msra.mxu0 0.0
      %2587 = vmatprep.subr.mxu0 0.0
      %2588 = vmatpush1.msra.mxu0 0.0
      %2589 = vmatprep.subr.mxu0 0.0
      %2590 = vmatpush1.msra.mxu0 0.0
      %2591 = vmatprep.subr.mxu0 0.0
      %2592 = vmatpush1.msra.mxu0 0.0
      %2593 = vmatprep.subr.mxu0 0.0
      %2594 = vmatpush1.msra.mxu0 0.0
      %2595 = vmatprep.subr.mxu0 0.0
      %2596 = vmatpush1.msra.mxu0 0.0
      %2597 = vmatprep.subr.mxu0 0.0
      %2598 = vmatpush1.msra.mxu0 0.0
      %2599 = vmatprep.subr.mxu0 0.0
      %2600 = vmatpush1.msra.mxu0 0.0
      %2601 = vmatprep.subr.mxu0 0.0
      %2602 = vmatpush1.msra.mxu0 0.0
      %2603 = vmatprep.subr.mxu0 0.0
      %2604 = vmatpush1.msra.mxu0 0.0
      %2605 = vmatprep.subr.mxu0 0.0
      %2606 = vmatpush1.msra.mxu0 0.0
      %2607 = vmatprep.subr.mxu0 0.0
      %2608 = vmatpush1.msra.mxu0 0.0
      %2609 = vmatprep.subr.mxu0 0.0
      %2610 = vmatpush1.msra.mxu0 0.0
      %2611 = vmatprep.subr.mxu0 0.0
      %2612 = vmatpush1.msra.mxu0 0.0
      %2613 = vmatprep.subr.mxu0 0.0
      %2614 = vmatpush1.msra.mxu0 0.0
      %2615 = vmatprep.subr.mxu0 0.0
      %2616 = vmatpush1.msra.mxu0 0.0
      %2617 = vmatprep.subr.mxu0 0.0
      %2618 = vmatpush1.msra.mxu0 0.0
      %2619 = vmatprep.subr.mxu0 0.0
      %2620 = vmatpush1.msra.mxu0 0.0
      %2621 = vmatprep.subr.mxu0 0.0
      %2622 = vmatpush1.msra.mxu0 0.0
      %2623 = vmatprep.subr.mxu0 0.0
      %2624 = vmatpush1.msra.mxu0 0.0
      %2625 = vmatprep.mubr.f32.mxu0 0.0
      %v2626 = vand.u32 %v2162, 4294901760
      %2627 = vmatmul.mubr.f32.gmra.mrb[0].mxu0 %v2626
      %v2628 = vpop.f32.mrb[0].mxu0
      %v2629 = vadd.f32 %v2555, %v2628
      %v2630 = vpop.f32.mrb[0].mxu0
      %v2631 = vadd.f32 %v2557, %v2630
      %2632 = vdwg.mxu0
      %v2633 = vld [vmem:[#allocation2 + $0x4] sm:$0xff]
      %v2634 = vld [vmem:[#allocation2 + $0xc] sm:$0xf]
      %s2635 = scalar_lea.vmem %s1, 28
      %v2636 = vld [vmem:[%s2635] sm:$0xf]
      %v2639 = vcombine.high %v2633, %v2633
      %2640 = vrot.lane.b32.xlu0 %v2633, 112
      %v2641 = vpop.permute.xlu0 %2640
      %2642 = vrot.lane.b32.xlu0 %v2639, 112
      %v2643 = vpop.permute.xlu0 %2642
      %2644 = vrot.lane.b32.xlu0 %v2634, 112
      %v2645 = vpop.permute.xlu0 %2644
      %vm2646 = vcmask 916480
      %v2647 = vsel %vm2646, %v2641, %v2643
      %v2648 = vsel %vm2646, %v2643, %v2645
      %v2650 = vsel %vm223, %v2636, 0
      %v2652 = vsel %vm227, %v2647, 0
      %v2654 = vsel %vm227, %v2648, 0
      %v2656 = vand.u32 %v2654, 4294901760
      %2657 = vmatprep.subr.mxu0 %v2656
      %v2658 = vand.u32 %v2652, 4294901760
      %2659 = vmatpush1.msra.mxu0 %v2658
      %2660 = vmatprep.subr.mxu0 0.0
      %2661 = vmatpush1.msra.mxu0 0.0
      %2662 = vmatprep.subr.mxu0 0.0
      %2663 = vmatpush1.msra.mxu0 0.0
      %2664 = vmatprep.subr.mxu0 0.0
      %2665 = vmatpush1.msra.mxu0 0.0
      %2666 = vmatprep.subr.mxu0 0.0
      %2667 = vmatpush1.msra.mxu0 0.0
      %2668 = vmatprep.subr.mxu0 0.0
      %2669 = vmatpush1.msra.mxu0 0.0
      %2670 = vmatprep.subr.mxu0 0.0
      %2671 = vmatpush1.msra.mxu0 0.0
      %2672 = vmatprep.subr.mxu0 0.0
      %2673 = vmatpush1.msra.mxu0 0.0
      %2674 = vmatprep.subr.mxu0 0.0
      %2675 = vmatpush1.msra.mxu0 0.0
      %2676 = vmatprep.subr.mxu0 0.0
      %2677 = vmatpush1.msra.mxu0 0.0
      %2678 = vmatprep.subr.mxu0 0.0
      %2679 = vmatpush1.msra.mxu0 0.0
      %2680 = vmatprep.subr.mxu0 0.0
      %2681 = vmatpush1.msra.mxu0 0.0
      %2682 = vmatprep.subr.mxu0 0.0
      %2683 = vmatpush1.msra.mxu0 0.0
      %2684 = vmatprep.subr.mxu0 0.0
      %2685 = vmatpush1.msra.mxu0 0.0
      %2686 = vmatprep.subr.mxu0 0.0
      %2687 = vmatpush1.msra.mxu0 0.0
      %2688 = vmatprep.subr.mxu0 0.0
      %2689 = vmatpush1.msra.mxu0 0.0
      %2690 = vmatprep.subr.mxu0 0.0
      %2691 = vmatpush1.msra.mxu0 0.0
      %2692 = vmatprep.subr.mxu0 0.0
      %2693 = vmatpush1.msra.mxu0 0.0
      %2694 = vmatprep.subr.mxu0 0.0
      %2695 = vmatpush1.msra.mxu0 0.0
      %2696 = vmatprep.subr.mxu0 0.0
      %2697 = vmatpush1.msra.mxu0 0.0
      %2698 = vmatprep.subr.mxu0 0.0
      %2699 = vmatpush1.msra.mxu0 0.0
      %2700 = vmatprep.subr.mxu0 0.0
      %2701 = vmatpush1.msra.mxu0 0.0
      %2702 = vmatprep.subr.mxu0 0.0
      %2703 = vmatpush1.msra.mxu0 0.0
      %2704 = vmatprep.subr.mxu0 0.0
      %2705 = vmatpush1.msra.mxu0 0.0
      %2706 = vmatprep.subr.mxu0 0.0
      %2707 = vmatpush1.msra.mxu0 0.0
      %2708 = vmatprep.subr.mxu0 0.0
      %2709 = vmatpush1.msra.mxu0 0.0
      %2710 = vmatprep.subr.mxu0 0.0
      %2711 = vmatpush1.msra.mxu0 0.0
      %2712 = vmatprep.subr.mxu0 0.0
      %2713 = vmatpush1.msra.mxu0 0.0
      %2714 = vmatprep.subr.mxu0 0.0
      %2715 = vmatpush1.msra.mxu0 0.0
      %2716 = vmatprep.subr.mxu0 0.0
      %2717 = vmatpush1.msra.mxu0 0.0
      %2718 = vmatprep.subr.mxu0 0.0
      %2719 = vmatpush1.msra.mxu0 0.0
      %2720 = vmatprep.subr.mxu0 0.0
      %2721 = vmatpush1.msra.mxu0 0.0
      %2722 = vmatprep.mubr.f32.mxu0 0.0
      %v2723 = vand.u32 %v2650, 4294901760
      %v2724 = vsub.f32 %v2650, %v2723
      %v2725 = vand.u32 %v2724, 4294901760
      %v2726 = vsub.f32 %v2724, %v2725
      %v2727 = vand.u32 %v2726, 4294901760
      %2728 = vmatmul.mubr.f32.gmra.mrb[0].mxu0 %v2727
      %v2729 = vpop.f32.mrb[0].mxu0
      %v2730 = vadd.f32 0.0, %v2729
      %v2731 = vpop.f32.mrb[0].mxu0
      %v2732 = vadd.f32 0.0, %v2731
      %2733 = vdwg.mxu0
      %v2734 = vand.u32 %v2654, 4294901760
      %v2735 = vsub.f32 %v2654, %v2734
      %v2736 = vand.u32 %v2735, 4294901760
      %v2737 = vsub.f32 %v2735, %v2736
      %v2738 = vand.u32 %v2737, 4294901760
      %2739 = vmatprep.subr.mxu0 %v2738
      %v2740 = vand.u32 %v2652, 4294901760
      %v2741 = vsub.f32 %v2652, %v2740
      %v2742 = vand.u32 %v2741, 4294901760
      %v2743 = vsub.f32 %v2741, %v2742
      %v2744 = vand.u32 %v2743, 4294901760
      %2745 = vmatpush1.msra.mxu0 %v2744
      %2746 = vmatprep.subr.mxu0 0.0
      %2747 = vmatpush1.msra.mxu0 0.0
      %2748 = vmatprep.subr.mxu0 0.0
      %2749 = vmatpush1.msra.mxu0 0.0
      %2750 = vmatprep.subr.mxu0 0.0
      %2751 = vmatpush1.msra.mxu0 0.0
      %2752 = vmatprep.subr.mxu0 0.0
      %2753 = vmatpush1.msra.mxu0 0.0
      %2754 = vmatprep.subr.mxu0 0.0
      %2755 = vmatpush1.msra.mxu0 0.0
      %2756 = vmatprep.subr.mxu0 0.0
      %2757 = vmatpush1.msra.mxu0 0.0
      %2758 = vmatprep.subr.mxu0 0.0
      %2759 = vmatpush1.msra.mxu0 0.0
      %2760 = vmatprep.subr.mxu0 0.0
      %2761 = vmatpush1.msra.mxu0 0.0
      %2762 = vmatprep.subr.mxu0 0.0
      %2763 = vmatpush1.msra.mxu0 0.0
      %2764 = vmatprep.subr.mxu0 0.0
      %2765 = vmatpush1.msra.mxu0 0.0
      %2766 = vmatprep.subr.mxu0 0.0
      %2767 = vmatpush1.msra.mxu0 0.0
      %2768 = vmatprep.subr.mxu0 0.0
      %2769 = vmatpush1.msra.mxu0 0.0
      %2770 = vmatprep.subr.mxu0 0.0
      %2771 = vmatpush1.msra.mxu0 0.0
      %2772 = vmatprep.subr.mxu0 0.0
      %2773 = vmatpush1.msra.mxu0 0.0
      %2774 = vmatprep.subr.mxu0 0.0
      %2775 = vmatpush1.msra.mxu0 0.0
      %2776 = vmatprep.subr.mxu0 0.0
      %2777 = vmatpush1.msra.mxu0 0.0
      %2778 = vmatprep.subr.mxu0 0.0
      %2779 = vmatpush1.msra.mxu0 0.0
      %2780 = vmatprep.subr.mxu0 0.0
      %2781 = vmatpush1.msra.mxu0 0.0
      %2782 = vmatprep.subr.mxu0 0.0
      %2783 = vmatpush1.msra.mxu0 0.0
      %2784 = vmatprep.subr.mxu0 0.0
      %2785 = vmatpush1.msra.mxu0 0.0
      %2786 = vmatprep.subr.mxu0 0.0
      %2787 = vmatpush1.msra.mxu0 0.0
      %2788 = vmatprep.subr.mxu0 0.0
      %2789 = vmatpush1.msra.mxu0 0.0
      %2790 = vmatprep.subr.mxu0 0.0
      %2791 = vmatpush1.msra.mxu0 0.0
      %2792 = vmatprep.subr.mxu0 0.0
      %2793 = vmatpush1.msra.mxu0 0.0
      %2794 = vmatprep.subr.mxu0 0.0
      %2795 = vmatpush1.msra.mxu0 0.0
      %2796 = vmatprep.subr.mxu0 0.0
      %2797 = vmatpush1.msra.mxu0 0.0
      %2798 = vmatprep.subr.mxu0 0.0
      %2799 = vmatpush1.msra.mxu0 0.0
      %2800 = vmatprep.subr.mxu0 0.0
      %2801 = vmatpush1.msra.mxu0 0.0
      %2802 = vmatprep.subr.mxu0 0.0
      %2803 = vmatpush1.msra.mxu0 0.0
      %2804 = vmatprep.subr.mxu0 0.0
      %2805 = vmatpush1.msra.mxu0 0.0
      %2806 = vmatprep.subr.mxu0 0.0
      %2807 = vmatpush1.msra.mxu0 0.0
      %2808 = vmatprep.mubr.f32.mxu0 0.0
      %v2809 = vand.u32 %v2650, 4294901760
      %2810 = vmatmul.mubr.f32.gmra.mrb[0].mxu0 %v2809
      %v2811 = vpop.f32.mrb[0].mxu0
      %v2812 = vadd.f32 %v2730, %v2811
      %v2813 = vpop.f32.mrb[0].mxu0
      %v2814 = vadd.f32 %v2732, %v2813
      %2815 = vdwg.mxu0
      %v2816 = vand.u32 %v2654, 4294901760
      %v2817 = vsub.f32 %v2654, %v2816
      %2818 = vmatprep.subr.mxu0 %v2817
      %v2819 = vand.u32 %v2652, 4294901760
      %v2820 = vsub.f32 %v2652, %v2819
      %2821 = vmatpush1.msra.mxu0 %v2820
      %2822 = vmatprep.subr.mxu0 0.0
      %2823 = vmatpush1.msra.mxu0 0.0
      %2824 = vmatprep.subr.mxu0 0.0
      %2825 = vmatpush1.msra.mxu0 0.0
      %2826 = vmatprep.subr.mxu0 0.0
      %2827 = vmatpush1.msra.mxu0 0.0
      %2828 = vmatprep.subr.mxu0 0.0
      %2829 = vmatpush1.msra.mxu0 0.0
      %2830 = vmatprep.subr.mxu0 0.0
      %2831 = vmatpush1.msra.mxu0 0.0
      %2832 = vmatprep.subr.mxu0 0.0
      %2833 = vmatpush1.msra.mxu0 0.0
      %2834 = vmatprep.subr.mxu0 0.0
      %2835 = vmatpush1.msra.mxu0 0.0
      %2836 = vmatprep.subr.mxu0 0.0
      %2837 = vmatpush1.msra.mxu0 0.0
      %2838 = vmatprep.subr.mxu0 0.0
      %2839 = vmatpush1.msra.mxu0 0.0
      %2840 = vmatprep.subr.mxu0 0.0
      %2841 = vmatpush1.msra.mxu0 0.0
      %2842 = vmatprep.subr.mxu0 0.0
      %2843 = vmatpush1.msra.mxu0 0.0
      %2844 = vmatprep.subr.mxu0 0.0
      %2845 = vmatpush1.msra.mxu0 0.0
      %2846 = vmatprep.subr.mxu0 0.0
      %2847 = vmatpush1.msra.mxu0 0.0
      %2848 = vmatprep.subr.mxu0 0.0
      %2849 = vmatpush1.msra.mxu0 0.0
      %2850 = vmatprep.subr.mxu0 0.0
      %2851 = vmatpush1.msra.mxu0 0.0
      %2852 = vmatprep.subr.mxu0 0.0
      %2853 = vmatpush1.msra.mxu0 0.0
      %2854 = vmatprep.subr.mxu0 0.0
      %2855 = vmatpush1.msra.mxu0 0.0
      %2856 = vmatprep.subr.mxu0 0.0
      %2857 = vmatpush1.msra.mxu0 0.0
      %2858 = vmatprep.subr.mxu0 0.0
      %2859 = vmatpush1.msra.mxu0 0.0
      %2860 = vmatprep.subr.mxu0 0.0
      %2861 = vmatpush1.msra.mxu0 0.0
      %2862 = vmatprep.subr.mxu0 0.0
      %2863 = vmatpush1.msra.mxu0 0.0
      %2864 = vmatprep.subr.mxu0 0.0
      %2865 = vmatpush1.msra.mxu0 0.0
      %2866 = vmatprep.subr.mxu0 0.0
      %2867 = vmatpush1.msra.mxu0 0.0
      %2868 = vmatprep.subr.mxu0 0.0
      %2869 = vmatpush1.msra.mxu0 0.0
      %2870 = vmatprep.subr.mxu0 0.0
      %2871 = vmatpush1.msra.mxu0 0.0
      %2872 = vmatprep.subr.mxu0 0.0
      %2873 = vmatpush1.msra.mxu0 0.0
      %2874 = vmatprep.subr.mxu0 0.0
      %2875 = vmatpush1.msra.mxu0 0.0
      %2876 = vmatprep.subr.mxu0 0.0
      %2877 = vmatpush1.msra.mxu0 0.0
      %2878 = vmatprep.subr.mxu0 0.0
      %2879 = vmatpush1.msra.mxu0 0.0
      %2880 = vmatprep.subr.mxu0 0.0
      %2881 = vmatpush1.msra.mxu0 0.0
      %2882 = vmatprep.subr.mxu0 0.0
      %2883 = vmatpush1.msra.mxu0 0.0
      %2884 = vmatprep.mubr.f32.mxu0 0.0
      %v2885 = vand.u32 %v2650, 4294901760
      %v2886 = vsub.f32 %v2650, %v2885
      %2887 = vmatmul.mubr.f32.gmra.mrb[0].mxu0 %v2886
      %v2888 = vpop.f32.mrb[0].mxu0
      %v2889 = vadd.f32 %v2812, %v2888
      %v2890 = vpop.f32.mrb[0].mxu0
      %v2891 = vadd.f32 %v2814, %v2890
      %2892 = vdwg.mxu0
      %v2893 = vand.u32 %v2654, 4294901760
      %2894 = vmatprep.subr.mxu0 %v2893
      %v2895 = vand.u32 %v2652, 4294901760
      %2896 = vmatpush1.msra.mxu0 %v2895
      %2897 = vmatprep.subr.mxu0 0.0
      %2898 = vmatpush1.msra.mxu0 0.0
      %2899 = vmatprep.subr.mxu0 0.0
      %2900 = vmatpush1.msra.mxu0 0.0
      %2901 = vmatprep.subr.mxu0 0.0
      %2902 = vmatpush1.msra.mxu0 0.0
      %2903 = vmatprep.subr.mxu0 0.0
      %2904 = vmatpush1.msra.mxu0 0.0
      %2905 = vmatprep.subr.mxu0 0.0
      %2906 = vmatpush1.msra.mxu0 0.0
      %2907 = vmatprep.subr.mxu0 0.0
      %2908 = vmatpush1.msra.mxu0 0.0
      %2909 = vmatprep.subr.mxu0 0.0
      %2910 = vmatpush1.msra.mxu0 0.0
      %2911 = vmatprep.subr.mxu0 0.0
      %2912 = vmatpush1.msra.mxu0 0.0
      %2913 = vmatprep.subr.mxu0 0.0
      %2914 = vmatpush1.msra.mxu0 0.0
      %2915 = vmatprep.subr.mxu0 0.0
      %2916 = vmatpush1.msra.mxu0 0.0
      %2917 = vmatprep.subr.mxu0 0.0
      %2918 = vmatpush1.msra.mxu0 0.0
      %2919 = vmatprep.subr.mxu0 0.0
      %2920 = vmatpush1.msra.mxu0 0.0
      %2921 = vmatprep.subr.mxu0 0.0
      %2922 = vmatpush1.msra.mxu0 0.0
      %2923 = vmatprep.subr.mxu0 0.0
      %2924 = vmatpush1.msra.mxu0 0.0
      %2925 = vmatprep.subr.mxu0 0.0
      %2926 = vmatpush1.msra.mxu0 0.0
      %2927 = vmatprep.subr.mxu0 0.0
      %2928 = vmatpush1.msra.mxu0 0.0
      %2929 = vmatprep.subr.mxu0 0.0
      %2930 = vmatpush1.msra.mxu0 0.0
      %2931 = vmatprep.subr.mxu0 0.0
      %2932 = vmatpush1.msra.mxu0 0.0
      %2933 = vmatprep.subr.mxu0 0.0
      %2934 = vmatpush1.msra.mxu0 0.0
      %2935 = vmatprep.subr.mxu0 0.0
      %2936 = vmatpush1.msra.mxu0 0.0
      %2937 = vmatprep.subr.mxu0 0.0
      %2938 = vmatpush1.msra.mxu0 0.0
      %2939 = vmatprep.subr.mxu0 0.0
      %2940 = vmatpush1.msra.mxu0 0.0
      %2941 = vmatprep.subr.mxu0 0.0
      %2942 = vmatpush1.msra.mxu0 0.0
      %2943 = vmatprep.subr.mxu0 0.0
      %2944 = vmatpush1.msra.mxu0 0.0
      %2945 = vmatprep.subr.mxu0 0.0
      %2946 = vmatpush1.msra.mxu0 0.0
      %2947 = vmatprep.subr.mxu0 0.0
      %2948 = vmatpush1.msra.mxu0 0.0
      %2949 = vmatprep.subr.mxu0 0.0
      %2950 = vmatpush1.msra.mxu0 0.0
      %2951 = vmatprep.subr.mxu0 0.0
      %2952 = vmatpush1.msra.mxu0 0.0
      %2953 = vmatprep.subr.mxu0 0.0
      %2954 = vmatpush1.msra.mxu0 0.0
      %2955 = vmatprep.subr.mxu0 0.0
      %2956 = vmatpush1.msra.mxu0 0.0
      %2957 = vmatprep.subr.mxu0 0.0
      %2958 = vmatpush1.msra.mxu0 0.0
      %2959 = vmatprep.mubr.f32.mxu0 0.0
      %v2960 = vand.u32 %v2650, 4294901760
      %v2961 = vsub.f32 %v2650, %v2960
      %v2962 = vand.u32 %v2961, 4294901760
      %2963 = vmatmul.mubr.f32.gmra.mrb[0].mxu0 %v2962
      %v2964 = vpop.f32.mrb[0].mxu0
      %v2965 = vadd.f32 %v2889, %v2964
      %v2966 = vpop.f32.mrb[0].mxu0
      %v2967 = vadd.f32 %v2891, %v2966
      %2968 = vdwg.mxu0
      %v2969 = vand.u32 %v2654, 4294901760
      %v2970 = vsub.f32 %v2654, %v2969
      %v2971 = vand.u32 %v2970, 4294901760
      %2972 = vmatprep.subr.mxu0 %v2971
      %v2973 = vand.u32 %v2652, 4294901760
      %v2974 = vsub.f32 %v2652, %v2973
      %v2975 = vand.u32 %v2974, 4294901760
      %2976 = vmatpush1.msra.mxu0 %v2975
      %2977 = vmatprep.subr.mxu0 0.0
      %2978 = vmatpush1.msra.mxu0 0.0
      %2979 = vmatprep.subr.mxu0 0.0
      %2980 = vmatpush1.msra.mxu0 0.0
      %2981 = vmatprep.subr.mxu0 0.0
      %2982 = vmatpush1.msra.mxu0 0.0
      %2983 = vmatprep.subr.mxu0 0.0
      %2984 = vmatpush1.msra.mxu0 0.0
      %2985 = vmatprep.subr.mxu0 0.0
      %2986 = vmatpush1.msra.mxu0 0.0
      %2987 = vmatprep.subr.mxu0 0.0
      %2988 = vmatpush1.msra.mxu0 0.0
      %2989 = vmatprep.subr.mxu0 0.0
      %2990 = vmatpush1.msra.mxu0 0.0
      %2991 = vmatprep.subr.mxu0 0.0
      %2992 = vmatpush1.msra.mxu0 0.0
      %2993 = vmatprep.subr.mxu0 0.0
      %2994 = vmatpush1.msra.mxu0 0.0
      %2995 = vmatprep.subr.mxu0 0.0
      %2996 = vmatpush1.msra.mxu0 0.0
      %2997 = vmatprep.subr.mxu0 0.0
      %2998 = vmatpush1.msra.mxu0 0.0
      %2999 = vmatprep.subr.mxu0 0.0
      %3000 = vmatpush1.msra.mxu0 0.0
      %3001 = vmatprep.subr.mxu0 0.0
      %3002 = vmatpush1.msra.mxu0 0.0
      %3003 = vmatprep.subr.mxu0 0.0
      %3004 = vmatpush1.msra.mxu0 0.0
      %3005 = vmatprep.subr.mxu0 0.0
      %3006 = vmatpush1.msra.mxu0 0.0
      %3007 = vmatprep.subr.mxu0 0.0
      %3008 = vmatpush1.msra.mxu0 0.0
      %3009 = vmatprep.subr.mxu0 0.0
      %3010 = vmatpush1.msra.mxu0 0.0
      %3011 = vmatprep.subr.mxu0 0.0
      %3012 = vmatpush1.msra.mxu0 0.0
      %3013 = vmatprep.subr.mxu0 0.0
      %3014 = vmatpush1.msra.mxu0 0.0
      %3015 = vmatprep.subr.mxu0 0.0
      %3016 = vmatpush1.msra.mxu0 0.0
      %3017 = vmatprep.subr.mxu0 0.0
      %3018 = vmatpush1.msra.mxu0 0.0
      %3019 = vmatprep.subr.mxu0 0.0
      %3020 = vmatpush1.msra.mxu0 0.0
      %3021 = vmatprep.subr.mxu0 0.0
      %3022 = vmatpush1.msra.mxu0 0.0
      %3023 = vmatprep.subr.mxu0 0.0
      %3024 = vmatpush1.msra.mxu0 0.0
      %3025 = vmatprep.subr.mxu0 0.0
      %3026 = vmatpush1.msra.mxu0 0.0
      %3027 = vmatprep.subr.mxu0 0.0
      %3028 = vmatpush1.msra.mxu0 0.0
      %3029 = vmatprep.subr.mxu0 0.0
      %3030 = vmatpush1.msra.mxu0 0.0
      %3031 = vmatprep.subr.mxu0 0.0
      %3032 = vmatpush1.msra.mxu0 0.0
      %3033 = vmatprep.subr.mxu0 0.0
      %3034 = vmatpush1.msra.mxu0 0.0
      %3035 = vmatprep.subr.mxu0 0.0
      %3036 = vmatpush1.msra.mxu0 0.0
      %3037 = vmatprep.subr.mxu0 0.0
      %3038 = vmatpush1.msra.mxu0 0.0
      %3039 = vmatprep.mubr.f32.mxu0 0.0
      %v3040 = vand.u32 %v2650, 4294901760
      %3041 = vmatmul.mubr.f32.gmra.mrb[0].mxu0 %v3040
      %v3042 = vpop.f32.mrb[0].mxu0
      %v3043 = vadd.f32 %v2965, %v3042
      %v3044 = vpop.f32.mrb[0].mxu0
      %v3045 = vadd.f32 %v2967, %v3044
      %3046 = vdwg.mxu0
      %v3047 = vand.u32 %v2654, 4294901760
      %3048 = vmatprep.subr.mxu0 %v3047
      %v3049 = vand.u32 %v2652, 4294901760
      %3050 = vmatpush1.msra.mxu0 %v3049
      %3051 = vmatprep.subr.mxu0 0.0
      %3052 = vmatpush1.msra.mxu0 0.0
      %3053 = vmatprep.subr.mxu0 0.0
      %3054 = vmatpush1.msra.mxu0 0.0
      %3055 = vmatprep.subr.mxu0 0.0
      %3056 = vmatpush1.msra.mxu0 0.0
      %3057 = vmatprep.subr.mxu0 0.0
      %3058 = vmatpush1.msra.mxu0 0.0
      %3059 = vmatprep.subr.mxu0 0.0
      %3060 = vmatpush1.msra.mxu0 0.0
      %3061 = vmatprep.subr.mxu0 0.0
      %3062 = vmatpush1.msra.mxu0 0.0
      %3063 = vmatprep.subr.mxu0 0.0
      %3064 = vmatpush1.msra.mxu0 0.0
      %3065 = vmatprep.subr.mxu0 0.0
      %3066 = vmatpush1.msra.mxu0 0.0
      %3067 = vmatprep.subr.mxu0 0.0
      %3068 = vmatpush1.msra.mxu0 0.0
      %3069 = vmatprep.subr.mxu0 0.0
      %3070 = vmatpush1.msra.mxu0 0.0
      %3071 = vmatprep.subr.mxu0 0.0
      %3072 = vmatpush1.msra.mxu0 0.0
      %3073 = vmatprep.subr.mxu0 0.0
      %3074 = vmatpush1.msra.mxu0 0.0
      %3075 = vmatprep.subr.mxu0 0.0
      %3076 = vmatpush1.msra.mxu0 0.0
      %3077 = vmatprep.subr.mxu0 0.0
      %3078 = vmatpush1.msra.mxu0 0.0
      %3079 = vmatprep.subr.mxu0 0.0
      %3080 = vmatpush1.msra.mxu0 0.0
      %3081 = vmatprep.subr.mxu0 0.0
      %3082 = vmatpush1.msra.mxu0 0.0
      %3083 = vmatprep.subr.mxu0 0.0
      %3084 = vmatpush1.msra.mxu0 0.0
      %3085 = vmatprep.subr.mxu0 0.0
      %3086 = vmatpush1.msra.mxu0 0.0
      %3087 = vmatprep.subr.mxu0 0.0
      %3088 = vmatpush1.msra.mxu0 0.0
      %3089 = vmatprep.subr.mxu0 0.0
      %3090 = vmatpush1.msra.mxu0 0.0
      %3091 = vmatprep.subr.mxu0 0.0
      %3092 = vmatpush1.msra.mxu0 0.0
      %3093 = vmatprep.subr.mxu0 0.0
      %3094 = vmatpush1.msra.mxu0 0.0
      %3095 = vmatprep.subr.mxu0 0.0
      %3096 = vmatpush1.msra.mxu0 0.0
      %3097 = vmatprep.subr.mxu0 0.0
      %3098 = vmatpush1.msra.mxu0 0.0
      %3099 = vmatprep.subr.mxu0 0.0
      %3100 = vmatpush1.msra.mxu0 0.0
      %3101 = vmatprep.subr.mxu0 0.0
      %3102 = vmatpush1.msra.mxu0 0.0
      %3103 = vmatprep.subr.mxu0 0.0
      %3104 = vmatpush1.msra.mxu0 0.0
      %3105 = vmatprep.subr.mxu0 0.0
      %3106 = vmatpush1.msra.mxu0 0.0
      %3107 = vmatprep.subr.mxu0 0.0
      %3108 = vmatpush1.msra.mxu0 0.0
      %3109 = vmatprep.subr.mxu0 0.0
      %3110 = vmatpush1.msra.mxu0 0.0
      %3111 = vmatprep.subr.mxu0 0.0
      %3112 = vmatpush1.msra.mxu0 0.0
      %3113 = vmatprep.mubr.f32.mxu0 0.0
      %v3114 = vand.u32 %v2650, 4294901760
      %3115 = vmatmul.mubr.f32.gmra.mrb[0].mxu0 %v3114
      %v3116 = vpop.f32.mrb[0].mxu0
      %v3117 = vadd.f32 %v3043, %v3116
      %v3118 = vpop.f32.mrb[0].mxu0
      %v3119 = vadd.f32 %v3045, %v3118
      %3120 = vdwg.mxu0
      %v3121 = vadd.f32 %v2629, %v3117
      %v3122 = vadd.f32 %v2631, %v3119
      %v3123 = vld [vmem:[#allocation2] sm:$0xff]
      %v3124 = vld [vmem:[#allocation2 + $0x8] sm:$0xf]
      %s3125 = scalar_lea.vmem %s1, 8
      %v3126 = vld [vmem:[%s3125] sm:$0xf]
      %v3127 = vld [vmem:[#allocation2 + $0x4] sm:$0xff]
      %v3128 = vld [vmem:[#allocation2 + $0xc] sm:$0xf]
      %s3129 = scalar_lea.vmem %s1, 20
      %v3130 = vld [vmem:[%s3129] sm:$0xf]
      %v3133 = vcombine.high %v3127, %v3127
      %3134 = vrot.lane.b32.xlu0 %v3127, 127
      %v3135 = vpop.permute.xlu0 %3134
      %3136 = vrot.lane.b32.xlu0 %v3133, 127
      %v3137 = vpop.permute.xlu0 %3136
      %3138 = vrot.lane.b32.xlu0 %v3128, 127
      %v3139 = vpop.permute.xlu0 %3138
      %vm3140 = vcmask 1039360
      %v3141 = vsel %vm3140, %v3135, %v3137
      %v3142 = vsel %vm3140, %v3137, %v3139
      %v3144 = vsel %vm223, %v3130, 0
      %v3146 = vsel %vm227, %v3141, 0
      %v3148 = vsel %vm227, %v3142, 0
      %v3150 = vand.u32 %v3148, 4294901760
      %3151 = vmatprep.subr.mxu0 %v3150
      %v3152 = vand.u32 %v3146, 4294901760
      %3153 = vmatpush1.msra.mxu0 %v3152
      %3154 = vmatprep.subr.mxu0 0.0
      %3155 = vmatpush1.msra.mxu0 0.0
      %3156 = vmatprep.subr.mxu0 0.0
      %3157 = vmatpush1.msra.mxu0 0.0
      %3158 = vmatprep.subr.mxu0 0.0
      %3159 = vmatpush1.msra.mxu0 0.0
      %3160 = vmatprep.subr.mxu0 0.0
      %3161 = vmatpush1.msra.mxu0 0.0
      %3162 = vmatprep.subr.mxu0 0.0
      %3163 = vmatpush1.msra.mxu0 0.0
      %3164 = vmatprep.subr.mxu0 0.0
      %3165 = vmatpush1.msra.mxu0 0.0
      %3166 = vmatprep.subr.mxu0 0.0
      %3167 = vmatpush1.msra.mxu0 0.0
      %3168 = vmatprep.subr.mxu0 0.0
      %3169 = vmatpush1.msra.mxu0 0.0
      %3170 = vmatprep.subr.mxu0 0.0
      %3171 = vmatpush1.msra.mxu0 0.0
      %3172 = vmatprep.subr.mxu0 0.0
      %3173 = vmatpush1.msra.mxu0 0.0
      %3174 = vmatprep.subr.mxu0 0.0
      %3175 = vmatpush1.msra.mxu0 0.0
      %3176 = vmatprep.subr.mxu0 0.0
      %3177 = vmatpush1.msra.mxu0 0.0
      %3178 = vmatprep.subr.mxu0 0.0
      %3179 = vmatpush1.msra.mxu0 0.0
      %3180 = vmatprep.subr.mxu0 0.0
      %3181 = vmatpush1.msra.mxu0 0.0
      %3182 = vmatprep.subr.mxu0 0.0
      %3183 = vmatpush1.msra.mxu0 0.0
      %3184 = vmatprep.subr.mxu0 0.0
      %3185 = vmatpush1.msra.mxu0 0.0
      %3186 = vmatprep.subr.mxu0 0.0
      %3187 = vmatpush1.msra.mxu0 0.0
      %3188 = vmatprep.subr.mxu0 0.0
      %3189 = vmatpush1.msra.mxu0 0.0
      %3190 = vmatprep.subr.mxu0 0.0
      %3191 = vmatpush1.msra.mxu0 0.0
      %3192 = vmatprep.subr.mxu0 0.0
      %3193 = vmatpush1.msra.mxu0 0.0
      %3194 = vmatprep.subr.mxu0 0.0
      %3195 = vmatpush1.msra.mxu0 0.0
      %3196 = vmatprep.subr.mxu0 0.0
      %3197 = vmatpush1.msra.mxu0 0.0
      %3198 = vmatprep.subr.mxu0 0.0
      %3199 = vmatpush1.msra.mxu0 0.0
      %3200 = vmatprep.subr.mxu0 0.0
      %3201 = vmatpush1.msra.mxu0 0.0
      %3202 = vmatprep.subr.mxu0 0.0
      %3203 = vmatpush1.msra.mxu0 0.0
      %3204 = vmatprep.subr.mxu0 0.0
      %3205 = vmatpush1.msra.mxu0 0.0
      %3206 = vmatprep.subr.mxu0 0.0
      %3207 = vmatpush1.msra.mxu0 0.0
      %3208 = vmatprep.subr.mxu0 0.0
      %3209 = vmatpush1.msra.mxu0 0.0
      %3210 = vmatprep.subr.mxu0 0.0
      %3211 = vmatpush1.msra.mxu0 0.0
      %3212 = vmatprep.subr.mxu0 0.0
      %3213 = vmatpush1.msra.mxu0 0.0
      %3214 = vmatprep.subr.mxu0 0.0
      %3215 = vmatpush1.msra.mxu0 0.0
      %3216 = vmatprep.mubr.f32.mxu0 0.0
      %v3217 = vand.u32 %v3144, 4294901760
      %v3218 = vsub.f32 %v3144, %v3217
      %v3219 = vand.u32 %v3218, 4294901760
      %v3220 = vsub.f32 %v3218, %v3219
      %v3221 = vand.u32 %v3220, 4294901760
      %3222 = vmatmul.mubr.f32.gmra.mrb[0].mxu0 %v3221
      %v3223 = vpop.f32.mrb[0].mxu0
      %v3224 = vadd.f32 0.0, %v3223
      %v3225 = vpop.f32.mrb[0].mxu0
      %v3226 = vadd.f32 0.0, %v3225
      %3227 = vdwg.mxu0
      %v3228 = vand.u32 %v3148, 4294901760
      %v3229 = vsub.f32 %v3148, %v3228
      %v3230 = vand.u32 %v3229, 4294901760
      %v3231 = vsub.f32 %v3229, %v3230
      %v3232 = vand.u32 %v3231, 4294901760
      %3233 = vmatprep.subr.mxu0 %v3232
      %v3234 = vand.u32 %v3146, 4294901760
      %v3235 = vsub.f32 %v3146, %v3234
      %v3236 = vand.u32 %v3235, 4294901760
      %v3237 = vsub.f32 %v3235, %v3236
      %v3238 = vand.u32 %v3237, 4294901760
      %3239 = vmatpush1.msra.mxu0 %v3238
      %3240 = vmatprep.subr.mxu0 0.0
      %3241 = vmatpush1.msra.mxu0 0.0
      %3242 = vmatprep.subr.mxu0 0.0
      %3243 = vmatpush1.msra.mxu0 0.0
      %3244 = vmatprep.subr.mxu0 0.0
      %3245 = vmatpush1.msra.mxu0 0.0
      %3246 = vmatprep.subr.mxu0 0.0
      %3247 = vmatpush1.msra.mxu0 0.0
      %3248 = vmatprep.subr.mxu0 0.0
      %3249 = vmatpush1.msra.mxu0 0.0
      %3250 = vmatprep.subr.mxu0 0.0
      %3251 = vmatpush1.msra.mxu0 0.0
      %3252 = vmatprep.subr.mxu0 0.0
      %3253 = vmatpush1.msra.mxu0 0.0
      %3254 = vmatprep.subr.mxu0 0.0
      %3255 = vmatpush1.msra.mxu0 0.0
      %3256 = vmatprep.subr.mxu0 0.0
      %3257 = vmatpush1.msra.mxu0 0.0
      %3258 = vmatprep.subr.mxu0 0.0
      %3259 = vmatpush1.msra.mxu0 0.0
      %3260 = vmatprep.subr.mxu0 0.0
      %3261 = vmatpush1.msra.mxu0 0.0
      %3262 = vmatprep.subr.mxu0 0.0
      %3263 = vmatpush1.msra.mxu0 0.0
      %3264 = vmatprep.subr.mxu0 0.0
      %3265 = vmatpush1.msra.mxu0 0.0
      %3266 = vmatprep.subr.mxu0 0.0
      %3267 = vmatpush1.msra.mxu0 0.0
      %3268 = vmatprep.subr.mxu0 0.0
      %3269 = vmatpush1.msra.mxu0 0.0
      %3270 = vmatprep.subr.mxu0 0.0
      %3271 = vmatpush1.msra.mxu0 0.0
      %3272 = vmatprep.subr.mxu0 0.0
      %3273 = vmatpush1.msra.mxu0 0.0
      %3274 = vmatprep.subr.mxu0 0.0
      %3275 = vmatpush1.msra.mxu0 0.0
      %3276 = vmatprep.subr.mxu0 0.0
      %3277 = vmatpush1.msra.mxu0 0.0
      %3278 = vmatprep.subr.mxu0 0.0
      %3279 = vmatpush1.msra.mxu0 0.0
      %3280 = vmatprep.subr.mxu0 0.0
      %3281 = vmatpush1.msra.mxu0 0.0
      %3282 = vmatprep.subr.mxu0 0.0
      %3283 = vmatpush1.msra.mxu0 0.0
      %3284 = vmatprep.subr.mxu0 0.0
      %3285 = vmatpush1.msra.mxu0 0.0
      %3286 = vmatprep.subr.mxu0 0.0
      %3287 = vmatpush1.msra.mxu0 0.0
      %3288 = vmatprep.subr.mxu0 0.0
      %3289 = vmatpush1.msra.mxu0 0.0
      %3290 = vmatprep.subr.mxu0 0.0
      %3291 = vmatpush1.msra.mxu0 0.0
      %3292 = vmatprep.subr.mxu0 0.0
      %3293 = vmatpush1.msra.mxu0 0.0
      %3294 = vmatprep.subr.mxu0 0.0
      %3295 = vmatpush1.msra.mxu0 0.0
      %3296 = vmatprep.subr.mxu0 0.0
      %3297 = vmatpush1.msra.mxu0 0.0
      %3298 = vmatprep.subr.mxu0 0.0
      %3299 = vmatpush1.msra.mxu0 0.0
      %3300 = vmatprep.subr.mxu0 0.0
      %3301 = vmatpush1.msra.mxu0 0.0
      %3302 = vmatprep.mubr.f32.mxu0 0.0
      %v3303 = vand.u32 %v3144, 4294901760
      %3304 = vmatmul.mubr.f32.gmra.mrb[0].mxu0 %v3303
      %v3305 = vpop.f32.mrb[0].mxu0
      %v3306 = vadd.f32 %v3224, %v3305
      %v3307 = vpop.f32.mrb[0].mxu0
      %v3308 = vadd.f32 %v3226, %v3307
      %3309 = vdwg.mxu0
      %v3310 = vand.u32 %v3148, 4294901760
      %v3311 = vsub.f32 %v3148, %v3310
      %3312 = vmatprep.subr.mxu0 %v3311
      %v3313 = vand.u32 %v3146, 4294901760
      %v3314 = vsub.f32 %v3146, %v3313
      %3315 = vmatpush1.msra.mxu0 %v3314
      %3316 = vmatprep.subr.mxu0 0.0
      %3317 = vmatpush1.msra.mxu0 0.0
      %3318 = vmatprep.subr.mxu0 0.0
      %3319 = vmatpush1.msra.mxu0 0.0
      %3320 = vmatprep.subr.mxu0 0.0
      %3321 = vmatpush1.msra.mxu0 0.0
      %3322 = vmatprep.subr.mxu0 0.0
      %3323 = vmatpush1.msra.mxu0 0.0
      %3324 = vmatprep.subr.mxu0 0.0
      %3325 = vmatpush1.msra.mxu0 0.0
      %3326 = vmatprep.subr.mxu0 0.0
      %3327 = vmatpush1.msra.mxu0 0.0
      %3328 = vmatprep.subr.mxu0 0.0
      %3329 = vmatpush1.msra.mxu0 0.0
      %3330 = vmatprep.subr.mxu0 0.0
      %3331 = vmatpush1.msra.mxu0 0.0
      %3332 = vmatprep.subr.mxu0 0.0
      %3333 = vmatpush1.msra.mxu0 0.0
      %3334 = vmatprep.subr.mxu0 0.0
      %3335 = vmatpush1.msra.mxu0 0.0
      %3336 = vmatprep.subr.mxu0 0.0
      %3337 = vmatpush1.msra.mxu0 0.0
      %3338 = vmatprep.subr.mxu0 0.0
      %3339 = vmatpush1.msra.mxu0 0.0
      %3340 = vmatprep.subr.mxu0 0.0
      %3341 = vmatpush1.msra.mxu0 0.0
      %3342 = vmatprep.subr.mxu0 0.0
      %3343 = vmatpush1.msra.mxu0 0.0
      %3344 = vmatprep.subr.mxu0 0.0
      %3345 = vmatpush1.msra.mxu0 0.0
      %3346 = vmatprep.subr.mxu0 0.0
      %3347 = vmatpush1.msra.mxu0 0.0
      %3348 = vmatprep.subr.mxu0 0.0
      %3349 = vmatpush1.msra.mxu0 0.0
      %3350 = vmatprep.subr.mxu0 0.0
      %3351 = vmatpush1.msra.mxu0 0.0
      %3352 = vmatprep.subr.mxu0 0.0
      %3353 = vmatpush1.msra.mxu0 0.0
      %3354 = vmatprep.subr.mxu0 0.0
      %3355 = vmatpush1.msra.mxu0 0.0
      %3356 = vmatprep.subr.mxu0 0.0
      %3357 = vmatpush1.msra.mxu0 0.0
      %3358 = vmatprep.subr.mxu0 0.0
      %3359 = vmatpush1.msra.mxu0 0.0
      %3360 = vmatprep.subr.mxu0 0.0
      %3361 = vmatpush1.msra.mxu0 0.0
      %3362 = vmatprep.subr.mxu0 0.0
      %3363 = vmatpush1.msra.mxu0 0.0
      %3364 = vmatprep.subr.mxu0 0.0
      %3365 = vmatpush1.msra.mxu0 0.0
      %3366 = vmatprep.subr.mxu0 0.0
      %3367 = vmatpush1.msra.mxu0 0.0
      %3368 = vmatprep.subr.mxu0 0.0
      %3369 = vmatpush1.msra.mxu0 0.0
      %3370 = vmatprep.subr.mxu0 0.0
      %3371 = vmatpush1.msra.mxu0 0.0
      %3372 = vmatprep.subr.mxu0 0.0
      %3373 = vmatpush1.msra.mxu0 0.0
      %3374 = vmatprep.subr.mxu0 0.0
      %3375 = vmatpush1.msra.mxu0 0.0
      %3376 = vmatprep.subr.mxu0 0.0
      %3377 = vmatpush1.msra.mxu0 0.0
      %3378 = vmatprep.mubr.f32.mxu0 0.0
      %v3379 = vand.u32 %v3144, 4294901760
      %v3380 = vsub.f32 %v3144, %v3379
      %3381 = vmatmul.mubr.f32.gmra.mrb[0].mxu0 %v3380
      %v3382 = vpop.f32.mrb[0].mxu0
      %v3383 = vadd.f32 %v3306, %v3382
      %v3384 = vpop.f32.mrb[0].mxu0
      %v3385 = vadd.f32 %v3308, %v3384
      %3386 = vdwg.mxu0
      %v3387 = vand.u32 %v3148, 4294901760
      %3388 = vmatprep.subr.mxu0 %v3387
      %v3389 = vand.u32 %v3146, 4294901760
      %3390 = vmatpush1.msra.mxu0 %v3389
      %3391 = vmatprep.subr.mxu0 0.0
      %3392 = vmatpush1.msra.mxu0 0.0
      %3393 = vmatprep.subr.mxu0 0.0
      %3394 = vmatpush1.msra.mxu0 0.0
      %3395 = vmatprep.subr.mxu0 0.0
      %3396 = vmatpush1.msra.mxu0 0.0
      %3397 = vmatprep.subr.mxu0 0.0
      %3398 = vmatpush1.msra.mxu0 0.0
      %3399 = vmatprep.subr.mxu0 0.0
      %3400 = vmatpush1.msra.mxu0 0.0
      %3401 = vmatprep.subr.mxu0 0.0
      %3402 = vmatpush1.msra.mxu0 0.0
      %3403 = vmatprep.subr.mxu0 0.0
      %3404 = vmatpush1.msra.mxu0 0.0
      %3405 = vmatprep.subr.mxu0 0.0
      %3406 = vmatpush1.msra.mxu0 0.0
      %3407 = vmatprep.subr.mxu0 0.0
      %3408 = vmatpush1.msra.mxu0 0.0
      %3409 = vmatprep.subr.mxu0 0.0
      %3410 = vmatpush1.msra.mxu0 0.0
      %3411 = vmatprep.subr.mxu0 0.0
      %3412 = vmatpush1.msra.mxu0 0.0
      %3413 = vmatprep.subr.mxu0 0.0
      %3414 = vmatpush1.msra.mxu0 0.0
      %3415 = vmatprep.subr.mxu0 0.0
      %3416 = vmatpush1.msra.mxu0 0.0
      %3417 = vmatprep.subr.mxu0 0.0
      %3418 = vmatpush1.msra.mxu0 0.0
      %3419 = vmatprep.subr.mxu0 0.0
      %3420 = vmatpush1.msra.mxu0 0.0
      %3421 = vmatprep.subr.mxu0 0.0
      %3422 = vmatpush1.msra.mxu0 0.0
      %3423 = vmatprep.subr.mxu0 0.0
      %3424 = vmatpush1.msra.mxu0 0.0
      %3425 = vmatprep.subr.mxu0 0.0
      %3426 = vmatpush1.msra.mxu0 0.0
      %3427 = vmatprep.subr.mxu0 0.0
      %3428 = vmatpush1.msra.mxu0 0.0
      %3429 = vmatprep.subr.mxu0 0.0
      %3430 = vmatpush1.msra.mxu0 0.0
      %3431 = vmatprep.subr.mxu0 0.0
      %3432 = vmatpush1.msra.mxu0 0.0
      %3433 = vmatprep.subr.mxu0 0.0
      %3434 = vmatpush1.msra.mxu0 0.0
      %3435 = vmatprep.subr.mxu0 0.0
      %3436 = vmatpush1.msra.mxu0 0.0
      %3437 = vmatprep.subr.mxu0 0.0
      %3438 = vmatpush1.msra.mxu0 0.0
      %3439 = vmatprep.subr.mxu0 0.0
      %3440 = vmatpush1.msra.mxu0 0.0
      %3441 = vmatprep.subr.mxu0 0.0
      %3442 = vmatpush1.msra.mxu0 0.0
      %3443 = vmatprep.subr.mxu0 0.0
      %3444 = vmatpush1.msra.mxu0 0.0
      %3445 = vmatprep.subr.mxu0 0.0
      %3446 = vmatpush1.msra.mxu0 0.0
      %3447 = vmatprep.subr.mxu0 0.0
      %3448 = vmatpush1.msra.mxu0 0.0
      %3449 = vmatprep.subr.mxu0 0.0
      %3450 = vmatpush1.msra.mxu0 0.0
      %3451 = vmatprep.subr.mxu0 0.0
      %3452 = vmatpush1.msra.mxu0 0.0
      %3453 = vmatprep.mubr.f32.mxu0 0.0
      %v3454 = vand.u32 %v3144, 4294901760
      %v3455 = vsub.f32 %v3144, %v3454
      %v3456 = vand.u32 %v3455, 4294901760
      %3457 = vmatmul.mubr.f32.gmra.mrb[0].mxu0 %v3456
      %v3458 = vpop.f32.mrb[0].mxu0
      %v3459 = vadd.f32 %v3383, %v3458
      %v3460 = vpop.f32.mrb[0].mxu0
      %v3461 = vadd.f32 %v3385, %v3460
      %3462 = vdwg.mxu0
      %v3463 = vand.u32 %v3148, 4294901760
      %v3464 = vsub.f32 %v3148, %v3463
      %v3465 = vand.u32 %v3464, 4294901760
      %3466 = vmatprep.subr.mxu0 %v3465
      %v3467 = vand.u32 %v3146, 4294901760
      %v3468 = vsub.f32 %v3146, %v3467
      %v3469 = vand.u32 %v3468, 4294901760
      %3470 = vmatpush1.msra.mxu0 %v3469
      %3471 = vmatprep.subr.mxu0 0.0
      %3472 = vmatpush1.msra.mxu0 0.0
      %3473 = vmatprep.subr.mxu0 0.0
      %3474 = vmatpush1.msra.mxu0 0.0
      %3475 = vmatprep.subr.mxu0 0.0
      %3476 = vmatpush1.msra.mxu0 0.0
      %3477 = vmatprep.subr.mxu0 0.0
      %3478 = vmatpush1.msra.mxu0 0.0
      %3479 = vmatprep.subr.mxu0 0.0
      %3480 = vmatpush1.msra.mxu0 0.0
      %3481 = vmatprep.subr.mxu0 0.0
      %3482 = vmatpush1.msra.mxu0 0.0
      %3483 = vmatprep.subr.mxu0 0.0
      %3484 = vmatpush1.msra.mxu0 0.0
      %3485 = vmatprep.subr.mxu0 0.0
      %3486 = vmatpush1.msra.mxu0 0.0
      %3487 = vmatprep.subr.mxu0 0.0
      %3488 = vmatpush1.msra.mxu0 0.0
      %3489 = vmatprep.subr.mxu0 0.0
      %3490 = vmatpush1.msra.mxu0 0.0
      %3491 = vmatprep.subr.mxu0 0.0
      %3492 = vmatpush1.msra.mxu0 0.0
      %3493 = vmatprep.subr.mxu0 0.0
      %3494 = vmatpush1.msra.mxu0 0.0
      %3495 = vmatprep.subr.mxu0 0.0
      %3496 = vmatpush1.msra.mxu0 0.0
      %3497 = vmatprep.subr.mxu0 0.0
      %3498 = vmatpush1.msra.mxu0 0.0
      %3499 = vmatprep.subr.mxu0 0.0
      %3500 = vmatpush1.msra.mxu0 0.0
      %3501 = vmatprep.subr.mxu0 0.0
      %3502 = vmatpush1.msra.mxu0 0.0
      %3503 = vmatprep.subr.mxu0 0.0
      %3504 = vmatpush1.msra.mxu0 0.0
      %3505 = vmatprep.subr.mxu0 0.0
      %3506 = vmatpush1.msra.mxu0 0.0
      %3507 = vmatprep.subr.mxu0 0.0
      %3508 = vmatpush1.msra.mxu0 0.0
      %3509 = vmatprep.subr.mxu0 0.0
      %3510 = vmatpush1.msra.mxu0 0.0
      %3511 = vmatprep.subr.mxu0 0.0
      %3512 = vmatpush1.msra.mxu0 0.0
      %3513 = vmatprep.subr.mxu0 0.0
      %3514 = vmatpush1.msra.mxu0 0.0
      %3515 = vmatprep.subr.mxu0 0.0
      %3516 = vmatpush1.msra.mxu0 0.0
      %3517 = vmatprep.subr.mxu0 0.0
      %3518 = vmatpush1.msra.mxu0 0.0
      %3519 = vmatprep.subr.mxu0 0.0
      %3520 = vmatpush1.msra.mxu0 0.0
      %3521 = vmatprep.subr.mxu0 0.0
      %3522 = vmatpush1.msra.mxu0 0.0
      %3523 = vmatprep.subr.mxu0 0.0
      %3524 = vmatpush1.msra.mxu0 0.0
      %3525 = vmatprep.subr.mxu0 0.0
      %3526 = vmatpush1.msra.mxu0 0.0
      %3527 = vmatprep.subr.mxu0 0.0
      %3528 = vmatpush1.msra.mxu0 0.0
      %3529 = vmatprep.subr.mxu0 0.0
      %3530 = vmatpush1.msra.mxu0 0.0
      %3531 = vmatprep.subr.mxu0 0.0
      %3532 = vmatpush1.msra.mxu0 0.0
      %3533 = vmatprep.mubr.f32.mxu0 0.0
      %v3534 = vand.u32 %v3144, 4294901760
      %3535 = vmatmul.mubr.f32.gmra.mrb[0].mxu0 %v3534
      %v3536 = vpop.f32.mrb[0].mxu0
      %v3537 = vadd.f32 %v3459, %v3536
      %v3538 = vpop.f32.mrb[0].mxu0
      %v3539 = vadd.f32 %v3461, %v3538
      %3540 = vdwg.mxu0
      %v3541 = vand.u32 %v3148, 4294901760
      %3542 = vmatprep.subr.mxu0 %v3541
      %v3543 = vand.u32 %v3146, 4294901760
      %3544 = vmatpush1.msra.mxu0 %v3543
      %3545 = vmatprep.subr.mxu0 0.0
      %3546 = vmatpush1.msra.mxu0 0.0
      %3547 = vmatprep.subr.mxu0 0.0
      %3548 = vmatpush1.msra.mxu0 0.0
      %3549 = vmatprep.subr.mxu0 0.0
      %3550 = vmatpush1.msra.mxu0 0.0
      %3551 = vmatprep.subr.mxu0 0.0
      %3552 = vmatpush1.msra.mxu0 0.0
      %3553 = vmatprep.subr.mxu0 0.0
      %3554 = vmatpush1.msra.mxu0 0.0
      %3555 = vmatprep.subr.mxu0 0.0
      %3556 = vmatpush1.msra.mxu0 0.0
      %3557 = vmatprep.subr.mxu0 0.0
      %3558 = vmatpush1.msra.mxu0 0.0
      %3559 = vmatprep.subr.mxu0 0.0
      %3560 = vmatpush1.msra.mxu0 0.0
      %3561 = vmatprep.subr.mxu0 0.0
      %3562 = vmatpush1.msra.mxu0 0.0
      %3563 = vmatprep.subr.mxu0 0.0
      %3564 = vmatpush1.msra.mxu0 0.0
      %3565 = vmatprep.subr.mxu0 0.0
      %3566 = vmatpush1.msra.mxu0 0.0
      %3567 = vmatprep.subr.mxu0 0.0
      %3568 = vmatpush1.msra.mxu0 0.0
      %3569 = vmatprep.subr.mxu0 0.0
      %3570 = vmatpush1.msra.mxu0 0.0
      %3571 = vmatprep.subr.mxu0 0.0
      %3572 = vmatpush1.msra.mxu0 0.0
      %3573 = vmatprep.subr.mxu0 0.0
      %3574 = vmatpush1.msra.mxu0 0.0
      %3575 = vmatprep.subr.mxu0 0.0
      %3576 = vmatpush1.msra.mxu0 0.0
      %3577 = vmatprep.subr.mxu0 0.0
      %3578 = vmatpush1.msra.mxu0 0.0
      %3579 = vmatprep.subr.mxu0 0.0
      %3580 = vmatpush1.msra.mxu0 0.0
      %3581 = vmatprep.subr.mxu0 0.0
      %3582 = vmatpush1.msra.mxu0 0.0
      %3583 = vmatprep.subr.mxu0 0.0
      %3584 = vmatpush1.msra.mxu0 0.0
      %3585 = vmatprep.subr.mxu0 0.0
      %3586 = vmatpush1.msra.mxu0 0.0
      %3587 = vmatprep.subr.mxu0 0.0
      %3588 = vmatpush1.msra.mxu0 0.0
      %3589 = vmatprep.subr.mxu0 0.0
      %3590 = vmatpush1.msra.mxu0 0.0
      %3591 = vmatprep.subr.mxu0 0.0
      %3592 = vmatpush1.msra.mxu0 0.0
      %3593 = vmatprep.subr.mxu0 0.0
      %3594 = vmatpush1.msra.mxu0 0.0
      %3595 = vmatprep.subr.mxu0 0.0
      %3596 = vmatpush1.msra.mxu0 0.0
      %3597 = vmatprep.subr.mxu0 0.0
      %3598 = vmatpush1.msra.mxu0 0.0
      %3599 = vmatprep.subr.mxu0 0.0
      %3600 = vmatpush1.msra.mxu0 0.0
      %3601 = vmatprep.subr.mxu0 0.0
      %3602 = vmatpush1.msra.mxu0 0.0
      %3603 = vmatprep.subr.mxu0 0.0
      %3604 = vmatpush1.msra.mxu0 0.0
      %3605 = vmatprep.subr.mxu0 0.0
      %3606 = vmatpush1.msra.mxu0 0.0
      %3607 = vmatprep.mubr.f32.mxu0 0.0
      %v3608 = vand.u32 %v3144, 4294901760
      %3609 = vmatmul.mubr.f32.gmra.mrb[0].mxu0 %v3608
      %v3610 = vpop.f32.mrb[0].mxu0
      %v3611 = vadd.f32 %v3537, %v3610
      %v3612 = vpop.f32.mrb[0].mxu0
      %v3613 = vadd.f32 %v3539, %v3612
      %3614 = vdwg.mxu0
      %v3617 = vcombine.high %v3123, %v3123
      %3618 = vrot.lane.b32.xlu0 %v3123, 15
      %v3619 = vpop.permute.xlu0 %3618
      %3620 = vrot.lane.b32.xlu0 %v3617, 15
      %v3621 = vpop.permute.xlu0 %3620
      %3622 = vrot.lane.b32.xlu0 %v3124, 15
      %v3623 = vpop.permute.xlu0 %3622
      %vm3624 = vcmask 121856
      %v3625 = vsel %vm3624, %v3619, %v3621
      %v3626 = vsel %vm3624, %v3621, %v3623
      %v3628 = vsel %vm223, %v3126, 0
      %v3630 = vsel %vm227, %v3625, 0
      %v3632 = vsel %vm227, %v3626, 0
      %v3634 = vand.u32 %v3632, 4294901760
      %3635 = vmatprep.subr.mxu0 %v3634
      %v3636 = vand.u32 %v3630, 4294901760
      %3637 = vmatpush1.msra.mxu0 %v3636
      %3638 = vmatprep.subr.mxu0 0.0
      %3639 = vmatpush1.msra.mxu0 0.0
      %3640 = vmatprep.subr.mxu0 0.0
      %3641 = vmatpush1.msra.mxu0 0.0
      %3642 = vmatprep.subr.mxu0 0.0
      %3643 = vmatpush1.msra.mxu0 0.0
      %3644 = vmatprep.subr.mxu0 0.0
      %3645 = vmatpush1.msra.mxu0 0.0
      %3646 = vmatprep.subr.mxu0 0.0
      %3647 = vmatpush1.msra.mxu0 0.0
      %3648 = vmatprep.subr.mxu0 0.0
      %3649 = vmatpush1.msra.mxu0 0.0
      %3650 = vmatprep.subr.mxu0 0.0
      %3651 = vmatpush1.msra.mxu0 0.0
      %3652 = vmatprep.subr.mxu0 0.0
      %3653 = vmatpush1.msra.mxu0 0.0
      %3654 = vmatprep.subr.mxu0 0.0
      %3655 = vmatpush1.msra.mxu0 0.0
      %3656 = vmatprep.subr.mxu0 0.0
      %3657 = vmatpush1.msra.mxu0 0.0
      %3658 = vmatprep.subr.mxu0 0.0
      %3659 = vmatpush1.msra.mxu0 0.0
      %3660 = vmatprep.subr.mxu0 0.0
      %3661 = vmatpush1.msra.mxu0 0.0
      %3662 = vmatprep.subr.mxu0 0.0
      %3663 = vmatpush1.msra.mxu0 0.0
      %3664 = vmatprep.subr.mxu0 0.0
      %3665 = vmatpush1.msra.mxu0 0.0
      %3666 = vmatprep.subr.mxu0 0.0
      %3667 = vmatpush1.msra.mxu0 0.0
      %3668 = vmatprep.subr.mxu0 0.0
      %3669 = vmatpush1.msra.mxu0 0.0
      %3670 = vmatprep.subr.mxu0 0.0
      %3671 = vmatpush1.msra.mxu0 0.0
      %3672 = vmatprep.subr.mxu0 0.0
      %3673 = vmatpush1.msra.mxu0 0.0
      %3674 = vmatprep.subr.mxu0 0.0
      %3675 = vmatpush1.msra.mxu0 0.0
      %3676 = vmatprep.subr.mxu0 0.0
      %3677 = vmatpush1.msra.mxu0 0.0
      %3678 = vmatprep.subr.mxu0 0.0
      %3679 = vmatpush1.msra.mxu0 0.0
      %3680 = vmatprep.subr.mxu0 0.0
      %3681 = vmatpush1.msra.mxu0 0.0
      %3682 = vmatprep.subr.mxu0 0.0
      %3683 = vmatpush1.msra.mxu0 0.0
      %3684 = vmatprep.subr.mxu0 0.0
      %3685 = vmatpush1.msra.mxu0 0.0
      %3686 = vmatprep.subr.mxu0 0.0
      %3687 = vmatpush1.msra.mxu0 0.0
      %3688 = vmatprep.subr.mxu0 0.0
      %3689 = vmatpush1.msra.mxu0 0.0
      %3690 = vmatprep.subr.mxu0 0.0
      %3691 = vmatpush1.msra.mxu0 0.0
      %3692 = vmatprep.subr.mxu0 0.0
      %3693 = vmatpush1.msra.mxu0 0.0
      %3694 = vmatprep.subr.mxu0 0.0
      %3695 = vmatpush1.msra.mxu0 0.0
      %3696 = vmatprep.subr.mxu0 0.0
      %3697 = vmatpush1.msra.mxu0 0.0
      %3698 = vmatprep.subr.mxu0 0.0
      %3699 = vmatpush1.msra.mxu0 0.0
      %3700 = vmatprep.mubr.f32.mxu0 0.0
      %v3701 = vand.u32 %v3628, 4294901760
      %v3702 = vsub.f32 %v3628, %v3701
      %v3703 = vand.u32 %v3702, 4294901760
      %v3704 = vsub.f32 %v3702, %v3703
      %v3705 = vand.u32 %v3704, 4294901760
      %3706 = vmatmul.mubr.f32.gmra.mrb[0].mxu0 %v3705
      %v3707 = vpop.f32.mrb[0].mxu0
      %v3708 = vadd.f32 %v3611, %v3707
      %v3709 = vpop.f32.mrb[0].mxu0
      %v3710 = vadd.f32 %v3613, %v3709
      %3711 = vdwg.mxu0
      %v3712 = vand.u32 %v3632, 4294901760
      %v3713 = vsub.f32 %v3632, %v3712
      %v3714 = vand.u32 %v3713, 4294901760
      %v3715 = vsub.f32 %v3713, %v3714
      %v3716 = vand.u32 %v3715, 4294901760
      %3717 = vmatprep.subr.mxu0 %v3716
      %v3718 = vand.u32 %v3630, 4294901760
      %v3719 = vsub.f32 %v3630, %v3718
      %v3720 = vand.u32 %v3719, 4294901760
      %v3721 = vsub.f32 %v3719, %v3720
      %v3722 = vand.u32 %v3721, 4294901760
      %3723 = vmatpush1.msra.mxu0 %v3722
      %3724 = vmatprep.subr.mxu0 0.0
      %3725 = vmatpush1.msra.mxu0 0.0
      %3726 = vmatprep.subr.mxu0 0.0
      %3727 = vmatpush1.msra.mxu0 0.0
      %3728 = vmatprep.subr.mxu0 0.0
      %3729 = vmatpush1.msra.mxu0 0.0
      %3730 = vmatprep.subr.mxu0 0.0
      %3731 = vmatpush1.msra.mxu0 0.0
      %3732 = vmatprep.subr.mxu0 0.0
      %3733 = vmatpush1.msra.mxu0 0.0
      %3734 = vmatprep.subr.mxu0 0.0
      %3735 = vmatpush1.msra.mxu0 0.0
      %3736 = vmatprep.subr.mxu0 0.0
      %3737 = vmatpush1.msra.mxu0 0.0
      %3738 = vmatprep.subr.mxu0 0.0
      %3739 = vmatpush1.msra.mxu0 0.0
      %3740 = vmatprep.subr.mxu0 0.0
      %3741 = vmatpush1.msra.mxu0 0.0
      %3742 = vmatprep.subr.mxu0 0.0
      %3743 = vmatpush1.msra.mxu0 0.0
      %3744 = vmatprep.subr.mxu0 0.0
      %3745 = vmatpush1.msra.mxu0 0.0
      %3746 = vmatprep.subr.mxu0 0.0
      %3747 = vmatpush1.msra.mxu0 0.0
      %3748 = vmatprep.subr.mxu0 0.0
      %3749 = vmatpush1.msra.mxu0 0.0
      %3750 = vmatprep.subr.mxu0 0.0
      %3751 = vmatpush1.msra.mxu0 0.0
      %3752 = vmatprep.subr.mxu0 0.0
      %3753 = vmatpush1.msra.mxu0 0.0
      %3754 = vmatprep.subr.mxu0 0.0
      %3755 = vmatpush1.msra.mxu0 0.0
      %3756 = vmatprep.subr.mxu0 0.0
      %3757 = vmatpush1.msra.mxu0 0.0
      %3758 = vmatprep.subr.mxu0 0.0
      %3759 = vmatpush1.msra.mxu0 0.0
      %3760 = vmatprep.subr.mxu0 0.0
      %3761 = vmatpush1.msra.mxu0 0.0
      %3762 = vmatprep.subr.mxu0 0.0
      %3763 = vmatpush1.msra.mxu0 0.0
      %3764 = vmatprep.subr.mxu0 0.0
      %3765 = vmatpush1.msra.mxu0 0.0
      %3766 = vmatprep.subr.mxu0 0.0
      %3767 = vmatpush1.msra.mxu0 0.0
      %3768 = vmatprep.subr.mxu0 0.0
      %3769 = vmatpush1.msra.mxu0 0.0
      %3770 = vmatprep.subr.mxu0 0.0
      %3771 = vmatpush1.msra.mxu0 0.0
      %3772 = vmatprep.subr.mxu0 0.0
      %3773 = vmatpush1.msra.mxu0 0.0
      %3774 = vmatprep.subr.mxu0 0.0
      %3775 = vmatpush1.msra.mxu0 0.0
      %3776 = vmatprep.subr.mxu0 0.0
      %3777 = vmatpush1.msra.mxu0 0.0
      %3778 = vmatprep.subr.mxu0 0.0
      %3779 = vmatpush1.msra.mxu0 0.0
      %3780 = vmatprep.subr.mxu0 0.0
      %3781 = vmatpush1.msra.mxu0 0.0
      %3782 = vmatprep.subr.mxu0 0.0
      %3783 = vmatpush1.msra.mxu0 0.0
      %3784 = vmatprep.subr.mxu0 0.0
      %3785 = vmatpush1.msra.mxu0 0.0
      %3786 = vmatprep.mubr.f32.mxu0 0.0
      %v3787 = vand.u32 %v3628, 4294901760
      %3788 = vmatmul.mubr.f32.gmra.mrb[0].mxu0 %v3787
      %v3789 = vpop.f32.mrb[0].mxu0
      %v3790 = vadd.f32 %v3708, %v3789
      %v3791 = vpop.f32.mrb[0].mxu0
      %v3792 = vadd.f32 %v3710, %v3791
      %3793 = vdwg.mxu0
      %v3794 = vand.u32 %v3632, 4294901760
      %v3795 = vsub.f32 %v3632, %v3794
      %3796 = vmatprep.subr.mxu0 %v3795
      %v3797 = vand.u32 %v3630, 4294901760
      %v3798 = vsub.f32 %v3630, %v3797
      %3799 = vmatpush1.msra.mxu0 %v3798
      %3800 = vmatprep.subr.mxu0 0.0
      %3801 = vmatpush1.msra.mxu0 0.0
      %3802 = vmatprep.subr.mxu0 0.0
      %3803 = vmatpush1.msra.mxu0 0.0
      %3804 = vmatprep.subr.mxu0 0.0
      %3805 = vmatpush1.msra.mxu0 0.0
      %3806 = vmatprep.subr.mxu0 0.0
      %3807 = vmatpush1.msra.mxu0 0.0
      %3808 = vmatprep.subr.mxu0 0.0
      %3809 = vmatpush1.msra.mxu0 0.0
      %3810 = vmatprep.subr.mxu0 0.0
      %3811 = vmatpush1.msra.mxu0 0.0
      %3812 = vmatprep.subr.mxu0 0.0
      %3813 = vmatpush1.msra.mxu0 0.0
      %3814 = vmatprep.subr.mxu0 0.0
      %3815 = vmatpush1.msra.mxu0 0.0
      %3816 = vmatprep.subr.mxu0 0.0
      %3817 = vmatpush1.msra.mxu0 0.0
      %3818 = vmatprep.subr.mxu0 0.0
      %3819 = vmatpush1.msra.mxu0 0.0
      %3820 = vmatprep.subr.mxu0 0.0
      %3821 = vmatpush1.msra.mxu0 0.0
      %3822 = vmatprep.subr.mxu0 0.0
      %3823 = vmatpush1.msra.mxu0 0.0
      %3824 = vmatprep.subr.mxu0 0.0
      %3825 = vmatpush1.msra.mxu0 0.0
      %3826 = vmatprep.subr.mxu0 0.0
      %3827 = vmatpush1.msra.mxu0 0.0
      %3828 = vmatprep.subr.mxu0 0.0
      %3829 = vmatpush1.msra.mxu0 0.0
      %3830 = vmatprep.subr.mxu0 0.0
      %3831 = vmatpush1.msra.mxu0 0.0
      %3832 = vmatprep.subr.mxu0 0.0
      %3833 = vmatpush1.msra.mxu0 0.0
      %3834 = vmatprep.subr.mxu0 0.0
      %3835 = vmatpush1.msra.mxu0 0.0
      %3836 = vmatprep.subr.mxu0 0.0
      %3837 = vmatpush1.msra.mxu0 0.0
      %3838 = vmatprep.subr.mxu0 0.0
      %3839 = vmatpush1.msra.mxu0 0.0
      %3840 = vmatprep.subr.mxu0 0.0
      %3841 = vmatpush1.msra.mxu0 0.0
      %3842 = vmatprep.subr.mxu0 0.0
      %3843 = vmatpush1.msra.mxu0 0.0
      %3844 = vmatprep.subr.mxu0 0.0
      %3845 = vmatpush1.msra.mxu0 0.0
      %3846 = vmatprep.subr.mxu0 0.0
      %3847 = vmatpush1.msra.mxu0 0.0
      %3848 = vmatprep.subr.mxu0 0.0
      %3849 = vmatpush1.msra.mxu0 0.0
      %3850 = vmatprep.subr.mxu0 0.0
      %3851 = vmatpush1.msra.mxu0 0.0
      %3852 = vmatprep.subr.mxu0 0.0
      %3853 = vmatpush1.msra.mxu0 0.0
      %3854 = vmatprep.subr.mxu0 0.0
      %3855 = vmatpush1.msra.mxu0 0.0
      %3856 = vmatprep.subr.mxu0 0.0
      %3857 = vmatpush1.msra.mxu0 0.0
      %3858 = vmatprep.subr.mxu0 0.0
      %3859 = vmatpush1.msra.mxu0 0.0
      %3860 = vmatprep.subr.mxu0 0.0
      %3861 = vmatpush1.msra.mxu0 0.0
      %3862 = vmatprep.mubr.f32.mxu0 0.0
      %v3863 = vand.u32 %v3628, 4294901760
      %v3864 = vsub.f32 %v3628, %v3863
      %3865 = vmatmul.mubr.f32.gmra.mrb[0].mxu0 %v3864
      %v3866 = vpop.f32.mrb[0].mxu0
      %v3867 = vadd.f32 %v3790, %v3866
      %v3868 = vpop.f32.mrb[0].mxu0
      %v3869 = vadd.f32 %v3792, %v3868
      %3870 = vdwg.mxu0
      %v3871 = vand.u32 %v3632, 4294901760
      %3872 = vmatprep.subr.mxu0 %v3871
      %v3873 = vand.u32 %v3630, 4294901760
      %3874 = vmatpush1.msra.mxu0 %v3873
      %3875 = vmatprep.subr.mxu0 0.0
      %3876 = vmatpush1.msra.mxu0 0.0
      %3877 = vmatprep.subr.mxu0 0.0
      %3878 = vmatpush1.msra.mxu0 0.0
      %3879 = vmatprep.subr.mxu0 0.0
      %3880 = vmatpush1.msra.mxu0 0.0
      %3881 = vmatprep.subr.mxu0 0.0
      %3882 = vmatpush1.msra.mxu0 0.0
      %3883 = vmatprep.subr.mxu0 0.0
      %3884 = vmatpush1.msra.mxu0 0.0
      %3885 = vmatprep.subr.mxu0 0.0
      %3886 = vmatpush1.msra.mxu0 0.0
      %3887 = vmatprep.subr.mxu0 0.0
      %3888 = vmatpush1.msra.mxu0 0.0
      %3889 = vmatprep.subr.mxu0 0.0
      %3890 = vmatpush1.msra.mxu0 0.0
      %3891 = vmatprep.subr.mxu0 0.0
      %3892 = vmatpush1.msra.mxu0 0.0
      %3893 = vmatprep.subr.mxu0 0.0
      %3894 = vmatpush1.msra.mxu0 0.0
      %3895 = vmatprep.subr.mxu0 0.0
      %3896 = vmatpush1.msra.mxu0 0.0
      %3897 = vmatprep.subr.mxu0 0.0
      %3898 = vmatpush1.msra.mxu0 0.0
      %3899 = vmatprep.subr.mxu0 0.0
      %3900 = vmatpush1.msra.mxu0 0.0
      %3901 = vmatprep.subr.mxu0 0.0
      %3902 = vmatpush1.msra.mxu0 0.0
      %3903 = vmatprep.subr.mxu0 0.0
      %3904 = vmatpush1.msra.mxu0 0.0
      %3905 = vmatprep.subr.mxu0 0.0
      %3906 = vmatpush1.msra.mxu0 0.0
      %3907 = vmatprep.subr.mxu0 0.0
      %3908 = vmatpush1.msra.mxu0 0.0
      %3909 = vmatprep.subr.mxu0 0.0
      %3910 = vmatpush1.msra.mxu0 0.0
      %3911 = vmatprep.subr.mxu0 0.0
      %3912 = vmatpush1.msra.mxu0 0.0
      %3913 = vmatprep.subr.mxu0 0.0
      %3914 = vmatpush1.msra.mxu0 0.0
      %3915 = vmatprep.subr.mxu0 0.0
      %3916 = vmatpush1.msra.mxu0 0.0
      %3917 = vmatprep.subr.mxu0 0.0
      %3918 = vmatpush1.msra.mxu0 0.0
      %3919 = vmatprep.subr.mxu0 0.0
      %3920 = vmatpush1.msra.mxu0 0.0
      %3921 = vmatprep.subr.mxu0 0.0
      %3922 = vmatpush1.msra.mxu0 0.0
      %3923 = vmatprep.subr.mxu0 0.0
      %3924 = vmatpush1.msra.mxu0 0.0
      %3925 = vmatprep.subr.mxu0 0.0
      %3926 = vmatpush1.msra.mxu0 0.0
      %3927 = vmatprep.subr.mxu0 0.0
      %3928 = vmatpush1.msra.mxu0 0.0
      %3929 = vmatprep.subr.mxu0 0.0
      %3930 = vmatpush1.msra.mxu0 0.0
      %3931 = vmatprep.subr.mxu0 0.0
      %3932 = vmatpush1.msra.mxu0 0.0
      %3933 = vmatprep.subr.mxu0 0.0
      %3934 = vmatpush1.msra.mxu0 0.0
      %3935 = vmatprep.subr.mxu0 0.0
      %3936 = vmatpush1.msra.mxu0 0.0
      %3937 = vmatprep.mubr.f32.mxu0 0.0
      %v3938 = vand.u32 %v3628, 4294901760
      %v3939 = vsub.f32 %v3628, %v3938
      %v3940 = vand.u32 %v3939, 4294901760
      %3941 = vmatmul.mubr.f32.gmra.mrb[0].mxu0 %v3940
      %v3942 = vpop.f32.mrb[0].mxu0
      %v3943 = vadd.f32 %v3867, %v3942
      %v3944 = vpop.f32.mrb[0].mxu0
      %v3945 = vadd.f32 %v3869, %v3944
      %3946 = vdwg.mxu0
      %v3947 = vand.u32 %v3632, 4294901760
      %v3948 = vsub.f32 %v3632, %v3947
      %v3949 = vand.u32 %v3948, 4294901760
      %3950 = vmatprep.subr.mxu0 %v3949
      %v3951 = vand.u32 %v3630, 4294901760
      %v3952 = vsub.f32 %v3630, %v3951
      %v3953 = vand.u32 %v3952, 4294901760
      %3954 = vmatpush1.msra.mxu0 %v3953
      %3955 = vmatprep.subr.mxu0 0.0
      %3956 = vmatpush1.msra.mxu0 0.0
      %3957 = vmatprep.subr.mxu0 0.0
      %3958 = vmatpush1.msra.mxu0 0.0
      %3959 = vmatprep.subr.mxu0 0.0
      %3960 = vmatpush1.msra.mxu0 0.0
      %3961 = vmatprep.subr.mxu0 0.0
      %3962 = vmatpush1.msra.mxu0 0.0
      %3963 = vmatprep.subr.mxu0 0.0
      %3964 = vmatpush1.msra.mxu0 0.0
      %3965 = vmatprep.subr.mxu0 0.0
      %3966 = vmatpush1.msra.mxu0 0.0
      %3967 = vmatprep.subr.mxu0 0.0
      %3968 = vmatpush1.msra.mxu0 0.0
      %3969 = vmatprep.subr.mxu0 0.0
      %3970 = vmatpush1.msra.mxu0 0.0
      %3971 = vmatprep.subr.mxu0 0.0
      %3972 = vmatpush1.msra.mxu0 0.0
      %3973 = vmatprep.subr.mxu0 0.0
      %3974 = vmatpush1.msra.mxu0 0.0
      %3975 = vmatprep.subr.mxu0 0.0
      %3976 = vmatpush1.msra.mxu0 0.0
      %3977 = vmatprep.subr.mxu0 0.0
      %3978 = vmatpush1.msra.mxu0 0.0
      %3979 = vmatprep.subr.mxu0 0.0
      %3980 = vmatpush1.msra.mxu0 0.0
      %3981 = vmatprep.subr.mxu0 0.0
      %3982 = vmatpush1.msra.mxu0 0.0
      %3983 = vmatprep.subr.mxu0 0.0
      %3984 = vmatpush1.msra.mxu0 0.0
      %3985 = vmatprep.subr.mxu0 0.0
      %3986 = vmatpush1.msra.mxu0 0.0
      %3987 = vmatprep.subr.mxu0 0.0
      %3988 = vmatpush1.msra.mxu0 0.0
      %3989 = vmatprep.subr.mxu0 0.0
      %3990 = vmatpush1.msra.mxu0 0.0
      %3991 = vmatprep.subr.mxu0 0.0
      %3992 = vmatpush1.msra.mxu0 0.0
      %3993 = vmatprep.subr.mxu0 0.0
      %3994 = vmatpush1.msra.mxu0 0.0
      %3995 = vmatprep.subr.mxu0 0.0
      %3996 = vmatpush1.msra.mxu0 0.0
      %3997 = vmatprep.subr.mxu0 0.0
      %3998 = vmatpush1.msra.mxu0 0.0
      %3999 = vmatprep.subr.mxu0 0.0
      %4000 = vmatpush1.msra.mxu0 0.0
      %4001 = vmatprep.subr.mxu0 0.0
      %4002 = vmatpush1.msra.mxu0 0.0
      %4003 = vmatprep.subr.mxu0 0.0
      %4004 = vmatpush1.msra.mxu0 0.0
      %4005 = vmatprep.subr.mxu0 0.0
      %4006 = vmatpush1.msra.mxu0 0.0
      %4007 = vmatprep.subr.mxu0 0.0
      %4008 = vmatpush1.msra.mxu0 0.0
      %4009 = vmatprep.subr.mxu0 0.0
      %4010 = vmatpush1.msra.mxu0 0.0
      %4011 = vmatprep.subr.mxu0 0.0
      %4012 = vmatpush1.msra.mxu0 0.0
      %4013 = vmatprep.subr.mxu0 0.0
      %4014 = vmatpush1.msra.mxu0 0.0
      %4015 = vmatprep.subr.mxu0 0.0
      %4016 = vmatpush1.msra.mxu0 0.0
      %4017 = vmatprep.mubr.f32.mxu0 0.0
      %v4018 = vand.u32 %v3628, 4294901760
      %4019 = vmatmul.mubr.f32.gmra.mrb[0].mxu0 %v4018
      %v4020 = vpop.f32.mrb[0].mxu0
      %v4021 = vadd.f32 %v3943, %v4020
      %v4022 = vpop.f32.mrb[0].mxu0
      %v4023 = vadd.f32 %v3945, %v4022
      %4024 = vdwg.mxu0
      %v4025 = vand.u32 %v3632, 4294901760
      %4026 = vmatprep.subr.mxu0 %v4025
      %v4027 = vand.u32 %v3630, 4294901760
      %4028 = vmatpush1.msra.mxu0 %v4027
      %4029 = vmatprep.subr.mxu0 0.0
      %4030 = vmatpush1.msra.mxu0 0.0
      %4031 = vmatprep.subr.mxu0 0.0
      %4032 = vmatpush1.msra.mxu0 0.0
      %4033 = vmatprep.subr.mxu0 0.0
      %4034 = vmatpush1.msra.mxu0 0.0
      %4035 = vmatprep.subr.mxu0 0.0
      %4036 = vmatpush1.msra.mxu0 0.0
      %4037 = vmatprep.subr.mxu0 0.0
      %4038 = vmatpush1.msra.mxu0 0.0
      %4039 = vmatprep.subr.mxu0 0.0
      %4040 = vmatpush1.msra.mxu0 0.0
      %4041 = vmatprep.subr.mxu0 0.0
      %4042 = vmatpush1.msra.mxu0 0.0
      %4043 = vmatprep.subr.mxu0 0.0
      %4044 = vmatpush1.msra.mxu0 0.0
      %4045 = vmatprep.subr.mxu0 0.0
      %4046 = vmatpush1.msra.mxu0 0.0
      %4047 = vmatprep.subr.mxu0 0.0
      %4048 = vmatpush1.msra.mxu0 0.0
      %4049 = vmatprep.subr.mxu0 0.0
      %4050 = vmatpush1.msra.mxu0 0.0
      %4051 = vmatprep.subr.mxu0 0.0
      %4052 = vmatpush1.msra.mxu0 0.0
      %4053 = vmatprep.subr.mxu0 0.0
      %4054 = vmatpush1.msra.mxu0 0.0
      %4055 = vmatprep.subr.mxu0 0.0
      %4056 = vmatpush1.msra.mxu0 0.0
      %4057 = vmatprep.subr.mxu0 0.0
      %4058 = vmatpush1.msra.mxu0 0.0
      %4059 = vmatprep.subr.mxu0 0.0
      %4060 = vmatpush1.msra.mxu0 0.0
      %4061 = vmatprep.subr.mxu0 0.0
      %4062 = vmatpush1.msra.mxu0 0.0
      %4063 = vmatprep.subr.mxu0 0.0
      %4064 = vmatpush1.msra.mxu0 0.0
      %4065 = vmatprep.subr.mxu0 0.0
      %4066 = vmatpush1.msra.mxu0 0.0
      %4067 = vmatprep.subr.mxu0 0.0
      %4068 = vmatpush1.msra.mxu0 0.0
      %4069 = vmatprep.subr.mxu0 0.0
      %4070 = vmatpush1.msra.mxu0 0.0
      %4071 = vmatprep.subr.mxu0 0.0
      %4072 = vmatpush1.msra.mxu0 0.0
      %4073 = vmatprep.subr.mxu0 0.0
      %4074 = vmatpush1.msra.mxu0 0.0
      %4075 = vmatprep.subr.mxu0 0.0
      %4076 = vmatpush1.msra.mxu0 0.0
      %4077 = vmatprep.subr.mxu0 0.0
      %4078 = vmatpush1.msra.mxu0 0.0
      %4079 = vmatprep.subr.mxu0 0.0
      %4080 = vmatpush1.msra.mxu0 0.0
      %4081 = vmatprep.subr.mxu0 0.0
      %4082 = vmatpush1.msra.mxu0 0.0
      %4083 = vmatprep.subr.mxu0 0.0
      %4084 = vmatpush1.msra.mxu0 0.0
      %4085 = vmatprep.subr.mxu0 0.0
      %4086 = vmatpush1.msra.mxu0 0.0
      %4087 = vmatprep.subr.mxu0 0.0
      %4088 = vmatpush1.msra.mxu0 0.0
      %4089 = vmatprep.subr.mxu0 0.0
      %4090 = vmatpush1.msra.mxu0 0.0
      %4091 = vmatprep.mubr.f32.mxu0 0.0
      %v4092 = vand.u32 %v3628, 4294901760
      %4093 = vmatmul.mubr.f32.gmra.mrb[0].mxu0 %v4092
      %v4094 = vpop.f32.mrb[0].mxu0
      %v4095 = vadd.f32 %v4021, %v4094
      %v4096 = vpop.f32.mrb[0].mxu0
      %v4097 = vadd.f32 %v4023, %v4096
      %4098 = vdwg.mxu0
      %v4099 = vld [vmem:[#allocation2 + $0x4] sm:$0xff]
      %v4100 = vld [vmem:[#allocation2 + $0xc] sm:$0xf]
      %s4101 = scalar_lea.vmem %s1, 32
      %v4102 = vld [vmem:[%s4101] sm:$0xf]
      %v4105 = vcombine.high %v4099, %v4099
      %4106 = vrot.lane.b32.xlu0 %v4099, 111
      %v4107 = vpop.permute.xlu0 %4106
      %4108 = vrot.lane.b32.xlu0 %v4105, 111
      %v4109 = vpop.permute.xlu0 %4108
      %4110 = vrot.lane.b32.xlu0 %v4100, 111
      %v4111 = vpop.permute.xlu0 %4110
      %vm4112 = vcmask 908288
      %v4113 = vsel %vm4112, %v4107, %v4109
      %v4114 = vsel %vm4112, %v4109, %v4111
      %v4116 = vsel %vm223, %v4102, 0
      %v4118 = vsel %vm227, %v4113, 0
      %v4120 = vsel %vm227, %v4114, 0
      %v4122 = vand.u32 %v4120, 4294901760
      %4123 = vmatprep.subr.mxu0 %v4122
      %v4124 = vand.u32 %v4118, 4294901760
      %4125 = vmatpush1.msra.mxu0 %v4124
      %4126 = vmatprep.subr.mxu0 0.0
      %4127 = vmatpush1.msra.mxu0 0.0
      %4128 = vmatprep.subr.mxu0 0.0
      %4129 = vmatpush1.msra.mxu0 0.0
      %4130 = vmatprep.subr.mxu0 0.0
      %4131 = vmatpush1.msra.mxu0 0.0
      %4132 = vmatprep.subr.mxu0 0.0
      %4133 = vmatpush1.msra.mxu0 0.0
      %4134 = vmatprep.subr.mxu0 0.0
      %4135 = vmatpush1.msra.mxu0 0.0
      %4136 = vmatprep.subr.mxu0 0.0
      %4137 = vmatpush1.msra.mxu0 0.0
      %4138 = vmatprep.subr.mxu0 0.0
      %4139 = vmatpush1.msra.mxu0 0.0
      %4140 = vmatprep.subr.mxu0 0.0
      %4141 = vmatpush1.msra.mxu0 0.0
      %4142 = vmatprep.subr.mxu0 0.0
      %4143 = vmatpush1.msra.mxu0 0.0
      %4144 = vmatprep.subr.mxu0 0.0
      %4145 = vmatpush1.msra.mxu0 0.0
      %4146 = vmatprep.subr.mxu0 0.0
      %4147 = vmatpush1.msra.mxu0 0.0
      %4148 = vmatprep.subr.mxu0 0.0
      %4149 = vmatpush1.msra.mxu0 0.0
      %4150 = vmatprep.subr.mxu0 0.0
      %4151 = vmatpush1.msra.mxu0 0.0
      %4152 = vmatprep.subr.mxu0 0.0
      %4153 = vmatpush1.msra.mxu0 0.0
      %4154 = vmatprep.subr.mxu0 0.0
      %4155 = vmatpush1.msra.mxu0 0.0
      %4156 = vmatprep.subr.mxu0 0.0
      %4157 = vmatpush1.msra.mxu0 0.0
      %4158 = vmatprep.subr.mxu0 0.0
      %4159 = vmatpush1.msra.mxu0 0.0
      %4160 = vmatprep.subr.mxu0 0.0
      %4161 = vmatpush1.msra.mxu0 0.0
      %4162 = vmatprep.subr.mxu0 0.0
      %4163 = vmatpush1.msra.mxu0 0.0
      %4164 = vmatprep.subr.mxu0 0.0
      %4165 = vmatpush1.msra.mxu0 0.0
      %4166 = vmatprep.subr.mxu0 0.0
      %4167 = vmatpush1.msra.mxu0 0.0
      %4168 = vmatprep.subr.mxu0 0.0
      %4169 = vmatpush1.msra.mxu0 0.0
      %4170 = vmatprep.subr.mxu0 0.0
      %4171 = vmatpush1.msra.mxu0 0.0
      %4172 = vmatprep.subr.mxu0 0.0
      %4173 = vmatpush1.msra.mxu0 0.0
      %4174 = vmatprep.subr.mxu0 0.0
      %4175 = vmatpush1.msra.mxu0 0.0
      %4176 = vmatprep.subr.mxu0 0.0
      %4177 = vmatpush1.msra.mxu0 0.0
      %4178 = vmatprep.subr.mxu0 0.0
      %4179 = vmatpush1.msra.mxu0 0.0
      %4180 = vmatprep.subr.mxu0 0.0
      %4181 = vmatpush1.msra.mxu0 0.0
      %4182 = vmatprep.subr.mxu0 0.0
      %4183 = vmatpush1.msra.mxu0 0.0
      %4184 = vmatprep.subr.mxu0 0.0
      %4185 = vmatpush1.msra.mxu0 0.0
      %4186 = vmatprep.subr.mxu0 0.0
      %4187 = vmatpush1.msra.mxu0 0.0
      %4188 = vmatprep.mubr.f32.mxu0 0.0
      %v4189 = vand.u32 %v4116, 4294901760
      %v4190 = vsub.f32 %v4116, %v4189
      %v4191 = vand.u32 %v4190, 4294901760
      %v4192 = vsub.f32 %v4190, %v4191
      %v4193 = vand.u32 %v4192, 4294901760
      %4194 = vmatmul.mubr.f32.gmra.mrb[0].mxu0 %v4193
      %v4195 = vpop.f32.mrb[0].mxu0
      %v4196 = vadd.f32 0.0, %v4195
      %v4197 = vpop.f32.mrb[0].mxu0
      %v4198 = vadd.f32 0.0, %v4197
      %4199 = vdwg.mxu0
      %v4200 = vand.u32 %v4120, 4294901760
      %v4201 = vsub.f32 %v4120, %v4200
      %v4202 = vand.u32 %v4201, 4294901760
      %v4203 = vsub.f32 %v4201, %v4202
      %v4204 = vand.u32 %v4203, 4294901760
      %4205 = vmatprep.subr.mxu0 %v4204
      %v4206 = vand.u32 %v4118, 4294901760
      %v4207 = vsub.f32 %v4118, %v4206
      %v4208 = vand.u32 %v4207, 4294901760
      %v4209 = vsub.f32 %v4207, %v4208
      %v4210 = vand.u32 %v4209, 4294901760
      %4211 = vmatpush1.msra.mxu0 %v4210
      %4212 = vmatprep.subr.mxu0 0.0
      %4213 = vmatpush1.msra.mxu0 0.0
      %4214 = vmatprep.subr.mxu0 0.0
      %4215 = vmatpush1.msra.mxu0 0.0
      %4216 = vmatprep.subr.mxu0 0.0
      %4217 = vmatpush1.msra.mxu0 0.0
      %4218 = vmatprep.subr.mxu0 0.0
      %4219 = vmatpush1.msra.mxu0 0.0
      %4220 = vmatprep.subr.mxu0 0.0
      %4221 = vmatpush1.msra.mxu0 0.0
      %4222 = vmatprep.subr.mxu0 0.0
      %4223 = vmatpush1.msra.mxu0 0.0
      %4224 = vmatprep.subr.mxu0 0.0
      %4225 = vmatpush1.msra.mxu0 0.0
      %4226 = vmatprep.subr.mxu0 0.0
      %4227 = vmatpush1.msra.mxu0 0.0
      %4228 = vmatprep.subr.mxu0 0.0
      %4229 = vmatpush1.msra.mxu0 0.0
      %4230 = vmatprep.subr.mxu0 0.0
      %4231 = vmatpush1.msra.mxu0 0.0
      %4232 = vmatprep.subr.mxu0 0.0
      %4233 = vmatpush1.msra.mxu0 0.0
      %4234 = vmatprep.subr.mxu0 0.0
      %4235 = vmatpush1.msra.mxu0 0.0
      %4236 = vmatprep.subr.mxu0 0.0
      %4237 = vmatpush1.msra.mxu0 0.0
      %4238 = vmatprep.subr.mxu0 0.0
      %4239 = vmatpush1.msra.mxu0 0.0
      %4240 = vmatprep.subr.mxu0 0.0
      %4241 = vmatpush1.msra.mxu0 0.0
      %4242 = vmatprep.subr.mxu0 0.0
      %4243 = vmatpush1.msra.mxu0 0.0
      %4244 = vmatprep.subr.mxu0 0.0
      %4245 = vmatpush1.msra.mxu0 0.0
      %4246 = vmatprep.subr.mxu0 0.0
      %4247 = vmatpush1.msra.mxu0 0.0
      %4248 = vmatprep.subr.mxu0 0.0
      %4249 = vmatpush1.msra.mxu0 0.0
      %4250 = vmatprep.subr.mxu0 0.0
      %4251 = vmatpush1.msra.mxu0 0.0
      %4252 = vmatprep.subr.mxu0 0.0
      %4253 = vmatpush1.msra.mxu0 0.0
      %4254 = vmatprep.subr.mxu0 0.0
      %4255 = vmatpush1.msra.mxu0 0.0
      %4256 = vmatprep.subr.mxu0 0.0
      %4257 = vmatpush1.msra.mxu0 0.0
      %4258 = vmatprep.subr.mxu0 0.0
      %4259 = vmatpush1.msra.mxu0 0.0
      %4260 = vmatprep.subr.mxu0 0.0
      %4261 = vmatpush1.msra.mxu0 0.0
      %4262 = vmatprep.subr.mxu0 0.0
      %4263 = vmatpush1.msra.mxu0 0.0
      %4264 = vmatprep.subr.mxu0 0.0
      %4265 = vmatpush1.msra.mxu0 0.0
      %4266 = vmatprep.subr.mxu0 0.0
      %4267 = vmatpush1.msra.mxu0 0.0
      %4268 = vmatprep.subr.mxu0 0.0
      %4269 = vmatpush1.msra.mxu0 0.0
      %4270 = vmatprep.subr.mxu0 0.0
      %4271 = vmatpush1.msra.mxu0 0.0
      %4272 = vmatprep.subr.mxu0 0.0
      %4273 = vmatpush1.msra.mxu0 0.0
      %4274 = vmatprep.mubr.f32.mxu0 0.0
      %v4275 = vand.u32 %v4116, 4294901760
      %4276 = vmatmul.mubr.f32.gmra.mrb[0].mxu0 %v4275
      %v4277 = vpop.f32.mrb[0].mxu0
      %v4278 = vadd.f32 %v4196, %v4277
      %v4279 = vpop.f32.mrb[0].mxu0
      %v4280 = vadd.f32 %v4198, %v4279
      %4281 = vdwg.mxu0
      %v4282 = vand.u32 %v4120, 4294901760
      %v4283 = vsub.f32 %v4120, %v4282
      %4284 = vmatprep.subr.mxu0 %v4283
      %v4285 = vand.u32 %v4118, 4294901760
      %v4286 = vsub.f32 %v4118, %v4285
      %4287 = vmatpush1.msra.mxu0 %v4286
      %4288 = vmatprep.subr.mxu0 0.0
      %4289 = vmatpush1.msra.mxu0 0.0
      %4290 = vmatprep.subr.mxu0 0.0
      %4291 = vmatpush1.msra.mxu0 0.0
      %4292 = vmatprep.subr.mxu0 0.0
      %4293 = vmatpush1.msra.mxu0 0.0
      %4294 = vmatprep.subr.mxu0 0.0
      %4295 = vmatpush1.msra.mxu0 0.0
      %4296 = vmatprep.subr.mxu0 0.0
      %4297 = vmatpush1.msra.mxu0 0.0
      %4298 = vmatprep.subr.mxu0 0.0
      %4299 = vmatpush1.msra.mxu0 0.0
      %4300 = vmatprep.subr.mxu0 0.0
      %4301 = vmatpush1.msra.mxu0 0.0
      %4302 = vmatprep.subr.mxu0 0.0
      %4303 = vmatpush1.msra.mxu0 0.0
      %4304 = vmatprep.subr.mxu0 0.0
      %4305 = vmatpush1.msra.mxu0 0.0
      %4306 = vmatprep.subr.mxu0 0.0
      %4307 = vmatpush1.msra.mxu0 0.0
      %4308 = vmatprep.subr.mxu0 0.0
      %4309 = vmatpush1.msra.mxu0 0.0
      %4310 = vmatprep.subr.mxu0 0.0
      %4311 = vmatpush1.msra.mxu0 0.0
      %4312 = vmatprep.subr.mxu0 0.0
      %4313 = vmatpush1.msra.mxu0 0.0
      %4314 = vmatprep.subr.mxu0 0.0
      %4315 = vmatpush1.msra.mxu0 0.0
      %4316 = vmatprep.subr.mxu0 0.0
      %4317 = vmatpush1.msra.mxu0 0.0
      %4318 = vmatprep.subr.mxu0 0.0
      %4319 = vmatpush1.msra.mxu0 0.0
      %4320 = vmatprep.subr.mxu0 0.0
      %4321 = vmatpush1.msra.mxu0 0.0
      %4322 = vmatprep.subr.mxu0 0.0
      %4323 = vmatpush1.msra.mxu0 0.0
      %4324 = vmatprep.subr.mxu0 0.0
      %4325 = vmatpush1.msra.mxu0 0.0
      %4326 = vmatprep.subr.mxu0 0.0
      %4327 = vmatpush1.msra.mxu0 0.0
      %4328 = vmatprep.subr.mxu0 0.0
      %4329 = vmatpush1.msra.mxu0 0.0
      %4330 = vmatprep.subr.mxu0 0.0
      %4331 = vmatpush1.msra.mxu0 0.0
      %4332 = vmatprep.subr.mxu0 0.0
      %4333 = vmatpush1.msra.mxu0 0.0
      %4334 = vmatprep.subr.mxu0 0.0
      %4335 = vmatpush1.msra.mxu0 0.0
      %4336 = vmatprep.subr.mxu0 0.0
      %4337 = vmatpush1.msra.mxu0 0.0
      %4338 = vmatprep.subr.mxu0 0.0
      %4339 = vmatpush1.msra.mxu0 0.0
      %4340 = vmatprep.subr.mxu0 0.0
      %4341 = vmatpush1.msra.mxu0 0.0
      %4342 = vmatprep.subr.mxu0 0.0
      %4343 = vmatpush1.msra.mxu0 0.0
      %4344 = vmatprep.subr.mxu0 0.0
      %4345 = vmatpush1.msra.mxu0 0.0
      %4346 = vmatprep.subr.mxu0 0.0
      %4347 = vmatpush1.msra.mxu0 0.0
      %4348 = vmatprep.subr.mxu0 0.0
      %4349 = vmatpush1.msra.mxu0 0.0
      %4350 = vmatprep.mubr.f32.mxu0 0.0
      %v4351 = vand.u32 %v4116, 4294901760
      %v4352 = vsub.f32 %v4116, %v4351
      %4353 = vmatmul.mubr.f32.gmra.mrb[0].mxu0 %v4352
      %v4354 = vpop.f32.mrb[0].mxu0
      %v4355 = vadd.f32 %v4278, %v4354
      %v4356 = vpop.f32.mrb[0].mxu0
      %v4357 = vadd.f32 %v4280, %v4356
      %4358 = vdwg.mxu0
      %v4359 = vand.u32 %v4120, 4294901760
      %4360 = vmatprep.subr.mxu0 %v4359
      %v4361 = vand.u32 %v4118, 4294901760
      %4362 = vmatpush1.msra.mxu0 %v4361
      %4363 = vmatprep.subr.mxu0 0.0
      %4364 = vmatpush1.msra.mxu0 0.0
      %4365 = vmatprep.subr.mxu0 0.0
      %4366 = vmatpush1.msra.mxu0 0.0
      %4367 = vmatprep.subr.mxu0 0.0
      %4368 = vmatpush1.msra.mxu0 0.0
      %4369 = vmatprep.subr.mxu0 0.0
      %4370 = vmatpush1.msra.mxu0 0.0
      %4371 = vmatprep.subr.mxu0 0.0
      %4372 = vmatpush1.msra.mxu0 0.0
      %4373 = vmatprep.subr.mxu0 0.0
      %4374 = vmatpush1.msra.mxu0 0.0
      %4375 = vmatprep.subr.mxu0 0.0
      %4376 = vmatpush1.msra.mxu0 0.0
      %4377 = vmatprep.subr.mxu0 0.0
      %4378 = vmatpush1.msra.mxu0 0.0
      %4379 = vmatprep.subr.mxu0 0.0
      %4380 = vmatpush1.msra.mxu0 0.0
      %4381 = vmatprep.subr.mxu0 0.0
      %4382 = vmatpush1.msra.mxu0 0.0
      %4383 = vmatprep.subr.mxu0 0.0
      %4384 = vmatpush1.msra.mxu0 0.0
      %4385 = vmatprep.subr.mxu0 0.0
      %4386 = vmatpush1.msra.mxu0 0.0
      %4387 = vmatprep.subr.mxu0 0.0
      %4388 = vmatpush1.msra.mxu0 0.0
      %4389 = vmatprep.subr.mxu0 0.0
      %4390 = vmatpush1.msra.mxu0 0.0
      %4391 = vmatprep.subr.mxu0 0.0
      %4392 = vmatpush1.msra.mxu0 0.0
      %4393 = vmatprep.subr.mxu0 0.0
      %4394 = vmatpush1.msra.mxu0 0.0
      %4395 = vmatprep.subr.mxu0 0.0
      %4396 = vmatpush1.msra.mxu0 0.0
      %4397 = vmatprep.subr.mxu0 0.0
      %4398 = vmatpush1.msra.mxu0 0.0
      %4399 = vmatprep.subr.mxu0 0.0
      %4400 = vmatpush1.msra.mxu0 0.0
      %4401 = vmatprep.subr.mxu0 0.0
      %4402 = vmatpush1.msra.mxu0 0.0
      %4403 = vmatprep.subr.mxu0 0.0
      %4404 = vmatpush1.msra.mxu0 0.0
      %4405 = vmatprep.subr.mxu0 0.0
      %4406 = vmatpush1.msra.mxu0 0.0
      %4407 = vmatprep.subr.mxu0 0.0
      %4408 = vmatpush1.msra.mxu0 0.0
      %4409 = vmatprep.subr.mxu0 0.0
      %4410 = vmatpush1.msra.mxu0 0.0
      %4411 = vmatprep.subr.mxu0 0.0
      %4412 = vmatpush1.msra.mxu0 0.0
      %4413 = vmatprep.subr.mxu0 0.0
      %4414 = vmatpush1.msra.mxu0 0.0
      %4415 = vmatprep.subr.mxu0 0.0
      %4416 = vmatpush1.msra.mxu0 0.0
      %4417 = vmatprep.subr.mxu0 0.0
      %4418 = vmatpush1.msra.mxu0 0.0
      %4419 = vmatprep.subr.mxu0 0.0
      %4420 = vmatpush1.msra.mxu0 0.0
      %4421 = vmatprep.subr.mxu0 0.0
      %4422 = vmatpush1.msra.mxu0 0.0
      %4423 = vmatprep.subr.mxu0 0.0
      %4424 = vmatpush1.msra.mxu0 0.0
      %4425 = vmatprep.mubr.f32.mxu0 0.0
      %v4426 = vand.u32 %v4116, 4294901760
      %v4427 = vsub.f32 %v4116, %v4426
      %v4428 = vand.u32 %v4427, 4294901760
      %4429 = vmatmul.mubr.f32.gmra.mrb[0].mxu0 %v4428
      %v4430 = vpop.f32.mrb[0].mxu0
      %v4431 = vadd.f32 %v4355, %v4430
      %v4432 = vpop.f32.mrb[0].mxu0
      %v4433 = vadd.f32 %v4357, %v4432
      %4434 = vdwg.mxu0
      %v4435 = vand.u32 %v4120, 4294901760
      %v4436 = vsub.f32 %v4120, %v4435
      %v4437 = vand.u32 %v4436, 4294901760
      %4438 = vmatprep.subr.mxu0 %v4437
      %v4439 = vand.u32 %v4118, 4294901760
      %v4440 = vsub.f32 %v4118, %v4439
      %v4441 = vand.u32 %v4440, 4294901760
      %4442 = vmatpush1.msra.mxu0 %v4441
      %4443 = vmatprep.subr.mxu0 0.0
      %4444 = vmatpush1.msra.mxu0 0.0
      %4445 = vmatprep.subr.mxu0 0.0
      %4446 = vmatpush1.msra.mxu0 0.0
      %4447 = vmatprep.subr.mxu0 0.0
      %4448 = vmatpush1.msra.mxu0 0.0
      %4449 = vmatprep.subr.mxu0 0.0
      %4450 = vmatpush1.msra.mxu0 0.0
      %4451 = vmatprep.subr.mxu0 0.0
      %4452 = vmatpush1.msra.mxu0 0.0
      %4453 = vmatprep.subr.mxu0 0.0
      %4454 = vmatpush1.msra.mxu0 0.0
      %4455 = vmatprep.subr.mxu0 0.0
      %4456 = vmatpush1.msra.mxu0 0.0
      %4457 = vmatprep.subr.mxu0 0.0
      %4458 = vmatpush1.msra.mxu0 0.0
      %4459 = vmatprep.subr.mxu0 0.0
      %4460 = vmatpush1.msra.mxu0 0.0
      %4461 = vmatprep.subr.mxu0 0.0
      %4462 = vmatpush1.msra.mxu0 0.0
      %4463 = vmatprep.subr.mxu0 0.0
      %4464 = vmatpush1.msra.mxu0 0.0
      %4465 = vmatprep.subr.mxu0 0.0
      %4466 = vmatpush1.msra.mxu0 0.0
      %4467 = vmatprep.subr.mxu0 0.0
      %4468 = vmatpush1.msra.mxu0 0.0
      %4469 = vmatprep.subr.mxu0 0.0
      %4470 = vmatpush1.msra.mxu0 0.0
      %4471 = vmatprep.subr.mxu0 0.0
      %4472 = vmatpush1.msra.mxu0 0.0
      %4473 = vmatprep.subr.mxu0 0.0
      %4474 = vmatpush1.msra.mxu0 0.0
      %4475 = vmatprep.subr.mxu0 0.0
      %4476 = vmatpush1.msra.mxu0 0.0
      %4477 = vmatprep.subr.mxu0 0.0
      %4478 = vmatpush1.msra.mxu0 0.0
      %4479 = vmatprep.subr.mxu0 0.0
      %4480 = vmatpush1.msra.mxu0 0.0
      %4481 = vmatprep.subr.mxu0 0.0
      %4482 = vmatpush1.msra.mxu0 0.0
      %4483 = vmatprep.subr.mxu0 0.0
      %4484 = vmatpush1.msra.mxu0 0.0
      %4485 = vmatprep.subr.mxu0 0.0
      %4486 = vmatpush1.msra.mxu0 0.0
      %4487 = vmatprep.subr.mxu0 0.0
      %4488 = vmatpush1.msra.mxu0 0.0
      %4489 = vmatprep.subr.mxu0 0.0
      %4490 = vmatpush1.msra.mxu0 0.0
      %4491 = vmatprep.subr.mxu0 0.0
      %4492 = vmatpush1.msra.mxu0 0.0
      %4493 = vmatprep.subr.mxu0 0.0
      %4494 = vmatpush1.msra.mxu0 0.0
      %4495 = vmatprep.subr.mxu0 0.0
      %4496 = vmatpush1.msra.mxu0 0.0
      %4497 = vmatprep.subr.mxu0 0.0
      %4498 = vmatpush1.msra.mxu0 0.0
      %4499 = vmatprep.subr.mxu0 0.0
      %4500 = vmatpush1.msra.mxu0 0.0
      %4501 = vmatprep.subr.mxu0 0.0
      %4502 = vmatpush1.msra.mxu0 0.0
      %4503 = vmatprep.subr.mxu0 0.0
      %4504 = vmatpush1.msra.mxu0 0.0
      %4505 = vmatprep.mubr.f32.mxu0 0.0
      %v4506 = vand.u32 %v4116, 4294901760
      %4507 = vmatmul.mubr.f32.gmra.mrb[0].mxu0 %v4506
      %v4508 = vpop.f32.mrb[0].mxu0
      %v4509 = vadd.f32 %v4431, %v4508
      %v4510 = vpop.f32.mrb[0].mxu0
      %v4511 = vadd.f32 %v4433, %v4510
      %4512 = vdwg.mxu0
      %v4513 = vand.u32 %v4120, 4294901760
      %4514 = vmatprep.subr.mxu0 %v4513
      %v4515 = vand.u32 %v4118, 4294901760
      %4516 = vmatpush1.msra.mxu0 %v4515
      %4517 = vmatprep.subr.mxu0 0.0
      %4518 = vmatpush1.msra.mxu0 0.0
      %4519 = vmatprep.subr.mxu0 0.0
      %4520 = vmatpush1.msra.mxu0 0.0
      %4521 = vmatprep.subr.mxu0 0.0
      %4522 = vmatpush1.msra.mxu0 0.0
      %4523 = vmatprep.subr.mxu0 0.0
      %4524 = vmatpush1.msra.mxu0 0.0
      %4525 = vmatprep.subr.mxu0 0.0
      %4526 = vmatpush1.msra.mxu0 0.0
      %4527 = vmatprep.subr.mxu0 0.0
      %4528 = vmatpush1.msra.mxu0 0.0
      %4529 = vmatprep.subr.mxu0 0.0
      %4530 = vmatpush1.msra.mxu0 0.0
      %4531 = vmatprep.subr.mxu0 0.0
      %4532 = vmatpush1.msra.mxu0 0.0
      %4533 = vmatprep.subr.mxu0 0.0
      %4534 = vmatpush1.msra.mxu0 0.0
      %4535 = vmatprep.subr.mxu0 0.0
      %4536 = vmatpush1.msra.mxu0 0.0
      %4537 = vmatprep.subr.mxu0 0.0
      %4538 = vmatpush1.msra.mxu0 0.0
      %4539 = vmatprep.subr.mxu0 0.0
      %4540 = vmatpush1.msra.mxu0 0.0
      %4541 = vmatprep.subr.mxu0 0.0
      %4542 = vmatpush1.msra.mxu0 0.0
      %4543 = vmatprep.subr.mxu0 0.0
      %4544 = vmatpush1.msra.mxu0 0.0
      %4545 = vmatprep.subr.mxu0 0.0
      %4546 = vmatpush1.msra.mxu0 0.0
      %4547 = vmatprep.subr.mxu0 0.0
      %4548 = vmatpush1.msra.mxu0 0.0
      %4549 = vmatprep.subr.mxu0 0.0
      %4550 = vmatpush1.msra.mxu0 0.0
      %4551 = vmatprep.subr.mxu0 0.0
      %4552 = vmatpush1.msra.mxu0 0.0
      %4553 = vmatprep.subr.mxu0 0.0
      %4554 = vmatpush1.msra.mxu0 0.0
      %4555 = vmatprep.subr.mxu0 0.0
      %4556 = vmatpush1.msra.mxu0 0.0
      %4557 = vmatprep.subr.mxu0 0.0
      %4558 = vmatpush1.msra.mxu0 0.0
      %4559 = vmatprep.subr.mxu0 0.0
      %4560 = vmatpush1.msra.mxu0 0.0
      %4561 = vmatprep.subr.mxu0 0.0
      %4562 = vmatpush1.msra.mxu0 0.0
      %4563 = vmatprep.subr.mxu0 0.0
      %4564 = vmatpush1.msra.mxu0 0.0
      %4565 = vmatprep.subr.mxu0 0.0
      %4566 = vmatpush1.msra.mxu0 0.0
      %4567 = vmatprep.subr.mxu0 0.0
      %4568 = vmatpush1.msra.mxu0 0.0
      %4569 = vmatprep.subr.mxu0 0.0
      %4570 = vmatpush1.msra.mxu0 0.0
      %4571 = vmatprep.subr.mxu0 0.0
      %4572 = vmatpush1.msra.mxu0 0.0
      %4573 = vmatprep.subr.mxu0 0.0
      %4574 = vmatpush1.msra.mxu0 0.0
      %4575 = vmatprep.subr.mxu0 0.0
      %4576 = vmatpush1.msra.mxu0 0.0
      %4577 = vmatprep.subr.mxu0 0.0
      %4578 = vmatpush1.msra.mxu0 0.0
      %4579 = vmatprep.mubr.f32.mxu0 0.0
      %v4580 = vand.u32 %v4116, 4294901760
      %4581 = vmatmul.mubr.f32.gmra.mrb[0].mxu0 %v4580
      %v4582 = vpop.f32.mrb[0].mxu0
      %v4583 = vadd.f32 %v4509, %v4582
      %v4584 = vpop.f32.mrb[0].mxu0
      %v4585 = vadd.f32 %v4511, %v4584
      %4586 = vdwg.mxu0
      %v4587 = vadd.f32 %v4095, %v4583
      %v4588 = vadd.f32 %v4097, %v4585
      %4590 = vset.pattern.permute.xlu0 0
      %4591 = vperm.xlu0 %4590, %v203
      %v4592 = vpop.permute.xlu0 %4591
      %v4594 = vadd.f32 %v3121, %v4592
      %v4595 = vadd.f32 %v3122, %v4592
      %v4597 = vlaneseq
      %v4598 = vshrl.u32 %v4597, 7
      %v4599 = vsub.s32 0, %v4598
      %v4600 = vrot.slane %v200, %v4599
      %v4601 = vlaneseq
      %v4602 = vshrl.u32 %v4601, 7
      %v4603 = vsub.s32 1, %v4602
      %v4604 = vrot.slane %v200, %v4603
      %v4607 = vmul.f32 %v4600, %v1666
      %v4608 = vmul.f32 %v4604, %v1667
      %v4609 = vadd.f32 %v4594, %v4607
      %v4610 = vadd.f32 %v4595, %v4608
      %v4612 = vlaneseq
      %v4613 = vshrl.u32 %v4612, 7
      %v4614 = vsub.s32 0, %v4613
      %v4615 = vrot.slane %v202, %v4614
      %v4616 = vlaneseq
      %v4617 = vshrl.u32 %v4616, 7
      %v4618 = vsub.s32 1, %v4617
      %v4619 = vrot.slane %v202, %v4618
      %v4622 = vmul.f32 %v4615, %v4587
      %v4623 = vmul.f32 %v4619, %v4588
      %v4624 = vadd.f32 %v4609, %v4622
      %v4625 = vadd.f32 %v4610, %v4623
      %v4626 = vxor.u32 %v4624, 2147483648
      %v4627 = vxor.u32 %v4625, 2147483648
      %v4628 = vmul.f32 %v4626, 1.442695
      %v4629 = vpow.pop %v4628
      %v4630 = vmul.f32 %v4627, 1.442695
      %v4631 = vpow.pop %v4630
      %v4632 = vadd.f32 %v4629, 1.0
      %v4633 = vadd.f32 %v4631, 1.0
      %v4634 = vrcp.pop %v4632
      %v4635 = vmul.f32 1.0, %v4634
      %v4636 = vrcp.pop %v4633
      %v4637 = vmul.f32 1.0, %v4636
      %v4638 = vmul.f32 %v4624, %v4635
      %v4639 = vmul.f32 %v4625, %v4637
      %v4642 = vcombine.low %v4638, %v4639
      %4644 = vst [vmem:[%s197] sm:$0xff] %v4642
      %p4645 = scmp.lt.s32.totalorder %s15, 1
      %s4646 = scalar_select %p4645, %s15, 1
      %s4647 = smul.addr %s4646, 2
      %s4648 = smul.addr %s4647, 4
      %s4649 = scalar_lea.vmem %s4, %s4648
      // Predicated region
      $region37: #{repconv_forward.1} parent=35 // pred_check
        %p4650 = pneg %p122
      $region38: #{repconv_forward.1} parent=35 // pred_check_branch
        %4652 = sbr.rel (%p4650) target = $region40
      $region39: #{repconv_forward.1} parent=35 // pred_region
        _
      $region40: #{repconv_forward.1} parent=35 // pred_fallthru
        _
    $region36: #{repconv_forward.1} parent=5 // pred_fallthru
      _
    %p4653 = scmp.le.s32.totalorder 2, %s10
    // Predicated region
    $region41: #{repconv_forward.1} parent=5 // pred_check
      %p4654 = pneg %p4653
    $region42: #{repconv_forward.1} parent=5 // pred_check_branch
      %4656 = sbr.rel (%p4654) target = $region44
    $region43: #{repconv_forward.1} parent=5 // pred_region
      %s4657 = ssub.s32 %s10, 2
      // Predicated region
      $region45: #{repconv_forward.1} parent=43 // pred_check
        %p4658 = pneg %p128
      $region46: #{repconv_forward.1} parent=43 // pred_check_branch
        %4660 = sbr.rel (%p4658) target = $region48
      $region47: #{repconv_forward.1} parent=43 // pred_region
        %p4661 = scmp.lt.s32.totalorder %s16, 1
        %s4662 = scalar_select %p4661, %s16, 1
        %s4663 = smul.addr %s4662, 2
        %s4664 = smul.addr %s4663, 4
        %s4665 = scalar_lea.vmem %s4, %s4664
      $region48: #{repconv_forward.1} parent=43 // pred_fallthru
        _
    $region44: #{repconv_forward.1} parent=5 // pred_fallthru
      _
  $region6: #{repconv_forward.1} parent=0 // loop_footer
    %s14 = sadd.s32 1, %s10
  $region7: #{repconv_forward.1} parent=0 // loop_footer_branch
    %9 = sbr.rel target = $region3
  $region8: #{repconv_forward.1} parent=0 // loop_exit
    _

</llo_original>
